<compile_context>
chip_gen: v6e
topology: v6e:2x2x1
jax: 0.10.0
libtpu: 0.0.40
codegen_flags: <defaults>
</compile_context>

<pallas_src>
import functools

import jax
import jax.numpy as jnp
import numpy as np
from jax.experimental import pallas as pl
from jax.experimental.pallas import tpu as pltpu

_LN_EPS = 1e-5


def _make_kernel(nlayers, do_ln_pre, do_ln_post, do_relu, n_img, D):
    inv_d = 1.0 / D

    def normalize(x, axis):
        # Independent reductions (sum, sum of squares) so the scheduler can overlap
        # them; biased variance + eps inside rsqrt, matching torch.nn.LayerNorm.
        s1 = jnp.sum(x, axis=axis, keepdims=True)
        s2 = jnp.sum(x * x, axis=axis, keepdims=True)
        mean = s1 * inv_d
        var = s2 * inv_d - mean * mean
        return (x - mean) * jax.lax.rsqrt(var + _LN_EPS)

    def kernel(x_ref, hw_ref, hv_ref, vw_ref, vv_ref, o_ref):
        x = x_ref[...].astype(jnp.float32)   # (TM, D): rows = (img, height), cols = chan

        # ---------------- horizontal stack (acts along the chan / lane axis) --------
        yh = x
        for l in range(nlayers):
            if do_ln_pre:
                yh = normalize(yh, axis=-1)              # affine folded into W / bias
            vec = hv_ref[l]                              # (3, D): [bias', gamma_post, beta_post]
            yh = jnp.dot(yh, hw_ref[l],
                         preferred_element_type=jnp.float32) + vec[0:1, :]
            if do_ln_post:
                yh = normalize(yh, axis=-1) * vec[1:2, :] + vec[2:3, :]
            if do_relu:
                yh = jnp.maximum(yh, 0.0)

        # ---------------- vertical stack (ImageRotate folded into the math) ---------
        # View the slab as (img, height, chan).  The rotated stack's ops act along the
        # height axis: LayerNorms reduce over axis=1, the Linear contracts height from
        # the left, the bias/affine vectors broadcast over chan.  No transposes.
        yv = x.reshape(n_img, D, D)
        for l in range(nlayers):
            if do_ln_pre:
                yv = normalize(yv, axis=1)
            vec = vv_ref[l]                              # (D, 3): cols = [bias', gamma_post, beta_post]
            wb = jnp.broadcast_to(vw_ref[l], (n_img, D, D))      # (img, out_h, in_h)
            yv = jax.lax.dot_general(
                wb, yv,
                dimension_numbers=(((2,), (1,)), ((0,), (0,))),
                preferred_element_type=jnp.float32) + vec[:, 0:1]
            if do_ln_post:
                yv = normalize(yv, axis=1) * vec[:, 1:2] + vec[:, 2:3]
            if do_relu:
                yv = jnp.maximum(yv, 0.0)

        # yv is already in unrotated orientation -> fused "un-rotate + add" is just +.
        o_ref[...] = (yh + yv.reshape(yh.shape)).astype(o_ref.dtype)

    return kernel


def _num_tensorcores():
    """2 on v7x, 1 on v5e/v6e; defaults to 1 if introspection is unavailable."""
    try:
        info = pltpu.get_tpu_info()
    except Exception:
        return 1
    for attr in ("num_cores", "core_count", "num_tensorcores", "cores_per_chip"):
        v = getattr(info, attr, None)
        if isinstance(v, int) and v >= 1:
            return int(v)
    return 1


def denoise_linear1d(x, horiz_params, vert_params, *,
                     nhoriz, do_layernorm_pre, do_layernorm_post, do_relu):
    """x: (B, W, H, C) float32 with H == C == image_size.

    *_params: tuple of 6 arrays
       (w (L, D, D) in PyTorch (out, in) layout, b (L, D),
        gamma_pre (L, D), beta_pre (L, D), gamma_post (L, D), beta_post (L, D)).
    """
    B, W, H, C = x.shape
    assert H == C, "height and chan must both equal image_size"
    D = C
    n_img_total = B * W
    M = n_img_total * D

    # ---- parameter prep (tiny; fused by XLA ahead of the kernel) ----
    def prep(params, horiz):
        w, b, gp, bp, gq, bq = params                     # w: (L, out, in)
        if do_layernorm_pre:
            # Fold the LN-pre affine into the Linear: kernel only normalizes.
            b = b + jnp.einsum("loi,li->lo", w, bp)
            if horiz:
                wk = gp[:, :, None] * jnp.swapaxes(w, -1, -2)   # (L, in, out), rows scaled
            else:
                wk = w * gp[:, None, :]                          # (L, out, in), cols scaled
        else:
            wk = jnp.swapaxes(w, -1, -2) if horiz else w
        if horiz:
            vec = jnp.stack([b, gq, bq], axis=1)          # (L, 3, D) -> lane-major vectors
        else:
            vec = jnp.stack([b, gq, bq], axis=2)          # (L, D, 3) -> sublane-major vectors
        return wk, vec

    hw, hv = prep(horiz_params, horiz=True)
    vw, vv = prep(vert_params, horiz=False)

    # ---- grid: 1 block on single-TC chips, 2 "parallel" blocks on 2-TC chips ----
    # (On v7x each block is still tiny; keep the split only when shapes divide cleanly
    #  so no 16x16 image straddles a block and the (8,128) sublane rule holds.)
    num_blocks = min(_num_tensorcores(), 2)
    if num_blocks > 1:
        if n_img_total % num_blocks != 0 or ((n_img_total // num_blocks) * D) % 8 != 0:
            num_blocks = 1
    n_img_blk = n_img_total // num_blocks
    TM = n_img_blk * D

    kernel = _make_kernel(nhoriz, do_layernorm_pre, do_layernorm_post, do_relu,
                          n_img_blk, D)

    x2 = x.reshape(M, D)
    row_spec = pl.BlockSpec((TM, D), lambda i: (i, 0))

    def const_spec(shape):
        nd = len(shape)
        return pl.BlockSpec(shape, lambda i, _nd=nd: (0,) * _nd)

    out = pl.pallas_call(
        kernel,
        out_shape=jax.ShapeDtypeStruct((M, D), x.dtype),
        grid=(num_blocks,),
        in_specs=[row_spec, const_spec(hw.shape), const_spec(hv.shape),
                  const_spec(vw.shape), const_spec(vv.shape)],
        out_specs=row_spec,
        compiler_params=pltpu.CompilerParams(
            dimension_semantics=("parallel",)),
    )(x2, hw, hv, vw, vv)

    return out.reshape(B, W, D, D)


def _reference(x, horiz_params, vert_params, *,
               nhoriz, do_layernorm_pre, do_layernorm_post, do_relu):
    def layernorm(x, gamma, beta, eps=_LN_EPS):
        mean = jnp.mean(x, axis=-1, keepdims=True)
        var = jnp.mean((x - mean) ** 2, axis=-1, keepdims=True)
        return (x - mean) * jax.lax.rsqrt(var + eps) * gamma + beta

    def stack(x, params):
        w, b, gp, bp, gq, bq = params
        for l in range(nhoriz):
            if do_layernorm_pre:
                x = layernorm(x, gp[l], bp[l])
            x = jnp.einsum("...i,oi->...o", x, w[l]) + b[l]
            if do_layernorm_post:
                x = layernorm(x, gq[l], bq[l])
            if do_relu:
                x = jnp.maximum(x, 0.0)
        return x

    out_h = stack(x, horiz_params)
    out_v = jnp.swapaxes(stack(jnp.swapaxes(x, -1, -2), vert_params), -1, -2)
    return out_h + out_v


def _init_stack_params(key, nlayers, D):
    kw, kb, kg1, kb1, kg2, kb2 = jax.random.split(key, 6)
    bound = 1.0 / np.sqrt(D)
    w = jax.random.uniform(kw, (nlayers, D, D), jnp.float32, -bound, bound)
    b = jax.random.uniform(kb, (nlayers, D), jnp.float32, -bound, bound)
    # Non-trivial affine params so the LN-pre fold / LN-post affine paths are exercised.
    gamma_pre = 1.0 + 0.1 * jax.random.normal(kg1, (nlayers, D), jnp.float32)
    beta_pre = 0.1 * jax.random.normal(kb1, (nlayers, D), jnp.float32)
    gamma_post = 1.0 + 0.1 * jax.random.normal(kg2, (nlayers, D), jnp.float32)
    beta_post = 0.1 * jax.random.normal(kb2, (nlayers, D), jnp.float32)
    return (w, b, gamma_pre, beta_pre, gamma_post, beta_post)


if __name__ == "__main__":
    image_size = 16      # height == chan == image_size
    batch = 2
    width = 4
    nhoriz = 2
    nvert = 3            # note: the PyTorch module ignores nvert (vert stack uses nhoriz)
    do_layernorm_pre = True
    do_layernorm_post = True
    do_layernorm_post_top = False   # LayerNorm(3) only valid when image_size == 3
    do_relu = True

    key = jax.random.PRNGKey(0)
    kx, kh, kv = jax.random.split(key, 3)

    x = jax.random.normal(kx, (batch, width, image_size, image_size), jnp.float32)
    horiz_params = _init_stack_params(kh, nhoriz, image_size)
    vert_params = _init_stack_params(kv, nhoriz, image_size)

    run = jax.jit(functools.partial(
        denoise_linear1d,
        nhoriz=nhoriz,
        do_layernorm_pre=do_layernorm_pre,
        do_layernorm_post=do_layernorm_post,
        do_relu=do_relu,
    ))

    out = jax.block_until_ready(run(x, horiz_params, vert_params))

    ref = _reference(x, horiz_params, vert_params,
                     nhoriz=nhoriz,
                     do_layernorm_pre=do_layernorm_pre,
                     do_layernorm_post=do_layernorm_post,
                     do_relu=do_relu)
    np.testing.assert_allclose(np.asarray(out), np.asarray(ref), rtol=1e-5, atol=1e-5)

    print("KERNEL_OK")
</pallas_src>

<mosaic_0001>
module attributes {stable_mosaic.version = 11 : i64} {
  func.func @kernel(%arg0: i32, %arg1: memref<128x16xf32, #tpu.memory_space<vmem>>, %arg2: memref<2x16x16xf32, #tpu.memory_space<vmem>>, %arg3: memref<2x3x16xf32, #tpu.memory_space<vmem>>, %arg4: memref<2x16x16xf32, #tpu.memory_space<vmem>>, %arg5: memref<2x16x3xf32, #tpu.memory_space<vmem>>, %arg6: memref<128x16xf32, #tpu.memory_space<vmem>>) attributes {dimension_semantics = [#tpu.dimension_semantics<parallel>], iteration_bounds = array<i64: 1>, scalar_prefetch = 0 : i64, scratch_operands = 0 : i64, tpu.core_type = #tpu.core_type<tc>, window_params = [{transform_indices = @transform_0, window_bounds = array<i64: 128, 16>}, {pipeline_mode = #tpu.pipeline_mode<synchronous>, transform_indices = @transform_1, window_bounds = array<i64: 2, 16, 16>}, {pipeline_mode = #tpu.pipeline_mode<synchronous>, transform_indices = @transform_2, window_bounds = array<i64: 2, 3, 16>}, {pipeline_mode = #tpu.pipeline_mode<synchronous>, transform_indices = @transform_3, window_bounds = array<i64: 2, 16, 16>}, {pipeline_mode = #tpu.pipeline_mode<synchronous>, transform_indices = @transform_4, window_bounds = array<i64: 2, 16, 3>}, {transform_indices = @transform_5, window_bounds = array<i64: 128, 16>}]} {
    %c0 = arith.constant 0 : index
    %c0_0 = arith.constant 0 : index
    %0 = vector.load %arg1[%c0, %c0_0] : memref<128x16xf32, #tpu.memory_space<vmem>>, vector<128x16xf32>
    %cst = arith.constant dense<0.000000e+00> : vector<128xf32>
    %1 = vector.multi_reduction <add>, %0, %cst [1] : vector<128x16xf32> to vector<128xf32>
    %2 = vector.shape_cast %1 : vector<128xf32> to vector<128x1xf32>
    %3 = arith.mulf %0, %0 : vector<128x16xf32>
    %cst_1 = arith.constant dense<0.000000e+00> : vector<128xf32>
    %4 = vector.multi_reduction <add>, %3, %cst_1 [1] : vector<128x16xf32> to vector<128xf32>
    %5 = vector.shape_cast %4 : vector<128xf32> to vector<128x1xf32>
    %cst_2 = arith.constant 6.250000e-02 : f32
    %6 = vector.broadcast %cst_2 : f32 to vector<128x1xf32>
    %7 = arith.mulf %2, %6 : vector<128x1xf32>
    %cst_3 = arith.constant 6.250000e-02 : f32
    %8 = vector.broadcast %cst_3 : f32 to vector<128x1xf32>
    %9 = arith.mulf %5, %8 : vector<128x1xf32>
    %10 = arith.mulf %7, %7 : vector<128x1xf32>
    %11 = arith.subf %9, %10 : vector<128x1xf32>
    %12 = vector.broadcast %7 : vector<128x1xf32> to vector<128x16xf32>
    %13 = arith.subf %0, %12 : vector<128x16xf32>
    %cst_4 = arith.constant 9.99999974E-6 : f32
    %14 = vector.broadcast %cst_4 : f32 to vector<128x1xf32>
    %15 = arith.addf %11, %14 : vector<128x1xf32>
    %16 = math.rsqrt %15 : vector<128x1xf32>
    %17 = vector.broadcast %16 : vector<128x1xf32> to vector<128x16xf32>
    %18 = arith.mulf %13, %17 : vector<128x16xf32>
    %c0_5 = arith.constant 0 : index
    %c0_6 = arith.constant 0 : index
    %c0_7 = arith.constant 0 : index
    %19 = vector.load %arg3[%c0_5, %c0_6, %c0_7] : memref<2x3x16xf32, #tpu.memory_space<vmem>>, vector<1x3x16xf32>
    %20 = vector.shape_cast %19 : vector<1x3x16xf32> to vector<3x16xf32>
    %c0_8 = arith.constant 0 : index
    %c0_9 = arith.constant 0 : index
    %c0_10 = arith.constant 0 : index
    %21 = vector.load %arg2[%c0_8, %c0_9, %c0_10] : memref<2x16x16xf32, #tpu.memory_space<vmem>>, vector<1x16x16xf32>
    %22 = vector.shape_cast %21 : vector<1x16x16xf32> to vector<16x16xf32>
    %cst_11 = arith.constant dense<0.000000e+00> : vector<128x16xf32>
    %23 = tpu.matmul %18, %22, %cst_11 {dimension_numbers = #tpu.dot_dimension_numbers<[1], [0], [0], [1], [0, 0, 1, 1], [], []>} : vector<128x16xf32>, vector<16x16xf32>, vector<128x16xf32> -> vector<128x16xf32>
    %24 = vector.extract_strided_slice %20 {offsets = [0, 0], sizes = [1, 16], strides = [1, 1]} : vector<3x16xf32> to vector<1x16xf32>
    %25 = vector.broadcast %24 : vector<1x16xf32> to vector<128x16xf32>
    %26 = arith.addf %23, %25 : vector<128x16xf32>
    %cst_12 = arith.constant dense<0.000000e+00> : vector<128xf32>
    %27 = vector.multi_reduction <add>, %26, %cst_12 [1] : vector<128x16xf32> to vector<128xf32>
    %28 = vector.shape_cast %27 : vector<128xf32> to vector<128x1xf32>
    %29 = arith.mulf %26, %26 : vector<128x16xf32>
    %cst_13 = arith.constant dense<0.000000e+00> : vector<128xf32>
    %30 = vector.multi_reduction <add>, %29, %cst_13 [1] : vector<128x16xf32> to vector<128xf32>
    %31 = vector.shape_cast %30 : vector<128xf32> to vector<128x1xf32>
    %cst_14 = arith.constant 6.250000e-02 : f32
    %32 = vector.broadcast %cst_14 : f32 to vector<128x1xf32>
    %33 = arith.mulf %28, %32 : vector<128x1xf32>
    %cst_15 = arith.constant 6.250000e-02 : f32
    %34 = vector.broadcast %cst_15 : f32 to vector<128x1xf32>
    %35 = arith.mulf %31, %34 : vector<128x1xf32>
    %36 = arith.mulf %33, %33 : vector<128x1xf32>
    %37 = arith.subf %35, %36 : vector<128x1xf32>
    %38 = vector.broadcast %33 : vector<128x1xf32> to vector<128x16xf32>
    %39 = arith.subf %26, %38 : vector<128x16xf32>
    %cst_16 = arith.constant 9.99999974E-6 : f32
    %40 = vector.broadcast %cst_16 : f32 to vector<128x1xf32>
    %41 = arith.addf %37, %40 : vector<128x1xf32>
    %42 = math.rsqrt %41 : vector<128x1xf32>
    %43 = vector.broadcast %42 : vector<128x1xf32> to vector<128x16xf32>
    %44 = arith.mulf %39, %43 : vector<128x16xf32>
    %45 = vector.extract_strided_slice %20 {offsets = [1, 0], sizes = [1, 16], strides = [1, 1]} : vector<3x16xf32> to vector<1x16xf32>
    %46 = vector.broadcast %45 : vector<1x16xf32> to vector<128x16xf32>
    %47 = arith.mulf %44, %46 : vector<128x16xf32>
    %48 = vector.extract_strided_slice %20 {offsets = [2, 0], sizes = [1, 16], strides = [1, 1]} : vector<3x16xf32> to vector<1x16xf32>
    %49 = vector.broadcast %48 : vector<1x16xf32> to vector<128x16xf32>
    %50 = arith.addf %47, %49 : vector<128x16xf32>
    %cst_17 = arith.constant 0.000000e+00 : f32
    %51 = vector.broadcast %cst_17 : f32 to vector<128x16xf32>
    %52 = arith.maximumf %50, %51 : vector<128x16xf32>
    %cst_18 = arith.constant dense<0.000000e+00> : vector<128xf32>
    %53 = vector.multi_reduction <add>, %52, %cst_18 [1] : vector<128x16xf32> to vector<128xf32>
    %54 = vector.shape_cast %53 : vector<128xf32> to vector<128x1xf32>
    %55 = arith.mulf %52, %52 : vector<128x16xf32>
    %cst_19 = arith.constant dense<0.000000e+00> : vector<128xf32>
    %56 = vector.multi_reduction <add>, %55, %cst_19 [1] : vector<128x16xf32> to vector<128xf32>
    %57 = vector.shape_cast %56 : vector<128xf32> to vector<128x1xf32>
    %cst_20 = arith.constant 6.250000e-02 : f32
    %58 = vector.broadcast %cst_20 : f32 to vector<128x1xf32>
    %59 = arith.mulf %54, %58 : vector<128x1xf32>
    %cst_21 = arith.constant 6.250000e-02 : f32
    %60 = vector.broadcast %cst_21 : f32 to vector<128x1xf32>
    %61 = arith.mulf %57, %60 : vector<128x1xf32>
    %62 = arith.mulf %59, %59 : vector<128x1xf32>
    %63 = arith.subf %61, %62 : vector<128x1xf32>
    %64 = vector.broadcast %59 : vector<128x1xf32> to vector<128x16xf32>
    %65 = arith.subf %52, %64 : vector<128x16xf32>
    %cst_22 = arith.constant 9.99999974E-6 : f32
    %66 = vector.broadcast %cst_22 : f32 to vector<128x1xf32>
    %67 = arith.addf %63, %66 : vector<128x1xf32>
    %68 = math.rsqrt %67 : vector<128x1xf32>
    %69 = vector.broadcast %68 : vector<128x1xf32> to vector<128x16xf32>
    %70 = arith.mulf %65, %69 : vector<128x16xf32>
    %c1 = arith.constant 1 : index
    %c0_23 = arith.constant 0 : index
    %c0_24 = arith.constant 0 : index
    %71 = vector.load %arg3[%c1, %c0_23, %c0_24] : memref<2x3x16xf32, #tpu.memory_space<vmem>>, vector<1x3x16xf32>
    %72 = vector.shape_cast %71 : vector<1x3x16xf32> to vector<3x16xf32>
    %c1_25 = arith.constant 1 : index
    %c0_26 = arith.constant 0 : index
    %c0_27 = arith.constant 0 : index
    %73 = vector.load %arg2[%c1_25, %c0_26, %c0_27] : memref<2x16x16xf32, #tpu.memory_space<vmem>>, vector<1x16x16xf32>
    %74 = vector.shape_cast %73 : vector<1x16x16xf32> to vector<16x16xf32>
    %cst_28 = arith.constant dense<0.000000e+00> : vector<128x16xf32>
    %75 = tpu.matmul %70, %74, %cst_28 {dimension_numbers = #tpu.dot_dimension_numbers<[1], [0], [0], [1], [0, 0, 1, 1], [], []>} : vector<128x16xf32>, vector<16x16xf32>, vector<128x16xf32> -> vector<128x16xf32>
    %76 = vector.extract_strided_slice %72 {offsets = [0, 0], sizes = [1, 16], strides = [1, 1]} : vector<3x16xf32> to vector<1x16xf32>
    %77 = vector.broadcast %76 : vector<1x16xf32> to vector<128x16xf32>
    %78 = arith.addf %75, %77 : vector<128x16xf32>
    %cst_29 = arith.constant dense<0.000000e+00> : vector<128xf32>
    %79 = vector.multi_reduction <add>, %78, %cst_29 [1] : vector<128x16xf32> to vector<128xf32>
    %80 = vector.shape_cast %79 : vector<128xf32> to vector<128x1xf32>
    %81 = arith.mulf %78, %78 : vector<128x16xf32>
    %cst_30 = arith.constant dense<0.000000e+00> : vector<128xf32>
    %82 = vector.multi_reduction <add>, %81, %cst_30 [1] : vector<128x16xf32> to vector<128xf32>
    %83 = vector.shape_cast %82 : vector<128xf32> to vector<128x1xf32>
    %cst_31 = arith.constant 6.250000e-02 : f32
    %84 = vector.broadcast %cst_31 : f32 to vector<128x1xf32>
    %85 = arith.mulf %80, %84 : vector<128x1xf32>
    %cst_32 = arith.constant 6.250000e-02 : f32
    %86 = vector.broadcast %cst_32 : f32 to vector<128x1xf32>
    %87 = arith.mulf %83, %86 : vector<128x1xf32>
    %88 = arith.mulf %85, %85 : vector<128x1xf32>
    %89 = arith.subf %87, %88 : vector<128x1xf32>
    %90 = vector.broadcast %85 : vector<128x1xf32> to vector<128x16xf32>
    %91 = arith.subf %78, %90 : vector<128x16xf32>
    %cst_33 = arith.constant 9.99999974E-6 : f32
    %92 = vector.broadcast %cst_33 : f32 to vector<128x1xf32>
    %93 = arith.addf %89, %92 : vector<128x1xf32>
    %94 = math.rsqrt %93 : vector<128x1xf32>
    %95 = vector.broadcast %94 : vector<128x1xf32> to vector<128x16xf32>
    %96 = arith.mulf %91, %95 : vector<128x16xf32>
    %97 = vector.extract_strided_slice %72 {offsets = [1, 0], sizes = [1, 16], strides = [1, 1]} : vector<3x16xf32> to vector<1x16xf32>
    %98 = vector.broadcast %97 : vector<1x16xf32> to vector<128x16xf32>
    %99 = arith.mulf %96, %98 : vector<128x16xf32>
    %100 = vector.extract_strided_slice %72 {offsets = [2, 0], sizes = [1, 16], strides = [1, 1]} : vector<3x16xf32> to vector<1x16xf32>
    %101 = vector.broadcast %100 : vector<1x16xf32> to vector<128x16xf32>
    %102 = arith.addf %99, %101 : vector<128x16xf32>
    %cst_34 = arith.constant 0.000000e+00 : f32
    %103 = vector.broadcast %cst_34 : f32 to vector<128x16xf32>
    %104 = arith.maximumf %102, %103 : vector<128x16xf32>
    %105 = vector.shape_cast %0 : vector<128x16xf32> to vector<8x16x16xf32>
    %cst_35 = arith.constant dense<0.000000e+00> : vector<8x16xf32>
    %106 = vector.multi_reduction <add>, %105, %cst_35 [1] : vector<8x16x16xf32> to vector<8x16xf32>
    %107 = vector.shape_cast %106 : vector<8x16xf32> to vector<8x1x16xf32>
    %108 = arith.mulf %105, %105 : vector<8x16x16xf32>
    %cst_36 = arith.constant dense<0.000000e+00> : vector<8x16xf32>
    %109 = vector.multi_reduction <add>, %108, %cst_36 [1] : vector<8x16x16xf32> to vector<8x16xf32>
    %110 = vector.shape_cast %109 : vector<8x16xf32> to vector<8x1x16xf32>
    %cst_37 = arith.constant 6.250000e-02 : f32
    %111 = vector.broadcast %cst_37 : f32 to vector<8x1x16xf32>
    %112 = arith.mulf %107, %111 : vector<8x1x16xf32>
    %cst_38 = arith.constant 6.250000e-02 : f32
    %113 = vector.broadcast %cst_38 : f32 to vector<8x1x16xf32>
    %114 = arith.mulf %110, %113 : vector<8x1x16xf32>
    %115 = arith.mulf %112, %112 : vector<8x1x16xf32>
    %116 = arith.subf %114, %115 : vector<8x1x16xf32>
    %117 = vector.broadcast %112 : vector<8x1x16xf32> to vector<8x16x16xf32>
    %118 = arith.subf %105, %117 : vector<8x16x16xf32>
    %cst_39 = arith.constant 9.99999974E-6 : f32
    %119 = vector.broadcast %cst_39 : f32 to vector<8x1x16xf32>
    %120 = arith.addf %116, %119 : vector<8x1x16xf32>
    %121 = math.rsqrt %120 : vector<8x1x16xf32>
    %122 = vector.broadcast %121 : vector<8x1x16xf32> to vector<8x16x16xf32>
    %123 = arith.mulf %118, %122 : vector<8x16x16xf32>
    %c0_40 = arith.constant 0 : index
    %c0_41 = arith.constant 0 : index
    %c0_42 = arith.constant 0 : index
    %124 = vector.load %arg5[%c0_40, %c0_41, %c0_42] : memref<2x16x3xf32, #tpu.memory_space<vmem>>, vector<1x16x3xf32>
    %125 = vector.shape_cast %124 : vector<1x16x3xf32> to vector<16x3xf32>
    %c0_43 = arith.constant 0 : index
    %c0_44 = arith.constant 0 : index
    %c0_45 = arith.constant 0 : index
    %126 = vector.load %arg4[%c0_43, %c0_44, %c0_45] : memref<2x16x16xf32, #tpu.memory_space<vmem>>, vector<1x16x16xf32>
    %127 = vector.shape_cast %126 : vector<1x16x16xf32> to vector<16x16xf32>
    %128 = vector.shape_cast %127 : vector<16x16xf32> to vector<1x16x16xf32>
    %129 = vector.broadcast %128 : vector<1x16x16xf32> to vector<8x16x16xf32>
    %cst_46 = arith.constant dense<0.000000e+00> : vector<8x16x16xf32>
    %130 = tpu.matmul %129, %123, %cst_46 {dimension_numbers = #tpu.dot_dimension_numbers<[2], [1], [1], [2], [0, 0, 0, 1, 1, 2], [0], [0]>} : vector<8x16x16xf32>, vector<8x16x16xf32>, vector<8x16x16xf32> -> vector<8x16x16xf32>
    %131 = vector.extract_strided_slice %125 {offsets = [0, 0], sizes = [16, 1], strides = [1, 1]} : vector<16x3xf32> to vector<16x1xf32>
    %132 = vector.shape_cast %131 : vector<16x1xf32> to vector<1x16x1xf32>
    %133 = vector.broadcast %132 : vector<1x16x1xf32> to vector<8x16x16xf32>
    %134 = arith.addf %130, %133 : vector<8x16x16xf32>
    %cst_47 = arith.constant dense<0.000000e+00> : vector<8x16xf32>
    %135 = vector.multi_reduction <add>, %134, %cst_47 [1] : vector<8x16x16xf32> to vector<8x16xf32>
    %136 = vector.shape_cast %135 : vector<8x16xf32> to vector<8x1x16xf32>
    %137 = arith.mulf %134, %134 : vector<8x16x16xf32>
    %cst_48 = arith.constant dense<0.000000e+00> : vector<8x16xf32>
    %138 = vector.multi_reduction <add>, %137, %cst_48 [1] : vector<8x16x16xf32> to vector<8x16xf32>
    %139 = vector.shape_cast %138 : vector<8x16xf32> to vector<8x1x16xf32>
    %cst_49 = arith.constant 6.250000e-02 : f32
    %140 = vector.broadcast %cst_49 : f32 to vector<8x1x16xf32>
    %141 = arith.mulf %136, %140 : vector<8x1x16xf32>
    %cst_50 = arith.constant 6.250000e-02 : f32
    %142 = vector.broadcast %cst_50 : f32 to vector<8x1x16xf32>
    %143 = arith.mulf %139, %142 : vector<8x1x16xf32>
    %144 = arith.mulf %141, %141 : vector<8x1x16xf32>
    %145 = arith.subf %143, %144 : vector<8x1x16xf32>
    %146 = vector.broadcast %141 : vector<8x1x16xf32> to vector<8x16x16xf32>
    %147 = arith.subf %134, %146 : vector<8x16x16xf32>
    %cst_51 = arith.constant 9.99999974E-6 : f32
    %148 = vector.broadcast %cst_51 : f32 to vector<8x1x16xf32>
    %149 = arith.addf %145, %148 : vector<8x1x16xf32>
    %150 = math.rsqrt %149 : vector<8x1x16xf32>
    %151 = vector.broadcast %150 : vector<8x1x16xf32> to vector<8x16x16xf32>
    %152 = arith.mulf %147, %151 : vector<8x16x16xf32>
    %153 = vector.extract_strided_slice %125 {offsets = [0, 1], sizes = [16, 1], strides = [1, 1]} : vector<16x3xf32> to vector<16x1xf32>
    %154 = vector.shape_cast %153 : vector<16x1xf32> to vector<1x16x1xf32>
    %155 = vector.broadcast %154 : vector<1x16x1xf32> to vector<8x16x16xf32>
    %156 = arith.mulf %152, %155 : vector<8x16x16xf32>
    %157 = vector.extract_strided_slice %125 {offsets = [0, 2], sizes = [16, 1], strides = [1, 1]} : vector<16x3xf32> to vector<16x1xf32>
    %158 = vector.shape_cast %157 : vector<16x1xf32> to vector<1x16x1xf32>
    %159 = vector.broadcast %158 : vector<1x16x1xf32> to vector<8x16x16xf32>
    %160 = arith.addf %156, %159 : vector<8x16x16xf32>
    %cst_52 = arith.constant 0.000000e+00 : f32
    %161 = vector.broadcast %cst_52 : f32 to vector<8x16x16xf32>
    %162 = arith.maximumf %160, %161 : vector<8x16x16xf32>
    %cst_53 = arith.constant dense<0.000000e+00> : vector<8x16xf32>
    %163 = vector.multi_reduction <add>, %162, %cst_53 [1] : vector<8x16x16xf32> to vector<8x16xf32>
    %164 = vector.shape_cast %163 : vector<8x16xf32> to vector<8x1x16xf32>
    %165 = arith.mulf %162, %162 : vector<8x16x16xf32>
    %cst_54 = arith.constant dense<0.000000e+00> : vector<8x16xf32>
    %166 = vector.multi_reduction <add>, %165, %cst_54 [1] : vector<8x16x16xf32> to vector<8x16xf32>
    %167 = vector.shape_cast %166 : vector<8x16xf32> to vector<8x1x16xf32>
    %cst_55 = arith.constant 6.250000e-02 : f32
    %168 = vector.broadcast %cst_55 : f32 to vector<8x1x16xf32>
    %169 = arith.mulf %164, %168 : vector<8x1x16xf32>
    %cst_56 = arith.constant 6.250000e-02 : f32
    %170 = vector.broadcast %cst_56 : f32 to vector<8x1x16xf32>
    %171 = arith.mulf %167, %170 : vector<8x1x16xf32>
    %172 = arith.mulf %169, %169 : vector<8x1x16xf32>
    %173 = arith.subf %171, %172 : vector<8x1x16xf32>
    %174 = vector.broadcast %169 : vector<8x1x16xf32> to vector<8x16x16xf32>
    %175 = arith.subf %162, %174 : vector<8x16x16xf32>
    %cst_57 = arith.constant 9.99999974E-6 : f32
    %176 = vector.broadcast %cst_57 : f32 to vector<8x1x16xf32>
    %177 = arith.addf %173, %176 : vector<8x1x16xf32>
    %178 = math.rsqrt %177 : vector<8x1x16xf32>
    %179 = vector.broadcast %178 : vector<8x1x16xf32> to vector<8x16x16xf32>
    %180 = arith.mulf %175, %179 : vector<8x16x16xf32>
    %c1_58 = arith.constant 1 : index
    %c0_59 = arith.constant 0 : index
    %c0_60 = arith.constant 0 : index
    %181 = vector.load %arg5[%c1_58, %c0_59, %c0_60] : memref<2x16x3xf32, #tpu.memory_space<vmem>>, vector<1x16x3xf32>
    %182 = vector.shape_cast %181 : vector<1x16x3xf32> to vector<16x3xf32>
    %c1_61 = arith.constant 1 : index
    %c0_62 = arith.constant 0 : index
    %c0_63 = arith.constant 0 : index
    %183 = vector.load %arg4[%c1_61, %c0_62, %c0_63] : memref<2x16x16xf32, #tpu.memory_space<vmem>>, vector<1x16x16xf32>
    %184 = vector.shape_cast %183 : vector<1x16x16xf32> to vector<16x16xf32>
    %185 = vector.shape_cast %184 : vector<16x16xf32> to vector<1x16x16xf32>
    %186 = vector.broadcast %185 : vector<1x16x16xf32> to vector<8x16x16xf32>
    %cst_64 = arith.constant dense<0.000000e+00> : vector<8x16x16xf32>
    %187 = tpu.matmul %186, %180, %cst_64 {dimension_numbers = #tpu.dot_dimension_numbers<[2], [1], [1], [2], [0, 0, 0, 1, 1, 2], [0], [0]>} : vector<8x16x16xf32>, vector<8x16x16xf32>, vector<8x16x16xf32> -> vector<8x16x16xf32>
    %188 = vector.extract_strided_slice %182 {offsets = [0, 0], sizes = [16, 1], strides = [1, 1]} : vector<16x3xf32> to vector<16x1xf32>
    %189 = vector.shape_cast %188 : vector<16x1xf32> to vector<1x16x1xf32>
    %190 = vector.broadcast %189 : vector<1x16x1xf32> to vector<8x16x16xf32>
    %191 = arith.addf %187, %190 : vector<8x16x16xf32>
    %cst_65 = arith.constant dense<0.000000e+00> : vector<8x16xf32>
    %192 = vector.multi_reduction <add>, %191, %cst_65 [1] : vector<8x16x16xf32> to vector<8x16xf32>
    %193 = vector.shape_cast %192 : vector<8x16xf32> to vector<8x1x16xf32>
    %194 = arith.mulf %191, %191 : vector<8x16x16xf32>
    %cst_66 = arith.constant dense<0.000000e+00> : vector<8x16xf32>
    %195 = vector.multi_reduction <add>, %194, %cst_66 [1] : vector<8x16x16xf32> to vector<8x16xf32>
    %196 = vector.shape_cast %195 : vector<8x16xf32> to vector<8x1x16xf32>
    %cst_67 = arith.constant 6.250000e-02 : f32
    %197 = vector.broadcast %cst_67 : f32 to vector<8x1x16xf32>
    %198 = arith.mulf %193, %197 : vector<8x1x16xf32>
    %cst_68 = arith.constant 6.250000e-02 : f32
    %199 = vector.broadcast %cst_68 : f32 to vector<8x1x16xf32>
    %200 = arith.mulf %196, %199 : vector<8x1x16xf32>
    %201 = arith.mulf %198, %198 : vector<8x1x16xf32>
    %202 = arith.subf %200, %201 : vector<8x1x16xf32>
    %203 = vector.broadcast %198 : vector<8x1x16xf32> to vector<8x16x16xf32>
    %204 = arith.subf %191, %203 : vector<8x16x16xf32>
    %cst_69 = arith.constant 9.99999974E-6 : f32
    %205 = vector.broadcast %cst_69 : f32 to vector<8x1x16xf32>
    %206 = arith.addf %202, %205 : vector<8x1x16xf32>
    %207 = math.rsqrt %206 : vector<8x1x16xf32>
    %208 = vector.broadcast %207 : vector<8x1x16xf32> to vector<8x16x16xf32>
    %209 = arith.mulf %204, %208 : vector<8x16x16xf32>
    %210 = vector.extract_strided_slice %182 {offsets = [0, 1], sizes = [16, 1], strides = [1, 1]} : vector<16x3xf32> to vector<16x1xf32>
    %211 = vector.shape_cast %210 : vector<16x1xf32> to vector<1x16x1xf32>
    %212 = vector.broadcast %211 : vector<1x16x1xf32> to vector<8x16x16xf32>
    %213 = arith.mulf %209, %212 : vector<8x16x16xf32>
    %214 = vector.extract_strided_slice %182 {offsets = [0, 2], sizes = [16, 1], strides = [1, 1]} : vector<16x3xf32> to vector<16x1xf32>
    %215 = vector.shape_cast %214 : vector<16x1xf32> to vector<1x16x1xf32>
    %216 = vector.broadcast %215 : vector<1x16x1xf32> to vector<8x16x16xf32>
    %217 = arith.addf %213, %216 : vector<8x16x16xf32>
    %cst_70 = arith.constant 0.000000e+00 : f32
    %218 = vector.broadcast %cst_70 : f32 to vector<8x16x16xf32>
    %219 = arith.maximumf %217, %218 : vector<8x16x16xf32>
    %220 = vector.shape_cast %219 : vector<8x16x16xf32> to vector<128x16xf32>
    %221 = arith.addf %104, %220 : vector<128x16xf32>
    %c0_71 = arith.constant 0 : index
    %c0_72 = arith.constant 0 : index
    %222 = vector.load %arg6[%c0_71, %c0_72] : memref<128x16xf32, #tpu.memory_space<vmem>>, vector<128x16xf32>
    tpu.vector_store %arg6[%c0_71, %c0_72], %221 {strides = array<i32>} : memref<128x16xf32, #tpu.memory_space<vmem>>, vector<128x16xf32>,
    return
  }
  func.func @transform_0(%arg0: i32) -> (i32, i32) {
    %c0_i32 = arith.constant 0 : i32
    %c0_i32_0 = arith.constant 0 : i32
    return %arg0, %c0_i32 : i32, i32
  }
  func.func @transform_1(%arg0: i32) -> (i32, i32, i32) {
    %c0_i32 = arith.constant 0 : i32
    %c0_i32_0 = arith.constant 0 : i32
    %c0_i32_1 = arith.constant 0 : i32
    %c0_i32_2 = arith.constant 0 : i32
    return %c0_i32, %c0_i32_0, %c0_i32_1 : i32, i32, i32
  }
  func.func @transform_2(%arg0: i32) -> (i32, i32, i32) {
    %c0_i32 = arith.constant 0 : i32
    %c0_i32_0 = arith.constant 0 : i32
    %c0_i32_1 = arith.constant 0 : i32
    %c0_i32_2 = arith.constant 0 : i32
    return %c0_i32, %c0_i32_0, %c0_i32_1 : i32, i32, i32
  }
  func.func @transform_3(%arg0: i32) -> (i32, i32, i32) {
    %c0_i32 = arith.constant 0 : i32
    %c0_i32_0 = arith.constant 0 : i32
    %c0_i32_1 = arith.constant 0 : i32
    %c0_i32_2 = arith.constant 0 : i32
    return %c0_i32, %c0_i32_0, %c0_i32_1 : i32, i32, i32
  }
  func.func @transform_4(%arg0: i32) -> (i32, i32, i32) {
    %c0_i32 = arith.constant 0 : i32
    %c0_i32_0 = arith.constant 0 : i32
    %c0_i32_1 = arith.constant 0 : i32
    %c0_i32_2 = arith.constant 0 : i32
    return %c0_i32, %c0_i32_0, %c0_i32_1 : i32, i32, i32
  }
  func.func @transform_5(%arg0: i32) -> (i32, i32) {
    %c0_i32 = arith.constant 0 : i32
    %c0_i32_0 = arith.constant 0 : i32
    return %arg0, %c0_i32 : i32, i32
  }
}

</mosaic_0001>

<llo_original>
// kernel: denoise_linear1d.1
$region0: #{denoise_linear1d.1}
  #allocation0 [shape = 'u32[]', space=smem, size = 0x4, offset = 0x4, fixed_abs, tag = 'smem constant byte address 0x4 - core index']
  #allocation1 [shape = 'u32[144,128]{1,0:T(1,128)}', space=vmem, size = 0x12000, scoped, tag = 'internal scratch']
  %s0 = inlined_call_operand.vmem [shape: f32[128,16], index: 0, kind: input, shape index: {}]
  %s1 = inlined_call_operand.vmem [shape: f32[2,16,16], index: 1, kind: input, shape index: {}]
  %s2 = inlined_call_operand.vmem [shape: f32[2,3,16], index: 2, kind: input, shape index: {}]
  %s3 = inlined_call_operand.vmem [shape: f32[2,16,16], index: 3, kind: input, shape index: {}]
  %s4 = inlined_call_operand.vmem [shape: f32[2,16,3], index: 4, kind: input, shape index: {}]
  %s5 = inlined_call_operand.hbm [shape: f32[128,16], index: 5, kind: output, shape index: {}]
  %s6 = sld [smem:[#allocation0]]
  $region30: #{denoise_linear1d.1} parent=0
    _
  %s8 = ssub.s32 1, %s6
  %s9 = scalar_select 0, %s8, %s6
  $region1: #{denoise_linear1d.1} parent=0
    #allocation2 [shape = 'u8[65536]{0}', space=vmem, size = 0x10000, scoped, tag = 'output window, operand 0, single buffered']
    #allocation3 [shape = 's32[1]{0}', space=sflag, size = 0x4, scoped, tag = 'scoped memory for denoise_linear1d.1']
    %10 = vsyncpa [#allocation3], 0
    // Predicated region
    $region2: #{denoise_linear1d.1} parent=1 // pred_check
      _
    $region3: #{denoise_linear1d.1} parent=1 // pred_check_branch
      %12 = sbr.rel (0) target = $region5
    $region4: #{denoise_linear1d.1} parent=1 // pred_region
      _
    $region5: #{denoise_linear1d.1} parent=1 // pred_fallthru
      _
    // Predicated region
    $region6: #{denoise_linear1d.1} parent=1 // pred_check
      _
    $region7: #{denoise_linear1d.1} parent=1 // pred_check_branch
      %14 = sbr.rel (0) target = $region9
    $region8: #{denoise_linear1d.1} parent=1 // pred_region
      _
    $region9: #{denoise_linear1d.1} parent=1 // pred_fallthru
      _
    // Predicated region
    $region10: #{denoise_linear1d.1} parent=1 // pred_check
      _
    $region11: #{denoise_linear1d.1} parent=1 // pred_check_branch
      %16 = sbr.rel (0) target = $region13
    $region12: #{denoise_linear1d.1} parent=1 // pred_region
      _
    $region13: #{denoise_linear1d.1} parent=1 // pred_fallthru
      _
    // Predicated region
    $region14: #{denoise_linear1d.1} parent=1 // pred_check
      _
    $region15: #{denoise_linear1d.1} parent=1 // pred_check_branch
      %18 = sbr.rel (0) target = $region17
    $region16: #{denoise_linear1d.1} parent=1 // pred_region
      _
    $region17: #{denoise_linear1d.1} parent=1 // pred_fallthru
      _
    // Predicated region
    $region18: #{denoise_linear1d.1} parent=1 // pred_check
      _
    $region19: #{denoise_linear1d.1} parent=1 // pred_check_branch
      %20 = sbr.rel (0) target = $region21
    $region20: #{denoise_linear1d.1} parent=1 // pred_region
      _
    $region21: #{denoise_linear1d.1} parent=1 // pred_fallthru
      _
    %v21 = vld [vmem:[%s0] sm:$0xff]
    %v22 = vld [vmem:[%s0 + $0x8] sm:$0xff]
    %v23 = vld [vmem:[%s0 + $0x10] sm:$0xff]
    %v24 = vld [vmem:[%s0 + $0x18] sm:$0xff]
    %v25 = vld [vmem:[%s0 + $0x20] sm:$0xff]
    %v26 = vld [vmem:[%s0 + $0x28] sm:$0xff]
    %v27 = vld [vmem:[%s0 + $0x30] sm:$0xff]
    %v28 = vld [vmem:[%s0 + $0x38] sm:$0xff]
    %v29 = vld [vmem:[%s0 + $0x40] sm:$0xff]
    %v30 = vld [vmem:[%s0 + $0x48] sm:$0xff]
    %v31 = vld [vmem:[%s0 + $0x50] sm:$0xff]
    %v32 = vld [vmem:[%s0 + $0x58] sm:$0xff]
    %v33 = vld [vmem:[%s0 + $0x60] sm:$0xff]
    %v34 = vld [vmem:[%s0 + $0x68] sm:$0xff]
    %v35 = vld [vmem:[%s0 + $0x70] sm:$0xff]
    %v36 = vld [vmem:[%s0 + $0x78] sm:$0xff]
    %vm37 = vcmask 130048
    %v38 = vsel %vm37, %v21, 0.0
    %39 = vadd.xlane.f32.xlu0 %v38
    %v40 = vpop.xlane.xlu0 %39
    %v41 = vsel %vm37, %v22, 0.0
    %42 = vadd.xlane.f32.xlu0 %v41
    %v43 = vpop.xlane.xlu0 %42
    %v44 = vsel %vm37, %v23, 0.0
    %45 = vadd.xlane.f32.xlu0 %v44
    %v46 = vpop.xlane.xlu0 %45
    %v47 = vsel %vm37, %v24, 0.0
    %48 = vadd.xlane.f32.xlu0 %v47
    %v49 = vpop.xlane.xlu0 %48
    %v50 = vsel %vm37, %v25, 0.0
    %51 = vadd.xlane.f32.xlu0 %v50
    %v52 = vpop.xlane.xlu0 %51
    %v53 = vsel %vm37, %v26, 0.0
    %54 = vadd.xlane.f32.xlu0 %v53
    %v55 = vpop.xlane.xlu0 %54
    %v56 = vsel %vm37, %v27, 0.0
    %57 = vadd.xlane.f32.xlu0 %v56
    %v58 = vpop.xlane.xlu0 %57
    %v59 = vsel %vm37, %v28, 0.0
    %60 = vadd.xlane.f32.xlu0 %v59
    %v61 = vpop.xlane.xlu0 %60
    %v62 = vsel %vm37, %v29, 0.0
    %63 = vadd.xlane.f32.xlu0 %v62
    %v64 = vpop.xlane.xlu0 %63
    %v65 = vsel %vm37, %v30, 0.0
    %66 = vadd.xlane.f32.xlu0 %v65
    %v67 = vpop.xlane.xlu0 %66
    %v68 = vsel %vm37, %v31, 0.0
    %69 = vadd.xlane.f32.xlu0 %v68
    %v70 = vpop.xlane.xlu0 %69
    %v71 = vsel %vm37, %v32, 0.0
    %72 = vadd.xlane.f32.xlu0 %v71
    %v73 = vpop.xlane.xlu0 %72
    %v74 = vsel %vm37, %v33, 0.0
    %75 = vadd.xlane.f32.xlu0 %v74
    %v76 = vpop.xlane.xlu0 %75
    %v77 = vsel %vm37, %v34, 0.0
    %78 = vadd.xlane.f32.xlu0 %v77
    %v79 = vpop.xlane.xlu0 %78
    %v80 = vsel %vm37, %v35, 0.0
    %81 = vadd.xlane.f32.xlu0 %v80
    %v82 = vpop.xlane.xlu0 %81
    %v83 = vsel %vm37, %v36, 0.0
    %84 = vadd.xlane.f32.xlu0 %v83
    %v85 = vpop.xlane.xlu0 %84
    %v86 = vmul.f32 %v21, %v21
    %v87 = vmul.f32 %v22, %v22
    %v88 = vmul.f32 %v23, %v23
    %v89 = vmul.f32 %v24, %v24
    %v90 = vmul.f32 %v25, %v25
    %v91 = vmul.f32 %v26, %v26
    %v92 = vmul.f32 %v27, %v27
    %v93 = vmul.f32 %v28, %v28
    %v94 = vmul.f32 %v29, %v29
    %v95 = vmul.f32 %v30, %v30
    %v96 = vmul.f32 %v31, %v31
    %v97 = vmul.f32 %v32, %v32
    %v98 = vmul.f32 %v33, %v33
    %v99 = vmul.f32 %v34, %v34
    %v100 = vmul.f32 %v35, %v35
    %v101 = vmul.f32 %v36, %v36
    %v102 = vsel %vm37, %v86, 0.0
    %103 = vadd.xlane.f32.xlu0 %v102
    %v104 = vpop.xlane.xlu0 %103
    %v105 = vsel %vm37, %v87, 0.0
    %106 = vadd.xlane.f32.xlu0 %v105
    %v107 = vpop.xlane.xlu0 %106
    %v108 = vsel %vm37, %v88, 0.0
    %109 = vadd.xlane.f32.xlu0 %v108
    %v110 = vpop.xlane.xlu0 %109
    %v111 = vsel %vm37, %v89, 0.0
    %112 = vadd.xlane.f32.xlu0 %v111
    %v113 = vpop.xlane.xlu0 %112
    %v114 = vsel %vm37, %v90, 0.0
    %115 = vadd.xlane.f32.xlu0 %v114
    %v116 = vpop.xlane.xlu0 %115
    %v117 = vsel %vm37, %v91, 0.0
    %118 = vadd.xlane.f32.xlu0 %v117
    %v119 = vpop.xlane.xlu0 %118
    %v120 = vsel %vm37, %v92, 0.0
    %121 = vadd.xlane.f32.xlu0 %v120
    %v122 = vpop.xlane.xlu0 %121
    %v123 = vsel %vm37, %v93, 0.0
    %124 = vadd.xlane.f32.xlu0 %v123
    %v125 = vpop.xlane.xlu0 %124
    %v126 = vsel %vm37, %v94, 0.0
    %127 = vadd.xlane.f32.xlu0 %v126
    %v128 = vpop.xlane.xlu0 %127
    %v129 = vsel %vm37, %v95, 0.0
    %130 = vadd.xlane.f32.xlu0 %v129
    %v131 = vpop.xlane.xlu0 %130
    %v132 = vsel %vm37, %v96, 0.0
    %133 = vadd.xlane.f32.xlu0 %v132
    %v134 = vpop.xlane.xlu0 %133
    %v135 = vsel %vm37, %v97, 0.0
    %136 = vadd.xlane.f32.xlu0 %v135
    %v137 = vpop.xlane.xlu0 %136
    %v138 = vsel %vm37, %v98, 0.0
    %139 = vadd.xlane.f32.xlu0 %v138
    %v140 = vpop.xlane.xlu0 %139
    %v141 = vsel %vm37, %v99, 0.0
    %142 = vadd.xlane.f32.xlu0 %v141
    %v143 = vpop.xlane.xlu0 %142
    %v144 = vsel %vm37, %v100, 0.0
    %145 = vadd.xlane.f32.xlu0 %v144
    %v146 = vpop.xlane.xlu0 %145
    %v147 = vsel %vm37, %v101, 0.0
    %148 = vadd.xlane.f32.xlu0 %v147
    %v149 = vpop.xlane.xlu0 %148
    %v150 = vmul.f32 %v40, 0.0625
    %v151 = vmul.f32 %v43, 0.0625
    %v152 = vmul.f32 %v46, 0.0625
    %v153 = vmul.f32 %v49, 0.0625
    %v154 = vmul.f32 %v52, 0.0625
    %v155 = vmul.f32 %v55, 0.0625
    %v156 = vmul.f32 %v58, 0.0625
    %v157 = vmul.f32 %v61, 0.0625
    %v158 = vmul.f32 %v64, 0.0625
    %v159 = vmul.f32 %v67, 0.0625
    %v160 = vmul.f32 %v70, 0.0625
    %v161 = vmul.f32 %v73, 0.0625
    %v162 = vmul.f32 %v76, 0.0625
    %v163 = vmul.f32 %v79, 0.0625
    %v164 = vmul.f32 %v82, 0.0625
    %v165 = vmul.f32 %v85, 0.0625
    %v166 = vmul.f32 %v104, 0.0625
    %v167 = vmul.f32 %v107, 0.0625
    %v168 = vmul.f32 %v110, 0.0625
    %v169 = vmul.f32 %v113, 0.0625
    %v170 = vmul.f32 %v116, 0.0625
    %v171 = vmul.f32 %v119, 0.0625
    %v172 = vmul.f32 %v122, 0.0625
    %v173 = vmul.f32 %v125, 0.0625
    %v174 = vmul.f32 %v128, 0.0625
    %v175 = vmul.f32 %v131, 0.0625
    %v176 = vmul.f32 %v134, 0.0625
    %v177 = vmul.f32 %v137, 0.0625
    %v178 = vmul.f32 %v140, 0.0625
    %v179 = vmul.f32 %v143, 0.0625
    %v180 = vmul.f32 %v146, 0.0625
    %v181 = vmul.f32 %v149, 0.0625
    %v182 = vmul.f32 %v150, %v150
    %v183 = vmul.f32 %v151, %v151
    %v184 = vmul.f32 %v152, %v152
    %v185 = vmul.f32 %v153, %v153
    %v186 = vmul.f32 %v154, %v154
    %v187 = vmul.f32 %v155, %v155
    %v188 = vmul.f32 %v156, %v156
    %v189 = vmul.f32 %v157, %v157
    %v190 = vmul.f32 %v158, %v158
    %v191 = vmul.f32 %v159, %v159
    %v192 = vmul.f32 %v160, %v160
    %v193 = vmul.f32 %v161, %v161
    %v194 = vmul.f32 %v162, %v162
    %v195 = vmul.f32 %v163, %v163
    %v196 = vmul.f32 %v164, %v164
    %v197 = vmul.f32 %v165, %v165
    %v198 = vsub.f32 %v166, %v182
    %v199 = vsub.f32 %v167, %v183
    %v200 = vsub.f32 %v168, %v184
    %v201 = vsub.f32 %v169, %v185
    %v202 = vsub.f32 %v170, %v186
    %v203 = vsub.f32 %v171, %v187
    %v204 = vsub.f32 %v172, %v188
    %v205 = vsub.f32 %v173, %v189
    %v206 = vsub.f32 %v174, %v190
    %v207 = vsub.f32 %v175, %v191
    %v208 = vsub.f32 %v176, %v192
    %v209 = vsub.f32 %v177, %v193
    %v210 = vsub.f32 %v178, %v194
    %v211 = vsub.f32 %v179, %v195
    %v212 = vsub.f32 %v180, %v196
    %v213 = vsub.f32 %v181, %v197
    %v214 = vsub.f32 %v21, %v150
    %v215 = vsub.f32 %v22, %v151
    %v216 = vsub.f32 %v23, %v152
    %v217 = vsub.f32 %v24, %v153
    %v218 = vsub.f32 %v25, %v154
    %v219 = vsub.f32 %v26, %v155
    %v220 = vsub.f32 %v27, %v156
    %v221 = vsub.f32 %v28, %v157
    %v222 = vsub.f32 %v29, %v158
    %v223 = vsub.f32 %v30, %v159
    %v224 = vsub.f32 %v31, %v160
    %v225 = vsub.f32 %v32, %v161
    %v226 = vsub.f32 %v33, %v162
    %v227 = vsub.f32 %v34, %v163
    %v228 = vsub.f32 %v35, %v164
    %v229 = vsub.f32 %v36, %v165
    %v230 = vadd.f32 %v198, 1e-05
    %v231 = vadd.f32 %v199, 1e-05
    %v232 = vadd.f32 %v200, 1e-05
    %v233 = vadd.f32 %v201, 1e-05
    %v234 = vadd.f32 %v202, 1e-05
    %v235 = vadd.f32 %v203, 1e-05
    %v236 = vadd.f32 %v204, 1e-05
    %v237 = vadd.f32 %v205, 1e-05
    %v238 = vadd.f32 %v206, 1e-05
    %v239 = vadd.f32 %v207, 1e-05
    %v240 = vadd.f32 %v208, 1e-05
    %v241 = vadd.f32 %v209, 1e-05
    %v242 = vadd.f32 %v210, 1e-05
    %v243 = vadd.f32 %v211, 1e-05
    %v244 = vadd.f32 %v212, 1e-05
    %v245 = vadd.f32 %v213, 1e-05
    %v246 = vrsqrt.pop %v230
    %v247 = vrsqrt.pop %v231
    %v248 = vrsqrt.pop %v232
    %v249 = vrsqrt.pop %v233
    %v250 = vrsqrt.pop %v234
    %v251 = vrsqrt.pop %v235
    %v252 = vrsqrt.pop %v236
    %v253 = vrsqrt.pop %v237
    %v254 = vrsqrt.pop %v238
    %v255 = vrsqrt.pop %v239
    %v256 = vrsqrt.pop %v240
    %v257 = vrsqrt.pop %v241
    %v258 = vrsqrt.pop %v242
    %v259 = vrsqrt.pop %v243
    %v260 = vrsqrt.pop %v244
    %v261 = vrsqrt.pop %v245
    %v262 = vmul.f32 %v214, %v246
    %v263 = vmul.f32 %v215, %v247
    %v264 = vmul.f32 %v216, %v248
    %v265 = vmul.f32 %v217, %v249
    %v266 = vmul.f32 %v218, %v250
    %v267 = vmul.f32 %v219, %v251
    %v268 = vmul.f32 %v220, %v252
    %v269 = vmul.f32 %v221, %v253
    %v270 = vmul.f32 %v222, %v254
    %v271 = vmul.f32 %v223, %v255
    %v272 = vmul.f32 %v224, %v256
    %v273 = vmul.f32 %v225, %v257
    %v274 = vmul.f32 %v226, %v258
    %v275 = vmul.f32 %v227, %v259
    %v276 = vmul.f32 %v228, %v260
    %v277 = vmul.f32 %v229, %v261
    %v278 = vld [vmem:[%s2] sm:$0x7]
    %v279 = vld [vmem:[%s1] sm:$0xff]
    %v280 = vld [vmem:[%s1 + $0x8] sm:$0xff]
    %v281 = vlaneseq
    %v282 = vshrl.u32 %v281, 7
    %v283 = vsub.s32 0, %v282
    %v284 = vrot.slane %v278, %v283
    %v286 = vsel %vm37, %v262, 0
    %v289 = vsel %vm37, %v263, 0
    %v292 = vsel %vm37, %v264, 0
    %v295 = vsel %vm37, %v265, 0
    %v298 = vsel %vm37, %v266, 0
    %v301 = vsel %vm37, %v267, 0
    %v304 = vsel %vm37, %v268, 0
    %v307 = vsel %vm37, %v269, 0
    %v310 = vsel %vm37, %v270, 0
    %v313 = vsel %vm37, %v271, 0
    %v316 = vsel %vm37, %v272, 0
    %v319 = vsel %vm37, %v273, 0
    %v322 = vsel %vm37, %v274, 0
    %v325 = vsel %vm37, %v275, 0
    %v328 = vsel %vm37, %v276, 0
    %v331 = vsel %vm37, %v277, 0
    %333 = vmatprep.subr.mxu0 0.0
    %334 = vmatpush1.msra.mxu0 0.0
    %335 = vmatprep.subr.mxu0 0.0
    %336 = vmatpush1.msra.mxu0 0.0
    %337 = vmatprep.subr.mxu0 0.0
    %338 = vmatpush1.msra.mxu0 0.0
    %339 = vmatprep.subr.mxu0 0.0
    %340 = vmatpush1.msra.mxu0 0.0
    %341 = vmatprep.subr.mxu0 0.0
    %342 = vmatpush1.msra.mxu0 0.0
    %343 = vmatprep.subr.mxu0 0.0
    %344 = vmatpush1.msra.mxu0 0.0
    %345 = vmatprep.subr.mxu0 0.0
    %346 = vmatpush1.msra.mxu0 0.0
    %347 = vmatprep.subr.mxu0 0.0
    %348 = vmatpush1.msra.mxu0 0.0
    %349 = vmatprep.subr.mxu0 0.0
    %350 = vmatpush1.msra.mxu0 0.0
    %351 = vmatprep.subr.mxu0 0.0
    %352 = vmatpush1.msra.mxu0 0.0
    %353 = vmatprep.subr.mxu0 0.0
    %354 = vmatpush1.msra.mxu0 0.0
    %355 = vmatprep.subr.mxu0 0.0
    %356 = vmatpush1.msra.mxu0 0.0
    %357 = vmatprep.subr.mxu0 0.0
    %358 = vmatpush1.msra.mxu0 0.0
    %359 = vmatprep.subr.mxu0 0.0
    %360 = vmatpush1.msra.mxu0 0.0
    %361 = vmatprep.subr.mxu0 0.0
    %362 = vmatpush1.msra.mxu0 %v280
    %363 = vmatprep.subr.mxu0 0.0
    %364 = vmatpush1.msra.mxu0 %v279
    %365 = vmatprep.subr.mxu0 0.0
    %366 = vmatpush2.msra.mxu0 0.0
    %367 = vmatprep.subr.mxu0 0.0
    %368 = vmatpush2.msra.mxu0 0.0
    %369 = vmatprep.subr.mxu0 0.0
    %370 = vmatpush2.msra.mxu0 0.0
    %371 = vmatprep.subr.mxu0 0.0
    %372 = vmatpush2.msra.mxu0 0.0
    %373 = vmatprep.subr.mxu0 0.0
    %374 = vmatpush2.msra.mxu0 0.0
    %375 = vmatprep.subr.mxu0 0.0
    %376 = vmatpush2.msra.mxu0 0.0
    %377 = vmatprep.subr.mxu0 0.0
    %378 = vmatpush2.msra.mxu0 0.0
    %379 = vmatprep.subr.mxu0 0.0
    %380 = vmatpush2.msra.mxu0 0.0
    %381 = vmatprep.subr.mxu0 0.0
    %382 = vmatpush2.msra.mxu0 0.0
    %383 = vmatprep.subr.mxu0 0.0
    %384 = vmatpush2.msra.mxu0 0.0
    %385 = vmatprep.subr.mxu0 0.0
    %386 = vmatpush2.msra.mxu0 0.0
    %387 = vmatprep.subr.mxu0 0.0
    %388 = vmatpush2.msra.mxu0 0.0
    %389 = vmatprep.subr.mxu0 0.0
    %390 = vmatpush2.msra.mxu0 0.0
    %391 = vmatprep.subr.mxu0 0.0
    %392 = vmatpush2.msra.mxu0 0.0
    %393 = vmatprep.subr.mxu0 0.0
    %394 = vmatpush2.msra.mxu0 0.0
    %395 = vmatprep.subr.mxu0 0.0
    %396 = vmatpush2.msra.mxu0 0.0
    %397 = vmatprep.mubr.f32.mxu0 0.0
    %398 = vmatmul.mubr.f32.gmra.mxu0 %v286
    %v399 = vpop.f32.mrf.mxu0
    %v400 = vadd.f32 %v284, %v399
    %v401 = vpop.f32.mrf.mxu0
    %402 = vmatprep.mubr.f32.mxu0 0.0
    %403 = vmatmul.mubr.f32.gmra.mxu0 %v289
    %v404 = vpop.f32.mrf.mxu0
    %v405 = vadd.f32 %v284, %v404
    %v406 = vpop.f32.mrf.mxu0
    %407 = vmatprep.mubr.f32.mxu0 0.0
    %408 = vmatmul.mubr.f32.gmra.mxu0 %v292
    %v409 = vpop.f32.mrf.mxu0
    %v410 = vadd.f32 %v284, %v409
    %v411 = vpop.f32.mrf.mxu0
    %412 = vmatprep.mubr.f32.mxu0 0.0
    %413 = vmatmul.mubr.f32.gmra.mxu0 %v295
    %v414 = vpop.f32.mrf.mxu0
    %v415 = vadd.f32 %v284, %v414
    %v416 = vpop.f32.mrf.mxu0
    %417 = vmatprep.mubr.f32.mxu0 0.0
    %418 = vmatmul.mubr.f32.gmra.mxu0 %v298
    %v419 = vpop.f32.mrf.mxu0
    %v420 = vadd.f32 %v284, %v419
    %v421 = vpop.f32.mrf.mxu0
    %422 = vmatprep.mubr.f32.mxu0 0.0
    %423 = vmatmul.mubr.f32.gmra.mxu0 %v301
    %v424 = vpop.f32.mrf.mxu0
    %v425 = vadd.f32 %v284, %v424
    %v426 = vpop.f32.mrf.mxu0
    %427 = vmatprep.mubr.f32.mxu0 0.0
    %428 = vmatmul.mubr.f32.gmra.mxu0 %v304
    %v429 = vpop.f32.mrf.mxu0
    %v430 = vadd.f32 %v284, %v429
    %v431 = vpop.f32.mrf.mxu0
    %432 = vmatprep.mubr.f32.mxu0 0.0
    %433 = vmatmul.mubr.f32.gmra.mxu0 %v307
    %v434 = vpop.f32.mrf.mxu0
    %v435 = vadd.f32 %v284, %v434
    %v436 = vpop.f32.mrf.mxu0
    %437 = vmatprep.mubr.f32.mxu0 0.0
    %438 = vmatmul.mubr.f32.gmra.mxu0 %v310
    %v439 = vpop.f32.mrf.mxu0
    %v440 = vadd.f32 %v284, %v439
    %v441 = vpop.f32.mrf.mxu0
    %442 = vmatprep.mubr.f32.mxu0 0.0
    %443 = vmatmul.mubr.f32.gmra.mxu0 %v313
    %v444 = vpop.f32.mrf.mxu0
    %v445 = vadd.f32 %v284, %v444
    %v446 = vpop.f32.mrf.mxu0
    %447 = vmatprep.mubr.f32.mxu0 0.0
    %448 = vmatmul.mubr.f32.gmra.mxu0 %v316
    %v449 = vpop.f32.mrf.mxu0
    %v450 = vadd.f32 %v284, %v449
    %v451 = vpop.f32.mrf.mxu0
    %452 = vmatprep.mubr.f32.mxu0 0.0
    %453 = vmatmul.mubr.f32.gmra.mxu0 %v319
    %v454 = vpop.f32.mrf.mxu0
    %v455 = vadd.f32 %v284, %v454
    %v456 = vpop.f32.mrf.mxu0
    %457 = vmatprep.mubr.f32.mxu0 0.0
    %458 = vmatmul.mubr.f32.gmra.mxu0 %v322
    %v459 = vpop.f32.mrf.mxu0
    %v460 = vadd.f32 %v284, %v459
    %v461 = vpop.f32.mrf.mxu0
    %462 = vmatprep.mubr.f32.mxu0 0.0
    %463 = vmatmul.mubr.f32.gmra.mxu0 %v325
    %v464 = vpop.f32.mrf.mxu0
    %v465 = vadd.f32 %v284, %v464
    %v466 = vpop.f32.mrf.mxu0
    %467 = vmatprep.mubr.f32.mxu0 0.0
    %468 = vmatmul.mubr.f32.gmra.mxu0 %v328
    %v469 = vpop.f32.mrf.mxu0
    %v470 = vadd.f32 %v284, %v469
    %v471 = vpop.f32.mrf.mxu0
    %472 = vmatprep.mubr.f32.mxu0 0.0
    %473 = vmatmul.mubr.f32.gmra.mxu0 %v331
    %v474 = vpop.f32.mrf.mxu0
    %v475 = vadd.f32 %v284, %v474
    %v476 = vpop.f32.mrf.mxu0
    %477 = vdwg.mxu0
    %v478 = vsel %vm37, %v400, 0.0
    %479 = vadd.xlane.f32.xlu0 %v478
    %v480 = vpop.xlane.xlu0 %479
    %v481 = vsel %vm37, %v405, 0.0
    %482 = vadd.xlane.f32.xlu0 %v481
    %v483 = vpop.xlane.xlu0 %482
    %v484 = vsel %vm37, %v410, 0.0
    %485 = vadd.xlane.f32.xlu0 %v484
    %v486 = vpop.xlane.xlu0 %485
    %v487 = vsel %vm37, %v415, 0.0
    %488 = vadd.xlane.f32.xlu0 %v487
    %v489 = vpop.xlane.xlu0 %488
    %v490 = vsel %vm37, %v420, 0.0
    %491 = vadd.xlane.f32.xlu0 %v490
    %v492 = vpop.xlane.xlu0 %491
    %v493 = vsel %vm37, %v425, 0.0
    %494 = vadd.xlane.f32.xlu0 %v493
    %v495 = vpop.xlane.xlu0 %494
    %v496 = vsel %vm37, %v430, 0.0
    %497 = vadd.xlane.f32.xlu0 %v496
    %v498 = vpop.xlane.xlu0 %497
    %v499 = vsel %vm37, %v435, 0.0
    %500 = vadd.xlane.f32.xlu0 %v499
    %v501 = vpop.xlane.xlu0 %500
    %v502 = vsel %vm37, %v440, 0.0
    %503 = vadd.xlane.f32.xlu0 %v502
    %v504 = vpop.xlane.xlu0 %503
    %v505 = vsel %vm37, %v445, 0.0
    %506 = vadd.xlane.f32.xlu0 %v505
    %v507 = vpop.xlane.xlu0 %506
    %v508 = vsel %vm37, %v450, 0.0
    %509 = vadd.xlane.f32.xlu0 %v508
    %v510 = vpop.xlane.xlu0 %509
    %v511 = vsel %vm37, %v455, 0.0
    %512 = vadd.xlane.f32.xlu0 %v511
    %v513 = vpop.xlane.xlu0 %512
    %v514 = vsel %vm37, %v460, 0.0
    %515 = vadd.xlane.f32.xlu0 %v514
    %v516 = vpop.xlane.xlu0 %515
    %v517 = vsel %vm37, %v465, 0.0
    %518 = vadd.xlane.f32.xlu0 %v517
    %v519 = vpop.xlane.xlu0 %518
    %v520 = vsel %vm37, %v470, 0.0
    %521 = vadd.xlane.f32.xlu0 %v520
    %v522 = vpop.xlane.xlu0 %521
    %v523 = vsel %vm37, %v475, 0.0
    %524 = vadd.xlane.f32.xlu0 %v523
    %v525 = vpop.xlane.xlu0 %524
    %v526 = vmul.f32 %v400, %v400
    %v527 = vmul.f32 %v405, %v405
    %v528 = vmul.f32 %v410, %v410
    %v529 = vmul.f32 %v415, %v415
    %v530 = vmul.f32 %v420, %v420
    %v531 = vmul.f32 %v425, %v425
    %v532 = vmul.f32 %v430, %v430
    %v533 = vmul.f32 %v435, %v435
    %v534 = vmul.f32 %v440, %v440
    %v535 = vmul.f32 %v445, %v445
    %v536 = vmul.f32 %v450, %v450
    %v537 = vmul.f32 %v455, %v455
    %v538 = vmul.f32 %v460, %v460
    %v539 = vmul.f32 %v465, %v465
    %v540 = vmul.f32 %v470, %v470
    %v541 = vmul.f32 %v475, %v475
    %v542 = vsel %vm37, %v526, 0.0
    %543 = vadd.xlane.f32.xlu0 %v542
    %v544 = vpop.xlane.xlu0 %543
    %v545 = vsel %vm37, %v527, 0.0
    %546 = vadd.xlane.f32.xlu0 %v545
    %v547 = vpop.xlane.xlu0 %546
    %v548 = vsel %vm37, %v528, 0.0
    %549 = vadd.xlane.f32.xlu0 %v548
    %v550 = vpop.xlane.xlu0 %549
    %v551 = vsel %vm37, %v529, 0.0
    %552 = vadd.xlane.f32.xlu0 %v551
    %v553 = vpop.xlane.xlu0 %552
    %v554 = vsel %vm37, %v530, 0.0
    %555 = vadd.xlane.f32.xlu0 %v554
    %v556 = vpop.xlane.xlu0 %555
    %v557 = vsel %vm37, %v531, 0.0
    %558 = vadd.xlane.f32.xlu0 %v557
    %v559 = vpop.xlane.xlu0 %558
    %v560 = vsel %vm37, %v532, 0.0
    %561 = vadd.xlane.f32.xlu0 %v560
    %v562 = vpop.xlane.xlu0 %561
    %v563 = vsel %vm37, %v533, 0.0
    %564 = vadd.xlane.f32.xlu0 %v563
    %v565 = vpop.xlane.xlu0 %564
    %v566 = vsel %vm37, %v534, 0.0
    %567 = vadd.xlane.f32.xlu0 %v566
    %v568 = vpop.xlane.xlu0 %567
    %v569 = vsel %vm37, %v535, 0.0
    %570 = vadd.xlane.f32.xlu0 %v569
    %v571 = vpop.xlane.xlu0 %570
    %v572 = vsel %vm37, %v536, 0.0
    %573 = vadd.xlane.f32.xlu0 %v572
    %v574 = vpop.xlane.xlu0 %573
    %v575 = vsel %vm37, %v537, 0.0
    %576 = vadd.xlane.f32.xlu0 %v575
    %v577 = vpop.xlane.xlu0 %576
    %v578 = vsel %vm37, %v538, 0.0
    %579 = vadd.xlane.f32.xlu0 %v578
    %v580 = vpop.xlane.xlu0 %579
    %v581 = vsel %vm37, %v539, 0.0
    %582 = vadd.xlane.f32.xlu0 %v581
    %v583 = vpop.xlane.xlu0 %582
    %v584 = vsel %vm37, %v540, 0.0
    %585 = vadd.xlane.f32.xlu0 %v584
    %v586 = vpop.xlane.xlu0 %585
    %v587 = vsel %vm37, %v541, 0.0
    %588 = vadd.xlane.f32.xlu0 %v587
    %v589 = vpop.xlane.xlu0 %588
    %v590 = vmul.f32 %v480, 0.0625
    %v591 = vmul.f32 %v483, 0.0625
    %v592 = vmul.f32 %v486, 0.0625
    %v593 = vmul.f32 %v489, 0.0625
    %v594 = vmul.f32 %v492, 0.0625
    %v595 = vmul.f32 %v495, 0.0625
    %v596 = vmul.f32 %v498, 0.0625
    %v597 = vmul.f32 %v501, 0.0625
    %v598 = vmul.f32 %v504, 0.0625
    %v599 = vmul.f32 %v507, 0.0625
    %v600 = vmul.f32 %v510, 0.0625
    %v601 = vmul.f32 %v513, 0.0625
    %v602 = vmul.f32 %v516, 0.0625
    %v603 = vmul.f32 %v519, 0.0625
    %v604 = vmul.f32 %v522, 0.0625
    %v605 = vmul.f32 %v525, 0.0625
    %v606 = vmul.f32 %v544, 0.0625
    %v607 = vmul.f32 %v547, 0.0625
    %v608 = vmul.f32 %v550, 0.0625
    %v609 = vmul.f32 %v553, 0.0625
    %v610 = vmul.f32 %v556, 0.0625
    %v611 = vmul.f32 %v559, 0.0625
    %v612 = vmul.f32 %v562, 0.0625
    %v613 = vmul.f32 %v565, 0.0625
    %v614 = vmul.f32 %v568, 0.0625
    %v615 = vmul.f32 %v571, 0.0625
    %v616 = vmul.f32 %v574, 0.0625
    %v617 = vmul.f32 %v577, 0.0625
    %v618 = vmul.f32 %v580, 0.0625
    %v619 = vmul.f32 %v583, 0.0625
    %v620 = vmul.f32 %v586, 0.0625
    %v621 = vmul.f32 %v589, 0.0625
    %v622 = vmul.f32 %v590, %v590
    %v623 = vmul.f32 %v591, %v591
    %v624 = vmul.f32 %v592, %v592
    %v625 = vmul.f32 %v593, %v593
    %v626 = vmul.f32 %v594, %v594
    %v627 = vmul.f32 %v595, %v595
    %v628 = vmul.f32 %v596, %v596
    %v629 = vmul.f32 %v597, %v597
    %v630 = vmul.f32 %v598, %v598
    %v631 = vmul.f32 %v599, %v599
    %v632 = vmul.f32 %v600, %v600
    %v633 = vmul.f32 %v601, %v601
    %v634 = vmul.f32 %v602, %v602
    %v635 = vmul.f32 %v603, %v603
    %v636 = vmul.f32 %v604, %v604
    %v637 = vmul.f32 %v605, %v605
    %v638 = vsub.f32 %v606, %v622
    %v639 = vsub.f32 %v607, %v623
    %v640 = vsub.f32 %v608, %v624
    %v641 = vsub.f32 %v609, %v625
    %v642 = vsub.f32 %v610, %v626
    %v643 = vsub.f32 %v611, %v627
    %v644 = vsub.f32 %v612, %v628
    %v645 = vsub.f32 %v613, %v629
    %v646 = vsub.f32 %v614, %v630
    %v647 = vsub.f32 %v615, %v631
    %v648 = vsub.f32 %v616, %v632
    %v649 = vsub.f32 %v617, %v633
    %v650 = vsub.f32 %v618, %v634
    %v651 = vsub.f32 %v619, %v635
    %v652 = vsub.f32 %v620, %v636
    %v653 = vsub.f32 %v621, %v637
    %v654 = vsub.f32 %v400, %v590
    %v655 = vsub.f32 %v405, %v591
    %v656 = vsub.f32 %v410, %v592
    %v657 = vsub.f32 %v415, %v593
    %v658 = vsub.f32 %v420, %v594
    %v659 = vsub.f32 %v425, %v595
    %v660 = vsub.f32 %v430, %v596
    %v661 = vsub.f32 %v435, %v597
    %v662 = vsub.f32 %v440, %v598
    %v663 = vsub.f32 %v445, %v599
    %v664 = vsub.f32 %v450, %v600
    %v665 = vsub.f32 %v455, %v601
    %v666 = vsub.f32 %v460, %v602
    %v667 = vsub.f32 %v465, %v603
    %v668 = vsub.f32 %v470, %v604
    %v669 = vsub.f32 %v475, %v605
    %v670 = vadd.f32 %v638, 1e-05
    %v671 = vadd.f32 %v639, 1e-05
    %v672 = vadd.f32 %v640, 1e-05
    %v673 = vadd.f32 %v641, 1e-05
    %v674 = vadd.f32 %v642, 1e-05
    %v675 = vadd.f32 %v643, 1e-05
    %v676 = vadd.f32 %v644, 1e-05
    %v677 = vadd.f32 %v645, 1e-05
    %v678 = vadd.f32 %v646, 1e-05
    %v679 = vadd.f32 %v647, 1e-05
    %v680 = vadd.f32 %v648, 1e-05
    %v681 = vadd.f32 %v649, 1e-05
    %v682 = vadd.f32 %v650, 1e-05
    %v683 = vadd.f32 %v651, 1e-05
    %v684 = vadd.f32 %v652, 1e-05
    %v685 = vadd.f32 %v653, 1e-05
    %v686 = vrsqrt.pop %v670
    %v687 = vrsqrt.pop %v671
    %v688 = vrsqrt.pop %v672
    %v689 = vrsqrt.pop %v673
    %v690 = vrsqrt.pop %v674
    %v691 = vrsqrt.pop %v675
    %v692 = vrsqrt.pop %v676
    %v693 = vrsqrt.pop %v677
    %v694 = vrsqrt.pop %v678
    %v695 = vrsqrt.pop %v679
    %v696 = vrsqrt.pop %v680
    %v697 = vrsqrt.pop %v681
    %v698 = vrsqrt.pop %v682
    %v699 = vrsqrt.pop %v683
    %v700 = vrsqrt.pop %v684
    %v701 = vrsqrt.pop %v685
    %v702 = vmul.f32 %v654, %v686
    %v703 = vmul.f32 %v655, %v687
    %v704 = vmul.f32 %v656, %v688
    %v705 = vmul.f32 %v657, %v689
    %v706 = vmul.f32 %v658, %v690
    %v707 = vmul.f32 %v659, %v691
    %v708 = vmul.f32 %v660, %v692
    %v709 = vmul.f32 %v661, %v693
    %v710 = vmul.f32 %v662, %v694
    %v711 = vmul.f32 %v663, %v695
    %v712 = vmul.f32 %v664, %v696
    %v713 = vmul.f32 %v665, %v697
    %v714 = vmul.f32 %v666, %v698
    %v715 = vmul.f32 %v667, %v699
    %v716 = vmul.f32 %v668, %v700
    %v717 = vmul.f32 %v669, %v701
    %v718 = vlaneseq
    %v719 = vshrl.u32 %v718, 7
    %v720 = vsub.s32 1, %v719
    %v721 = vrot.slane %v278, %v720
    %v722 = vmul.f32 %v702, %v721
    %v723 = vmul.f32 %v703, %v721
    %v724 = vmul.f32 %v704, %v721
    %v725 = vmul.f32 %v705, %v721
    %v726 = vmul.f32 %v706, %v721
    %v727 = vmul.f32 %v707, %v721
    %v728 = vmul.f32 %v708, %v721
    %v729 = vmul.f32 %v709, %v721
    %v730 = vmul.f32 %v710, %v721
    %v731 = vmul.f32 %v711, %v721
    %v732 = vmul.f32 %v712, %v721
    %v733 = vmul.f32 %v713, %v721
    %v734 = vmul.f32 %v714, %v721
    %v735 = vmul.f32 %v715, %v721
    %v736 = vmul.f32 %v716, %v721
    %v737 = vmul.f32 %v717, %v721
    %v738 = vlaneseq
    %v739 = vshrl.u32 %v738, 7
    %v740 = vsub.s32 2, %v739
    %v741 = vrot.slane %v278, %v740
    %v742 = vadd.f32 %v722, %v741
    %v743 = vadd.f32 %v723, %v741
    %v744 = vadd.f32 %v724, %v741
    %v745 = vadd.f32 %v725, %v741
    %v746 = vadd.f32 %v726, %v741
    %v747 = vadd.f32 %v727, %v741
    %v748 = vadd.f32 %v728, %v741
    %v749 = vadd.f32 %v729, %v741
    %v750 = vadd.f32 %v730, %v741
    %v751 = vadd.f32 %v731, %v741
    %v752 = vadd.f32 %v732, %v741
    %v753 = vadd.f32 %v733, %v741
    %v754 = vadd.f32 %v734, %v741
    %v755 = vadd.f32 %v735, %v741
    %v756 = vadd.f32 %v736, %v741
    %v757 = vadd.f32 %v737, %v741
    %v758 = vmax.f32 %v742, 0.0
    %v759 = vmax.f32 %v743, 0.0
    %v760 = vmax.f32 %v744, 0.0
    %v761 = vmax.f32 %v745, 0.0
    %v762 = vmax.f32 %v746, 0.0
    %v763 = vmax.f32 %v747, 0.0
    %v764 = vmax.f32 %v748, 0.0
    %v765 = vmax.f32 %v749, 0.0
    %v766 = vmax.f32 %v750, 0.0
    %v767 = vmax.f32 %v751, 0.0
    %v768 = vmax.f32 %v752, 0.0
    %v769 = vmax.f32 %v753, 0.0
    %v770 = vmax.f32 %v754, 0.0
    %v771 = vmax.f32 %v755, 0.0
    %v772 = vmax.f32 %v756, 0.0
    %v773 = vmax.f32 %v757, 0.0
    %v774 = vsel %vm37, %v758, 0.0
    %775 = vadd.xlane.f32.xlu0 %v774
    %v776 = vpop.xlane.xlu0 %775
    %v777 = vsel %vm37, %v759, 0.0
    %778 = vadd.xlane.f32.xlu0 %v777
    %v779 = vpop.xlane.xlu0 %778
    %v780 = vsel %vm37, %v760, 0.0
    %781 = vadd.xlane.f32.xlu0 %v780
    %v782 = vpop.xlane.xlu0 %781
    %v783 = vsel %vm37, %v761, 0.0
    %784 = vadd.xlane.f32.xlu0 %v783
    %v785 = vpop.xlane.xlu0 %784
    %v786 = vsel %vm37, %v762, 0.0
    %787 = vadd.xlane.f32.xlu0 %v786
    %v788 = vpop.xlane.xlu0 %787
    %v789 = vsel %vm37, %v763, 0.0
    %790 = vadd.xlane.f32.xlu0 %v789
    %v791 = vpop.xlane.xlu0 %790
    %v792 = vsel %vm37, %v764, 0.0
    %793 = vadd.xlane.f32.xlu0 %v792
    %v794 = vpop.xlane.xlu0 %793
    %v795 = vsel %vm37, %v765, 0.0
    %796 = vadd.xlane.f32.xlu0 %v795
    %v797 = vpop.xlane.xlu0 %796
    %v798 = vsel %vm37, %v766, 0.0
    %799 = vadd.xlane.f32.xlu0 %v798
    %v800 = vpop.xlane.xlu0 %799
    %v801 = vsel %vm37, %v767, 0.0
    %802 = vadd.xlane.f32.xlu0 %v801
    %v803 = vpop.xlane.xlu0 %802
    %v804 = vsel %vm37, %v768, 0.0
    %805 = vadd.xlane.f32.xlu0 %v804
    %v806 = vpop.xlane.xlu0 %805
    %v807 = vsel %vm37, %v769, 0.0
    %808 = vadd.xlane.f32.xlu0 %v807
    %v809 = vpop.xlane.xlu0 %808
    %v810 = vsel %vm37, %v770, 0.0
    %811 = vadd.xlane.f32.xlu0 %v810
    %v812 = vpop.xlane.xlu0 %811
    %v813 = vsel %vm37, %v771, 0.0
    %814 = vadd.xlane.f32.xlu0 %v813
    %v815 = vpop.xlane.xlu0 %814
    %v816 = vsel %vm37, %v772, 0.0
    %817 = vadd.xlane.f32.xlu0 %v816
    %v818 = vpop.xlane.xlu0 %817
    %v819 = vsel %vm37, %v773, 0.0
    %820 = vadd.xlane.f32.xlu0 %v819
    %v821 = vpop.xlane.xlu0 %820
    %v822 = vmul.f32 %v758, %v758
    %v823 = vmul.f32 %v759, %v759
    %v824 = vmul.f32 %v760, %v760
    %v825 = vmul.f32 %v761, %v761
    %v826 = vmul.f32 %v762, %v762
    %v827 = vmul.f32 %v763, %v763
    %v828 = vmul.f32 %v764, %v764
    %v829 = vmul.f32 %v765, %v765
    %v830 = vmul.f32 %v766, %v766
    %v831 = vmul.f32 %v767, %v767
    %v832 = vmul.f32 %v768, %v768
    %v833 = vmul.f32 %v769, %v769
    %v834 = vmul.f32 %v770, %v770
    %v835 = vmul.f32 %v771, %v771
    %v836 = vmul.f32 %v772, %v772
    %v837 = vmul.f32 %v773, %v773
    %v838 = vsel %vm37, %v822, 0.0
    %839 = vadd.xlane.f32.xlu0 %v838
    %v840 = vpop.xlane.xlu0 %839
    %v841 = vsel %vm37, %v823, 0.0
    %842 = vadd.xlane.f32.xlu0 %v841
    %v843 = vpop.xlane.xlu0 %842
    %v844 = vsel %vm37, %v824, 0.0
    %845 = vadd.xlane.f32.xlu0 %v844
    %v846 = vpop.xlane.xlu0 %845
    %v847 = vsel %vm37, %v825, 0.0
    %848 = vadd.xlane.f32.xlu0 %v847
    %v849 = vpop.xlane.xlu0 %848
    %v850 = vsel %vm37, %v826, 0.0
    %851 = vadd.xlane.f32.xlu0 %v850
    %v852 = vpop.xlane.xlu0 %851
    %v853 = vsel %vm37, %v827, 0.0
    %854 = vadd.xlane.f32.xlu0 %v853
    %v855 = vpop.xlane.xlu0 %854
    %v856 = vsel %vm37, %v828, 0.0
    %857 = vadd.xlane.f32.xlu0 %v856
    %v858 = vpop.xlane.xlu0 %857
    %v859 = vsel %vm37, %v829, 0.0
    %860 = vadd.xlane.f32.xlu0 %v859
    %v861 = vpop.xlane.xlu0 %860
    %v862 = vsel %vm37, %v830, 0.0
    %863 = vadd.xlane.f32.xlu0 %v862
    %v864 = vpop.xlane.xlu0 %863
    %v865 = vsel %vm37, %v831, 0.0
    %866 = vadd.xlane.f32.xlu0 %v865
    %v867 = vpop.xlane.xlu0 %866
    %v868 = vsel %vm37, %v832, 0.0
    %869 = vadd.xlane.f32.xlu0 %v868
    %v870 = vpop.xlane.xlu0 %869
    %v871 = vsel %vm37, %v833, 0.0
    %872 = vadd.xlane.f32.xlu0 %v871
    %v873 = vpop.xlane.xlu0 %872
    %v874 = vsel %vm37, %v834, 0.0
    %875 = vadd.xlane.f32.xlu0 %v874
    %v876 = vpop.xlane.xlu0 %875
    %v877 = vsel %vm37, %v835, 0.0
    %878 = vadd.xlane.f32.xlu0 %v877
    %v879 = vpop.xlane.xlu0 %878
    %v880 = vsel %vm37, %v836, 0.0
    %881 = vadd.xlane.f32.xlu0 %v880
    %v882 = vpop.xlane.xlu0 %881
    %v883 = vsel %vm37, %v837, 0.0
    %884 = vadd.xlane.f32.xlu0 %v883
    %v885 = vpop.xlane.xlu0 %884
    %v886 = vmul.f32 %v776, 0.0625
    %v887 = vmul.f32 %v779, 0.0625
    %v888 = vmul.f32 %v782, 0.0625
    %v889 = vmul.f32 %v785, 0.0625
    %v890 = vmul.f32 %v788, 0.0625
    %v891 = vmul.f32 %v791, 0.0625
    %v892 = vmul.f32 %v794, 0.0625
    %v893 = vmul.f32 %v797, 0.0625
    %v894 = vmul.f32 %v800, 0.0625
    %v895 = vmul.f32 %v803, 0.0625
    %v896 = vmul.f32 %v806, 0.0625
    %v897 = vmul.f32 %v809, 0.0625
    %v898 = vmul.f32 %v812, 0.0625
    %v899 = vmul.f32 %v815, 0.0625
    %v900 = vmul.f32 %v818, 0.0625
    %v901 = vmul.f32 %v821, 0.0625
    %v902 = vmul.f32 %v840, 0.0625
    %v903 = vmul.f32 %v843, 0.0625
    %v904 = vmul.f32 %v846, 0.0625
    %v905 = vmul.f32 %v849, 0.0625
    %v906 = vmul.f32 %v852, 0.0625
    %v907 = vmul.f32 %v855, 0.0625
    %v908 = vmul.f32 %v858, 0.0625
    %v909 = vmul.f32 %v861, 0.0625
    %v910 = vmul.f32 %v864, 0.0625
    %v911 = vmul.f32 %v867, 0.0625
    %v912 = vmul.f32 %v870, 0.0625
    %v913 = vmul.f32 %v873, 0.0625
    %v914 = vmul.f32 %v876, 0.0625
    %v915 = vmul.f32 %v879, 0.0625
    %v916 = vmul.f32 %v882, 0.0625
    %v917 = vmul.f32 %v885, 0.0625
    %v918 = vmul.f32 %v886, %v886
    %v919 = vmul.f32 %v887, %v887
    %v920 = vmul.f32 %v888, %v888
    %v921 = vmul.f32 %v889, %v889
    %v922 = vmul.f32 %v890, %v890
    %v923 = vmul.f32 %v891, %v891
    %v924 = vmul.f32 %v892, %v892
    %v925 = vmul.f32 %v893, %v893
    %v926 = vmul.f32 %v894, %v894
    %v927 = vmul.f32 %v895, %v895
    %v928 = vmul.f32 %v896, %v896
    %v929 = vmul.f32 %v897, %v897
    %v930 = vmul.f32 %v898, %v898
    %v931 = vmul.f32 %v899, %v899
    %v932 = vmul.f32 %v900, %v900
    %v933 = vmul.f32 %v901, %v901
    %v934 = vsub.f32 %v902, %v918
    %v935 = vsub.f32 %v903, %v919
    %v936 = vsub.f32 %v904, %v920
    %v937 = vsub.f32 %v905, %v921
    %v938 = vsub.f32 %v906, %v922
    %v939 = vsub.f32 %v907, %v923
    %v940 = vsub.f32 %v908, %v924
    %v941 = vsub.f32 %v909, %v925
    %v942 = vsub.f32 %v910, %v926
    %v943 = vsub.f32 %v911, %v927
    %v944 = vsub.f32 %v912, %v928
    %v945 = vsub.f32 %v913, %v929
    %v946 = vsub.f32 %v914, %v930
    %v947 = vsub.f32 %v915, %v931
    %v948 = vsub.f32 %v916, %v932
    %v949 = vsub.f32 %v917, %v933
    %v950 = vsub.f32 %v758, %v886
    %v951 = vsub.f32 %v759, %v887
    %v952 = vsub.f32 %v760, %v888
    %v953 = vsub.f32 %v761, %v889
    %v954 = vsub.f32 %v762, %v890
    %v955 = vsub.f32 %v763, %v891
    %v956 = vsub.f32 %v764, %v892
    %v957 = vsub.f32 %v765, %v893
    %v958 = vsub.f32 %v766, %v894
    %v959 = vsub.f32 %v767, %v895
    %v960 = vsub.f32 %v768, %v896
    %v961 = vsub.f32 %v769, %v897
    %v962 = vsub.f32 %v770, %v898
    %v963 = vsub.f32 %v771, %v899
    %v964 = vsub.f32 %v772, %v900
    %v965 = vsub.f32 %v773, %v901
    %v966 = vadd.f32 %v934, 1e-05
    %v967 = vadd.f32 %v935, 1e-05
    %v968 = vadd.f32 %v936, 1e-05
    %v969 = vadd.f32 %v937, 1e-05
    %v970 = vadd.f32 %v938, 1e-05
    %v971 = vadd.f32 %v939, 1e-05
    %v972 = vadd.f32 %v940, 1e-05
    %v973 = vadd.f32 %v941, 1e-05
    %v974 = vadd.f32 %v942, 1e-05
    %v975 = vadd.f32 %v943, 1e-05
    %v976 = vadd.f32 %v944, 1e-05
    %v977 = vadd.f32 %v945, 1e-05
    %v978 = vadd.f32 %v946, 1e-05
    %v979 = vadd.f32 %v947, 1e-05
    %v980 = vadd.f32 %v948, 1e-05
    %v981 = vadd.f32 %v949, 1e-05
    %v982 = vrsqrt.pop %v966
    %v983 = vrsqrt.pop %v967
    %v984 = vrsqrt.pop %v968
    %v985 = vrsqrt.pop %v969
    %v986 = vrsqrt.pop %v970
    %v987 = vrsqrt.pop %v971
    %v988 = vrsqrt.pop %v972
    %v989 = vrsqrt.pop %v973
    %v990 = vrsqrt.pop %v974
    %v991 = vrsqrt.pop %v975
    %v992 = vrsqrt.pop %v976
    %v993 = vrsqrt.pop %v977
    %v994 = vrsqrt.pop %v978
    %v995 = vrsqrt.pop %v979
    %v996 = vrsqrt.pop %v980
    %v997 = vrsqrt.pop %v981
    %v998 = vmul.f32 %v950, %v982
    %v999 = vmul.f32 %v951, %v983
    %v1000 = vmul.f32 %v952, %v984
    %v1001 = vmul.f32 %v953, %v985
    %v1002 = vmul.f32 %v954, %v986
    %v1003 = vmul.f32 %v955, %v987
    %v1004 = vmul.f32 %v956, %v988
    %v1005 = vmul.f32 %v957, %v989
    %v1006 = vmul.f32 %v958, %v990
    %v1007 = vmul.f32 %v959, %v991
    %v1008 = vmul.f32 %v960, %v992
    %v1009 = vmul.f32 %v961, %v993
    %v1010 = vmul.f32 %v962, %v994
    %v1011 = vmul.f32 %v963, %v995
    %v1012 = vmul.f32 %v964, %v996
    %v1013 = vmul.f32 %v965, %v997
    %s1014 = scalar_lea.vmem %s2, 4
    %v1015 = vld [vmem:[%s1014] sm:$0x7]
    %s1016 = scalar_lea.vmem %s1, 16
    %v1017 = vld [vmem:[%s1016] sm:$0xff]
    %v1018 = vld [vmem:[%s1016 + $0x8] sm:$0xff]
    %v1019 = vlaneseq
    %v1020 = vshrl.u32 %v1019, 7
    %v1021 = vsub.s32 0, %v1020
    %v1022 = vrot.slane %v1015, %v1021
    %v1024 = vsel %vm37, %v998, 0
    %v1027 = vsel %vm37, %v999, 0
    %v1030 = vsel %vm37, %v1000, 0
    %v1033 = vsel %vm37, %v1001, 0
    %v1036 = vsel %vm37, %v1002, 0
    %v1039 = vsel %vm37, %v1003, 0
    %v1042 = vsel %vm37, %v1004, 0
    %v1045 = vsel %vm37, %v1005, 0
    %v1048 = vsel %vm37, %v1006, 0
    %v1051 = vsel %vm37, %v1007, 0
    %v1054 = vsel %vm37, %v1008, 0
    %v1057 = vsel %vm37, %v1009, 0
    %v1060 = vsel %vm37, %v1010, 0
    %v1063 = vsel %vm37, %v1011, 0
    %v1066 = vsel %vm37, %v1012, 0
    %v1069 = vsel %vm37, %v1013, 0
    %1071 = vmatprep.subr.mxu0 0.0
    %1072 = vmatpush1.msra.mxu0 0.0
    %1073 = vmatprep.subr.mxu0 0.0
    %1074 = vmatpush1.msra.mxu0 0.0
    %1075 = vmatprep.subr.mxu0 0.0
    %1076 = vmatpush1.msra.mxu0 0.0
    %1077 = vmatprep.subr.mxu0 0.0
    %1078 = vmatpush1.msra.mxu0 0.0
    %1079 = vmatprep.subr.mxu0 0.0
    %1080 = vmatpush1.msra.mxu0 0.0
    %1081 = vmatprep.subr.mxu0 0.0
    %1082 = vmatpush1.msra.mxu0 0.0
    %1083 = vmatprep.subr.mxu0 0.0
    %1084 = vmatpush1.msra.mxu0 0.0
    %1085 = vmatprep.subr.mxu0 0.0
    %1086 = vmatpush1.msra.mxu0 0.0
    %1087 = vmatprep.subr.mxu0 0.0
    %1088 = vmatpush1.msra.mxu0 0.0
    %1089 = vmatprep.subr.mxu0 0.0
    %1090 = vmatpush1.msra.mxu0 0.0
    %1091 = vmatprep.subr.mxu0 0.0
    %1092 = vmatpush1.msra.mxu0 0.0
    %1093 = vmatprep.subr.mxu0 0.0
    %1094 = vmatpush1.msra.mxu0 0.0
    %1095 = vmatprep.subr.mxu0 0.0
    %1096 = vmatpush1.msra.mxu0 0.0
    %1097 = vmatprep.subr.mxu0 0.0
    %1098 = vmatpush1.msra.mxu0 0.0
    %1099 = vmatprep.subr.mxu0 0.0
    %1100 = vmatpush1.msra.mxu0 %v1018
    %1101 = vmatprep.subr.mxu0 0.0
    %1102 = vmatpush1.msra.mxu0 %v1017
    %1103 = vmatprep.subr.mxu0 0.0
    %1104 = vmatpush2.msra.mxu0 0.0
    %1105 = vmatprep.subr.mxu0 0.0
    %1106 = vmatpush2.msra.mxu0 0.0
    %1107 = vmatprep.subr.mxu0 0.0
    %1108 = vmatpush2.msra.mxu0 0.0
    %1109 = vmatprep.subr.mxu0 0.0
    %1110 = vmatpush2.msra.mxu0 0.0
    %1111 = vmatprep.subr.mxu0 0.0
    %1112 = vmatpush2.msra.mxu0 0.0
    %1113 = vmatprep.subr.mxu0 0.0
    %1114 = vmatpush2.msra.mxu0 0.0
    %1115 = vmatprep.subr.mxu0 0.0
    %1116 = vmatpush2.msra.mxu0 0.0
    %1117 = vmatprep.subr.mxu0 0.0
    %1118 = vmatpush2.msra.mxu0 0.0
    %1119 = vmatprep.subr.mxu0 0.0
    %1120 = vmatpush2.msra.mxu0 0.0
    %1121 = vmatprep.subr.mxu0 0.0
    %1122 = vmatpush2.msra.mxu0 0.0
    %1123 = vmatprep.subr.mxu0 0.0
    %1124 = vmatpush2.msra.mxu0 0.0
    %1125 = vmatprep.subr.mxu0 0.0
    %1126 = vmatpush2.msra.mxu0 0.0
    %1127 = vmatprep.subr.mxu0 0.0
    %1128 = vmatpush2.msra.mxu0 0.0
    %1129 = vmatprep.subr.mxu0 0.0
    %1130 = vmatpush2.msra.mxu0 0.0
    %1131 = vmatprep.subr.mxu0 0.0
    %1132 = vmatpush2.msra.mxu0 0.0
    %1133 = vmatprep.subr.mxu0 0.0
    %1134 = vmatpush2.msra.mxu0 0.0
    %1135 = vmatprep.mubr.f32.mxu0 0.0
    %1136 = vmatmul.mubr.f32.gmra.mxu0 %v1024
    %v1137 = vpop.f32.mrf.mxu0
    %v1138 = vadd.f32 %v1022, %v1137
    %v1139 = vpop.f32.mrf.mxu0
    %1140 = vmatprep.mubr.f32.mxu0 0.0
    %1141 = vmatmul.mubr.f32.gmra.mxu0 %v1027
    %v1142 = vpop.f32.mrf.mxu0
    %v1143 = vadd.f32 %v1022, %v1142
    %v1144 = vpop.f32.mrf.mxu0
    %1145 = vmatprep.mubr.f32.mxu0 0.0
    %1146 = vmatmul.mubr.f32.gmra.mxu0 %v1030
    %v1147 = vpop.f32.mrf.mxu0
    %v1148 = vadd.f32 %v1022, %v1147
    %v1149 = vpop.f32.mrf.mxu0
    %1150 = vmatprep.mubr.f32.mxu0 0.0
    %1151 = vmatmul.mubr.f32.gmra.mxu0 %v1033
    %v1152 = vpop.f32.mrf.mxu0
    %v1153 = vadd.f32 %v1022, %v1152
    %v1154 = vpop.f32.mrf.mxu0
    %1155 = vmatprep.mubr.f32.mxu0 0.0
    %1156 = vmatmul.mubr.f32.gmra.mxu0 %v1036
    %v1157 = vpop.f32.mrf.mxu0
    %v1158 = vadd.f32 %v1022, %v1157
    %v1159 = vpop.f32.mrf.mxu0
    %1160 = vmatprep.mubr.f32.mxu0 0.0
    %1161 = vmatmul.mubr.f32.gmra.mxu0 %v1039
    %v1162 = vpop.f32.mrf.mxu0
    %v1163 = vadd.f32 %v1022, %v1162
    %v1164 = vpop.f32.mrf.mxu0
    %1165 = vmatprep.mubr.f32.mxu0 0.0
    %1166 = vmatmul.mubr.f32.gmra.mxu0 %v1042
    %v1167 = vpop.f32.mrf.mxu0
    %v1168 = vadd.f32 %v1022, %v1167
    %v1169 = vpop.f32.mrf.mxu0
    %1170 = vmatprep.mubr.f32.mxu0 0.0
    %1171 = vmatmul.mubr.f32.gmra.mxu0 %v1045
    %v1172 = vpop.f32.mrf.mxu0
    %v1173 = vadd.f32 %v1022, %v1172
    %v1174 = vpop.f32.mrf.mxu0
    %1175 = vmatprep.mubr.f32.mxu0 0.0
    %1176 = vmatmul.mubr.f32.gmra.mxu0 %v1048
    %v1177 = vpop.f32.mrf.mxu0
    %v1178 = vadd.f32 %v1022, %v1177
    %v1179 = vpop.f32.mrf.mxu0
    %1180 = vmatprep.mubr.f32.mxu0 0.0
    %1181 = vmatmul.mubr.f32.gmra.mxu0 %v1051
    %v1182 = vpop.f32.mrf.mxu0
    %v1183 = vadd.f32 %v1022, %v1182
    %v1184 = vpop.f32.mrf.mxu0
    %1185 = vmatprep.mubr.f32.mxu0 0.0
    %1186 = vmatmul.mubr.f32.gmra.mxu0 %v1054
    %v1187 = vpop.f32.mrf.mxu0
    %v1188 = vadd.f32 %v1022, %v1187
    %v1189 = vpop.f32.mrf.mxu0
    %1190 = vmatprep.mubr.f32.mxu0 0.0
    %1191 = vmatmul.mubr.f32.gmra.mxu0 %v1057
    %v1192 = vpop.f32.mrf.mxu0
    %v1193 = vadd.f32 %v1022, %v1192
    %v1194 = vpop.f32.mrf.mxu0
    %1195 = vmatprep.mubr.f32.mxu0 0.0
    %1196 = vmatmul.mubr.f32.gmra.mxu0 %v1060
    %v1197 = vpop.f32.mrf.mxu0
    %v1198 = vadd.f32 %v1022, %v1197
    %v1199 = vpop.f32.mrf.mxu0
    %1200 = vmatprep.mubr.f32.mxu0 0.0
    %1201 = vmatmul.mubr.f32.gmra.mxu0 %v1063
    %v1202 = vpop.f32.mrf.mxu0
    %v1203 = vadd.f32 %v1022, %v1202
    %v1204 = vpop.f32.mrf.mxu0
    %1205 = vmatprep.mubr.f32.mxu0 0.0
    %1206 = vmatmul.mubr.f32.gmra.mxu0 %v1066
    %v1207 = vpop.f32.mrf.mxu0
    %v1208 = vadd.f32 %v1022, %v1207
    %v1209 = vpop.f32.mrf.mxu0
    %1210 = vmatprep.mubr.f32.mxu0 0.0
    %1211 = vmatmul.mubr.f32.gmra.mxu0 %v1069
    %v1212 = vpop.f32.mrf.mxu0
    %v1213 = vadd.f32 %v1022, %v1212
    %v1214 = vpop.f32.mrf.mxu0
    %1215 = vdwg.mxu0
    %v1216 = vsel %vm37, %v1138, 0.0
    %1217 = vadd.xlane.f32.xlu0 %v1216
    %v1218 = vpop.xlane.xlu0 %1217
    %v1219 = vsel %vm37, %v1143, 0.0
    %1220 = vadd.xlane.f32.xlu0 %v1219
    %v1221 = vpop.xlane.xlu0 %1220
    %v1222 = vsel %vm37, %v1148, 0.0
    %1223 = vadd.xlane.f32.xlu0 %v1222
    %v1224 = vpop.xlane.xlu0 %1223
    %v1225 = vsel %vm37, %v1153, 0.0
    %1226 = vadd.xlane.f32.xlu0 %v1225
    %v1227 = vpop.xlane.xlu0 %1226
    %v1228 = vsel %vm37, %v1158, 0.0
    %1229 = vadd.xlane.f32.xlu0 %v1228
    %v1230 = vpop.xlane.xlu0 %1229
    %v1231 = vsel %vm37, %v1163, 0.0
    %1232 = vadd.xlane.f32.xlu0 %v1231
    %v1233 = vpop.xlane.xlu0 %1232
    %v1234 = vsel %vm37, %v1168, 0.0
    %1235 = vadd.xlane.f32.xlu0 %v1234
    %v1236 = vpop.xlane.xlu0 %1235
    %v1237 = vsel %vm37, %v1173, 0.0
    %1238 = vadd.xlane.f32.xlu0 %v1237
    %v1239 = vpop.xlane.xlu0 %1238
    %v1240 = vsel %vm37, %v1178, 0.0
    %1241 = vadd.xlane.f32.xlu0 %v1240
    %v1242 = vpop.xlane.xlu0 %1241
    %v1243 = vsel %vm37, %v1183, 0.0
    %1244 = vadd.xlane.f32.xlu0 %v1243
    %v1245 = vpop.xlane.xlu0 %1244
    %v1246 = vsel %vm37, %v1188, 0.0
    %1247 = vadd.xlane.f32.xlu0 %v1246
    %v1248 = vpop.xlane.xlu0 %1247
    %v1249 = vsel %vm37, %v1193, 0.0
    %1250 = vadd.xlane.f32.xlu0 %v1249
    %v1251 = vpop.xlane.xlu0 %1250
    %v1252 = vsel %vm37, %v1198, 0.0
    %1253 = vadd.xlane.f32.xlu0 %v1252
    %v1254 = vpop.xlane.xlu0 %1253
    %v1255 = vsel %vm37, %v1203, 0.0
    %1256 = vadd.xlane.f32.xlu0 %v1255
    %v1257 = vpop.xlane.xlu0 %1256
    %v1258 = vsel %vm37, %v1208, 0.0
    %1259 = vadd.xlane.f32.xlu0 %v1258
    %v1260 = vpop.xlane.xlu0 %1259
    %v1261 = vsel %vm37, %v1213, 0.0
    %1262 = vadd.xlane.f32.xlu0 %v1261
    %v1263 = vpop.xlane.xlu0 %1262
    %v1264 = vmul.f32 %v1138, %v1138
    %v1265 = vmul.f32 %v1143, %v1143
    %v1266 = vmul.f32 %v1148, %v1148
    %v1267 = vmul.f32 %v1153, %v1153
    %v1268 = vmul.f32 %v1158, %v1158
    %v1269 = vmul.f32 %v1163, %v1163
    %v1270 = vmul.f32 %v1168, %v1168
    %v1271 = vmul.f32 %v1173, %v1173
    %v1272 = vmul.f32 %v1178, %v1178
    %v1273 = vmul.f32 %v1183, %v1183
    %v1274 = vmul.f32 %v1188, %v1188
    %v1275 = vmul.f32 %v1193, %v1193
    %v1276 = vmul.f32 %v1198, %v1198
    %v1277 = vmul.f32 %v1203, %v1203
    %v1278 = vmul.f32 %v1208, %v1208
    %v1279 = vmul.f32 %v1213, %v1213
    %v1280 = vsel %vm37, %v1264, 0.0
    %1281 = vadd.xlane.f32.xlu0 %v1280
    %v1282 = vpop.xlane.xlu0 %1281
    %v1283 = vsel %vm37, %v1265, 0.0
    %1284 = vadd.xlane.f32.xlu0 %v1283
    %v1285 = vpop.xlane.xlu0 %1284
    %v1286 = vsel %vm37, %v1266, 0.0
    %1287 = vadd.xlane.f32.xlu0 %v1286
    %v1288 = vpop.xlane.xlu0 %1287
    %v1289 = vsel %vm37, %v1267, 0.0
    %1290 = vadd.xlane.f32.xlu0 %v1289
    %v1291 = vpop.xlane.xlu0 %1290
    %v1292 = vsel %vm37, %v1268, 0.0
    %1293 = vadd.xlane.f32.xlu0 %v1292
    %v1294 = vpop.xlane.xlu0 %1293
    %v1295 = vsel %vm37, %v1269, 0.0
    %1296 = vadd.xlane.f32.xlu0 %v1295
    %v1297 = vpop.xlane.xlu0 %1296
    %v1298 = vsel %vm37, %v1270, 0.0
    %1299 = vadd.xlane.f32.xlu0 %v1298
    %v1300 = vpop.xlane.xlu0 %1299
    %v1301 = vsel %vm37, %v1271, 0.0
    %1302 = vadd.xlane.f32.xlu0 %v1301
    %v1303 = vpop.xlane.xlu0 %1302
    %v1304 = vsel %vm37, %v1272, 0.0
    %1305 = vadd.xlane.f32.xlu0 %v1304
    %v1306 = vpop.xlane.xlu0 %1305
    %v1307 = vsel %vm37, %v1273, 0.0
    %1308 = vadd.xlane.f32.xlu0 %v1307
    %v1309 = vpop.xlane.xlu0 %1308
    %v1310 = vsel %vm37, %v1274, 0.0
    %1311 = vadd.xlane.f32.xlu0 %v1310
    %v1312 = vpop.xlane.xlu0 %1311
    %v1313 = vsel %vm37, %v1275, 0.0
    %1314 = vadd.xlane.f32.xlu0 %v1313
    %v1315 = vpop.xlane.xlu0 %1314
    %v1316 = vsel %vm37, %v1276, 0.0
    %1317 = vadd.xlane.f32.xlu0 %v1316
    %v1318 = vpop.xlane.xlu0 %1317
    %v1319 = vsel %vm37, %v1277, 0.0
    %1320 = vadd.xlane.f32.xlu0 %v1319
    %v1321 = vpop.xlane.xlu0 %1320
    %v1322 = vsel %vm37, %v1278, 0.0
    %1323 = vadd.xlane.f32.xlu0 %v1322
    %v1324 = vpop.xlane.xlu0 %1323
    %v1325 = vsel %vm37, %v1279, 0.0
    %1326 = vadd.xlane.f32.xlu0 %v1325
    %v1327 = vpop.xlane.xlu0 %1326
    %v1328 = vmul.f32 %v1218, 0.0625
    %v1329 = vmul.f32 %v1221, 0.0625
    %v1330 = vmul.f32 %v1224, 0.0625
    %v1331 = vmul.f32 %v1227, 0.0625
    %v1332 = vmul.f32 %v1230, 0.0625
    %v1333 = vmul.f32 %v1233, 0.0625
    %v1334 = vmul.f32 %v1236, 0.0625
    %v1335 = vmul.f32 %v1239, 0.0625
    %v1336 = vmul.f32 %v1242, 0.0625
    %v1337 = vmul.f32 %v1245, 0.0625
    %v1338 = vmul.f32 %v1248, 0.0625
    %v1339 = vmul.f32 %v1251, 0.0625
    %v1340 = vmul.f32 %v1254, 0.0625
    %v1341 = vmul.f32 %v1257, 0.0625
    %v1342 = vmul.f32 %v1260, 0.0625
    %v1343 = vmul.f32 %v1263, 0.0625
    %v1344 = vmul.f32 %v1282, 0.0625
    %v1345 = vmul.f32 %v1285, 0.0625
    %v1346 = vmul.f32 %v1288, 0.0625
    %v1347 = vmul.f32 %v1291, 0.0625
    %v1348 = vmul.f32 %v1294, 0.0625
    %v1349 = vmul.f32 %v1297, 0.0625
    %v1350 = vmul.f32 %v1300, 0.0625
    %v1351 = vmul.f32 %v1303, 0.0625
    %v1352 = vmul.f32 %v1306, 0.0625
    %v1353 = vmul.f32 %v1309, 0.0625
    %v1354 = vmul.f32 %v1312, 0.0625
    %v1355 = vmul.f32 %v1315, 0.0625
    %v1356 = vmul.f32 %v1318, 0.0625
    %v1357 = vmul.f32 %v1321, 0.0625
    %v1358 = vmul.f32 %v1324, 0.0625
    %v1359 = vmul.f32 %v1327, 0.0625
    %v1360 = vmul.f32 %v1328, %v1328
    %v1361 = vmul.f32 %v1329, %v1329
    %v1362 = vmul.f32 %v1330, %v1330
    %v1363 = vmul.f32 %v1331, %v1331
    %v1364 = vmul.f32 %v1332, %v1332
    %v1365 = vmul.f32 %v1333, %v1333
    %v1366 = vmul.f32 %v1334, %v1334
    %v1367 = vmul.f32 %v1335, %v1335
    %v1368 = vmul.f32 %v1336, %v1336
    %v1369 = vmul.f32 %v1337, %v1337
    %v1370 = vmul.f32 %v1338, %v1338
    %v1371 = vmul.f32 %v1339, %v1339
    %v1372 = vmul.f32 %v1340, %v1340
    %v1373 = vmul.f32 %v1341, %v1341
    %v1374 = vmul.f32 %v1342, %v1342
    %v1375 = vmul.f32 %v1343, %v1343
    %v1376 = vsub.f32 %v1344, %v1360
    %v1377 = vsub.f32 %v1345, %v1361
    %v1378 = vsub.f32 %v1346, %v1362
    %v1379 = vsub.f32 %v1347, %v1363
    %v1380 = vsub.f32 %v1348, %v1364
    %v1381 = vsub.f32 %v1349, %v1365
    %v1382 = vsub.f32 %v1350, %v1366
    %v1383 = vsub.f32 %v1351, %v1367
    %v1384 = vsub.f32 %v1352, %v1368
    %v1385 = vsub.f32 %v1353, %v1369
    %v1386 = vsub.f32 %v1354, %v1370
    %v1387 = vsub.f32 %v1355, %v1371
    %v1388 = vsub.f32 %v1356, %v1372
    %v1389 = vsub.f32 %v1357, %v1373
    %v1390 = vsub.f32 %v1358, %v1374
    %v1391 = vsub.f32 %v1359, %v1375
    %v1392 = vsub.f32 %v1138, %v1328
    %v1393 = vsub.f32 %v1143, %v1329
    %v1394 = vsub.f32 %v1148, %v1330
    %v1395 = vsub.f32 %v1153, %v1331
    %v1396 = vsub.f32 %v1158, %v1332
    %v1397 = vsub.f32 %v1163, %v1333
    %v1398 = vsub.f32 %v1168, %v1334
    %v1399 = vsub.f32 %v1173, %v1335
    %v1400 = vsub.f32 %v1178, %v1336
    %v1401 = vsub.f32 %v1183, %v1337
    %v1402 = vsub.f32 %v1188, %v1338
    %v1403 = vsub.f32 %v1193, %v1339
    %v1404 = vsub.f32 %v1198, %v1340
    %v1405 = vsub.f32 %v1203, %v1341
    %v1406 = vsub.f32 %v1208, %v1342
    %v1407 = vsub.f32 %v1213, %v1343
    %v1408 = vadd.f32 %v1376, 1e-05
    %v1409 = vadd.f32 %v1377, 1e-05
    %v1410 = vadd.f32 %v1378, 1e-05
    %v1411 = vadd.f32 %v1379, 1e-05
    %v1412 = vadd.f32 %v1380, 1e-05
    %v1413 = vadd.f32 %v1381, 1e-05
    %v1414 = vadd.f32 %v1382, 1e-05
    %v1415 = vadd.f32 %v1383, 1e-05
    %v1416 = vadd.f32 %v1384, 1e-05
    %v1417 = vadd.f32 %v1385, 1e-05
    %v1418 = vadd.f32 %v1386, 1e-05
    %v1419 = vadd.f32 %v1387, 1e-05
    %v1420 = vadd.f32 %v1388, 1e-05
    %v1421 = vadd.f32 %v1389, 1e-05
    %v1422 = vadd.f32 %v1390, 1e-05
    %v1423 = vadd.f32 %v1391, 1e-05
    %v1424 = vrsqrt.pop %v1408
    %v1425 = vrsqrt.pop %v1409
    %v1426 = vrsqrt.pop %v1410
    %v1427 = vrsqrt.pop %v1411
    %v1428 = vrsqrt.pop %v1412
    %v1429 = vrsqrt.pop %v1413
    %v1430 = vrsqrt.pop %v1414
    %v1431 = vrsqrt.pop %v1415
    %v1432 = vrsqrt.pop %v1416
    %v1433 = vrsqrt.pop %v1417
    %v1434 = vrsqrt.pop %v1418
    %v1435 = vrsqrt.pop %v1419
    %v1436 = vrsqrt.pop %v1420
    %v1437 = vrsqrt.pop %v1421
    %v1438 = vrsqrt.pop %v1422
    %v1439 = vrsqrt.pop %v1423
    %v1440 = vmul.f32 %v1392, %v1424
    %v1441 = vmul.f32 %v1393, %v1425
    %v1442 = vmul.f32 %v1394, %v1426
    %v1443 = vmul.f32 %v1395, %v1427
    %v1444 = vmul.f32 %v1396, %v1428
    %v1445 = vmul.f32 %v1397, %v1429
    %v1446 = vmul.f32 %v1398, %v1430
    %v1447 = vmul.f32 %v1399, %v1431
    %v1448 = vmul.f32 %v1400, %v1432
    %v1449 = vmul.f32 %v1401, %v1433
    %v1450 = vmul.f32 %v1402, %v1434
    %v1451 = vmul.f32 %v1403, %v1435
    %v1452 = vmul.f32 %v1404, %v1436
    %v1453 = vmul.f32 %v1405, %v1437
    %v1454 = vmul.f32 %v1406, %v1438
    %v1455 = vmul.f32 %v1407, %v1439
    %v1456 = vlaneseq
    %v1457 = vshrl.u32 %v1456, 7
    %v1458 = vsub.s32 1, %v1457
    %v1459 = vrot.slane %v1015, %v1458
    %v1460 = vmul.f32 %v1440, %v1459
    %v1461 = vmul.f32 %v1441, %v1459
    %v1462 = vmul.f32 %v1442, %v1459
    %v1463 = vmul.f32 %v1443, %v1459
    %v1464 = vmul.f32 %v1444, %v1459
    %v1465 = vmul.f32 %v1445, %v1459
    %v1466 = vmul.f32 %v1446, %v1459
    %v1467 = vmul.f32 %v1447, %v1459
    %v1468 = vmul.f32 %v1448, %v1459
    %v1469 = vmul.f32 %v1449, %v1459
    %v1470 = vmul.f32 %v1450, %v1459
    %v1471 = vmul.f32 %v1451, %v1459
    %v1472 = vmul.f32 %v1452, %v1459
    %v1473 = vmul.f32 %v1453, %v1459
    %v1474 = vmul.f32 %v1454, %v1459
    %v1475 = vmul.f32 %v1455, %v1459
    %v1476 = vlaneseq
    %v1477 = vshrl.u32 %v1476, 7
    %v1478 = vsub.s32 2, %v1477
    %v1479 = vrot.slane %v1015, %v1478
    %v1480 = vadd.f32 %v1460, %v1479
    %v1481 = vadd.f32 %v1461, %v1479
    %v1482 = vadd.f32 %v1462, %v1479
    %v1483 = vadd.f32 %v1463, %v1479
    %v1484 = vadd.f32 %v1464, %v1479
    %v1485 = vadd.f32 %v1465, %v1479
    %v1486 = vadd.f32 %v1466, %v1479
    %v1487 = vadd.f32 %v1467, %v1479
    %v1488 = vadd.f32 %v1468, %v1479
    %v1489 = vadd.f32 %v1469, %v1479
    %v1490 = vadd.f32 %v1470, %v1479
    %v1491 = vadd.f32 %v1471, %v1479
    %v1492 = vadd.f32 %v1472, %v1479
    %v1493 = vadd.f32 %v1473, %v1479
    %v1494 = vadd.f32 %v1474, %v1479
    %v1495 = vadd.f32 %v1475, %v1479
    %v1496 = vmax.f32 %v1480, 0.0
    %v1497 = vmax.f32 %v1481, 0.0
    %v1498 = vmax.f32 %v1482, 0.0
    %v1499 = vmax.f32 %v1483, 0.0
    %v1500 = vmax.f32 %v1484, 0.0
    %v1501 = vmax.f32 %v1485, 0.0
    %v1502 = vmax.f32 %v1486, 0.0
    %v1503 = vmax.f32 %v1487, 0.0
    %v1504 = vmax.f32 %v1488, 0.0
    %v1505 = vmax.f32 %v1489, 0.0
    %v1506 = vmax.f32 %v1490, 0.0
    %v1507 = vmax.f32 %v1491, 0.0
    %v1508 = vmax.f32 %v1492, 0.0
    %v1509 = vmax.f32 %v1493, 0.0
    %v1510 = vmax.f32 %v1494, 0.0
    %v1511 = vmax.f32 %v1495, 0.0
    %v1512 = vadd.f32 %v38, %v41
    %v1513 = vrot.slane %v1512, 4
    %v1514 = vadd.f32 %v1512, %v1513
    %v1515 = vrot.slane %v1514, 2
    %v1516 = vadd.f32 %v1514, %v1515
    %v1517 = vrot.slane %v1516, 1
    %v1518 = vadd.f32 %v1516, %v1517
    %v1519 = vadd.f32 %v44, %v47
    %v1520 = vrot.slane %v1519, 4
    %v1521 = vadd.f32 %v1519, %v1520
    %v1522 = vrot.slane %v1521, 2
    %v1523 = vadd.f32 %v1521, %v1522
    %v1524 = vrot.slane %v1523, 1
    %v1525 = vadd.f32 %v1523, %v1524
    %v1526 = vadd.f32 %v50, %v53
    %v1527 = vrot.slane %v1526, 4
    %v1528 = vadd.f32 %v1526, %v1527
    %v1529 = vrot.slane %v1528, 2
    %v1530 = vadd.f32 %v1528, %v1529
    %v1531 = vrot.slane %v1530, 1
    %v1532 = vadd.f32 %v1530, %v1531
    %v1533 = vadd.f32 %v56, %v59
    %v1534 = vrot.slane %v1533, 4
    %v1535 = vadd.f32 %v1533, %v1534
    %v1536 = vrot.slane %v1535, 2
    %v1537 = vadd.f32 %v1535, %v1536
    %v1538 = vrot.slane %v1537, 1
    %v1539 = vadd.f32 %v1537, %v1538
    %v1540 = vadd.f32 %v62, %v65
    %v1541 = vrot.slane %v1540, 4
    %v1542 = vadd.f32 %v1540, %v1541
    %v1543 = vrot.slane %v1542, 2
    %v1544 = vadd.f32 %v1542, %v1543
    %v1545 = vrot.slane %v1544, 1
    %v1546 = vadd.f32 %v1544, %v1545
    %v1547 = vadd.f32 %v68, %v71
    %v1548 = vrot.slane %v1547, 4
    %v1549 = vadd.f32 %v1547, %v1548
    %v1550 = vrot.slane %v1549, 2
    %v1551 = vadd.f32 %v1549, %v1550
    %v1552 = vrot.slane %v1551, 1
    %v1553 = vadd.f32 %v1551, %v1552
    %v1554 = vadd.f32 %v74, %v77
    %v1555 = vrot.slane %v1554, 4
    %v1556 = vadd.f32 %v1554, %v1555
    %v1557 = vrot.slane %v1556, 2
    %v1558 = vadd.f32 %v1556, %v1557
    %v1559 = vrot.slane %v1558, 1
    %v1560 = vadd.f32 %v1558, %v1559
    %v1561 = vadd.f32 %v80, %v83
    %v1562 = vrot.slane %v1561, 4
    %v1563 = vadd.f32 %v1561, %v1562
    %v1564 = vrot.slane %v1563, 2
    %v1565 = vadd.f32 %v1563, %v1564
    %v1566 = vrot.slane %v1565, 1
    %v1567 = vadd.f32 %v1565, %v1566
    %v1568 = vadd.f32 %v102, %v105
    %v1569 = vrot.slane %v1568, 4
    %v1570 = vadd.f32 %v1568, %v1569
    %v1571 = vrot.slane %v1570, 2
    %v1572 = vadd.f32 %v1570, %v1571
    %v1573 = vrot.slane %v1572, 1
    %v1574 = vadd.f32 %v1572, %v1573
    %v1575 = vadd.f32 %v108, %v111
    %v1576 = vrot.slane %v1575, 4
    %v1577 = vadd.f32 %v1575, %v1576
    %v1578 = vrot.slane %v1577, 2
    %v1579 = vadd.f32 %v1577, %v1578
    %v1580 = vrot.slane %v1579, 1
    %v1581 = vadd.f32 %v1579, %v1580
    %v1582 = vadd.f32 %v114, %v117
    %v1583 = vrot.slane %v1582, 4
    %v1584 = vadd.f32 %v1582, %v1583
    %v1585 = vrot.slane %v1584, 2
    %v1586 = vadd.f32 %v1584, %v1585
    %v1587 = vrot.slane %v1586, 1
    %v1588 = vadd.f32 %v1586, %v1587
    %v1589 = vadd.f32 %v120, %v123
    %v1590 = vrot.slane %v1589, 4
    %v1591 = vadd.f32 %v1589, %v1590
    %v1592 = vrot.slane %v1591, 2
    %v1593 = vadd.f32 %v1591, %v1592
    %v1594 = vrot.slane %v1593, 1
    %v1595 = vadd.f32 %v1593, %v1594
    %v1596 = vadd.f32 %v126, %v129
    %v1597 = vrot.slane %v1596, 4
    %v1598 = vadd.f32 %v1596, %v1597
    %v1599 = vrot.slane %v1598, 2
    %v1600 = vadd.f32 %v1598, %v1599
    %v1601 = vrot.slane %v1600, 1
    %v1602 = vadd.f32 %v1600, %v1601
    %v1603 = vadd.f32 %v132, %v135
    %v1604 = vrot.slane %v1603, 4
    %v1605 = vadd.f32 %v1603, %v1604
    %v1606 = vrot.slane %v1605, 2
    %v1607 = vadd.f32 %v1605, %v1606
    %v1608 = vrot.slane %v1607, 1
    %v1609 = vadd.f32 %v1607, %v1608
    %v1610 = vadd.f32 %v138, %v141
    %v1611 = vrot.slane %v1610, 4
    %v1612 = vadd.f32 %v1610, %v1611
    %v1613 = vrot.slane %v1612, 2
    %v1614 = vadd.f32 %v1612, %v1613
    %v1615 = vrot.slane %v1614, 1
    %v1616 = vadd.f32 %v1614, %v1615
    %v1617 = vadd.f32 %v144, %v147
    %v1618 = vrot.slane %v1617, 4
    %v1619 = vadd.f32 %v1617, %v1618
    %v1620 = vrot.slane %v1619, 2
    %v1621 = vadd.f32 %v1619, %v1620
    %v1622 = vrot.slane %v1621, 1
    %v1623 = vadd.f32 %v1621, %v1622
    %v1624 = vmul.f32 %v1518, 0.0625
    %v1625 = vmul.f32 %v1525, 0.0625
    %v1626 = vmul.f32 %v1532, 0.0625
    %v1627 = vmul.f32 %v1539, 0.0625
    %v1628 = vmul.f32 %v1546, 0.0625
    %v1629 = vmul.f32 %v1553, 0.0625
    %v1630 = vmul.f32 %v1560, 0.0625
    %v1631 = vmul.f32 %v1567, 0.0625
    %v1632 = vmul.f32 %v1574, 0.0625
    %v1633 = vmul.f32 %v1581, 0.0625
    %v1634 = vmul.f32 %v1588, 0.0625
    %v1635 = vmul.f32 %v1595, 0.0625
    %v1636 = vmul.f32 %v1602, 0.0625
    %v1637 = vmul.f32 %v1609, 0.0625
    %v1638 = vmul.f32 %v1616, 0.0625
    %v1639 = vmul.f32 %v1623, 0.0625
    %v1640 = vmul.f32 %v1624, %v1624
    %v1641 = vmul.f32 %v1625, %v1625
    %v1642 = vmul.f32 %v1626, %v1626
    %v1643 = vmul.f32 %v1627, %v1627
    %v1644 = vmul.f32 %v1628, %v1628
    %v1645 = vmul.f32 %v1629, %v1629
    %v1646 = vmul.f32 %v1630, %v1630
    %v1647 = vmul.f32 %v1631, %v1631
    %v1648 = vsub.f32 %v1632, %v1640
    %v1649 = vsub.f32 %v1633, %v1641
    %v1650 = vsub.f32 %v1634, %v1642
    %v1651 = vsub.f32 %v1635, %v1643
    %v1652 = vsub.f32 %v1636, %v1644
    %v1653 = vsub.f32 %v1637, %v1645
    %v1654 = vsub.f32 %v1638, %v1646
    %v1655 = vsub.f32 %v1639, %v1647
    %v1656 = vsub.f32 %v21, %v1624
    %v1657 = vsub.f32 %v22, %v1624
    %v1658 = vsub.f32 %v23, %v1625
    %v1659 = vsub.f32 %v24, %v1625
    %v1660 = vsub.f32 %v25, %v1626
    %v1661 = vsub.f32 %v26, %v1626
    %v1662 = vsub.f32 %v27, %v1627
    %v1663 = vsub.f32 %v28, %v1627
    %v1664 = vsub.f32 %v29, %v1628
    %v1665 = vsub.f32 %v30, %v1628
    %v1666 = vsub.f32 %v31, %v1629
    %v1667 = vsub.f32 %v32, %v1629
    %v1668 = vsub.f32 %v33, %v1630
    %v1669 = vsub.f32 %v34, %v1630
    %v1670 = vsub.f32 %v35, %v1631
    %v1671 = vsub.f32 %v36, %v1631
    %v1672 = vadd.f32 %v1648, 1e-05
    %v1673 = vadd.f32 %v1649, 1e-05
    %v1674 = vadd.f32 %v1650, 1e-05
    %v1675 = vadd.f32 %v1651, 1e-05
    %v1676 = vadd.f32 %v1652, 1e-05
    %v1677 = vadd.f32 %v1653, 1e-05
    %v1678 = vadd.f32 %v1654, 1e-05
    %v1679 = vadd.f32 %v1655, 1e-05
    %v1680 = vrsqrt.pop %v1672
    %v1681 = vrsqrt.pop %v1673
    %v1682 = vrsqrt.pop %v1674
    %v1683 = vrsqrt.pop %v1675
    %v1684 = vrsqrt.pop %v1676
    %v1685 = vrsqrt.pop %v1677
    %v1686 = vrsqrt.pop %v1678
    %v1687 = vrsqrt.pop %v1679
    %v1688 = vmul.f32 %v1656, %v1680
    %v1689 = vmul.f32 %v1657, %v1680
    %v1690 = vmul.f32 %v1658, %v1681
    %v1691 = vmul.f32 %v1659, %v1681
    %v1692 = vmul.f32 %v1660, %v1682
    %v1693 = vmul.f32 %v1661, %v1682
    %v1694 = vmul.f32 %v1662, %v1683
    %v1695 = vmul.f32 %v1663, %v1683
    %v1696 = vmul.f32 %v1664, %v1684
    %v1697 = vmul.f32 %v1665, %v1684
    %v1698 = vmul.f32 %v1666, %v1685
    %v1699 = vmul.f32 %v1667, %v1685
    %v1700 = vmul.f32 %v1668, %v1686
    %v1701 = vmul.f32 %v1669, %v1686
    %v1702 = vmul.f32 %v1670, %v1687
    %v1703 = vmul.f32 %v1671, %v1687
    %v1704 = vld [vmem:[%s4] sm:$0xff]
    %v1705 = vld [vmem:[%s4 + $0x8] sm:$0xff]
    %v1706 = vld [vmem:[%s3] sm:$0xff]
    %v1707 = vld [vmem:[%s3 + $0x8] sm:$0xff]
    %1709 = vset.pattern.permute.xlu0 0
    %1710 = vperm.xlu0 %1709, %v1704
    %v1711 = vpop.permute.xlu0 %1710
    %1714 = vset.pattern.permute.xlu0 0
    %1715 = vperm.xlu0 %1714, %v1705
    %v1716 = vpop.permute.xlu0 %1715
    %v1719 = vsel %vm37, %v1706, 0
    %v1722 = vsel %vm37, %v1707, 0
    %1724 = vmatprep.subr.mxu0 0.0
    %1725 = vmatpush1.msra.mxu0 0.0
    %1726 = vmatprep.subr.mxu0 0.0
    %1727 = vmatpush1.msra.mxu0 0.0
    %1728 = vmatprep.subr.mxu0 0.0
    %1729 = vmatpush1.msra.mxu0 0.0
    %1730 = vmatprep.subr.mxu0 0.0
    %1731 = vmatpush1.msra.mxu0 0.0
    %1732 = vmatprep.subr.mxu0 0.0
    %1733 = vmatpush1.msra.mxu0 0.0
    %1734 = vmatprep.subr.mxu0 0.0
    %1735 = vmatpush1.msra.mxu0 0.0
    %1736 = vmatprep.subr.mxu0 0.0
    %1737 = vmatpush1.msra.mxu0 0.0
    %1738 = vmatprep.subr.mxu0 0.0
    %1739 = vmatpush1.msra.mxu0 0.0
    %1740 = vmatprep.subr.mxu0 0.0
    %1741 = vmatpush1.msra.mxu0 0.0
    %1742 = vmatprep.subr.mxu0 0.0
    %1743 = vmatpush1.msra.mxu0 0.0
    %1744 = vmatprep.subr.mxu0 0.0
    %1745 = vmatpush1.msra.mxu0 0.0
    %1746 = vmatprep.subr.mxu0 0.0
    %1747 = vmatpush1.msra.mxu0 0.0
    %1748 = vmatprep.subr.mxu0 0.0
    %1749 = vmatpush1.msra.mxu0 0.0
    %1750 = vmatprep.subr.mxu0 0.0
    %1751 = vmatpush1.msra.mxu0 0.0
    %1752 = vmatprep.subr.mxu0 0.0
    %1753 = vmatpush1.msra.mxu0 %v1689
    %1754 = vmatprep.subr.mxu0 0.0
    %1755 = vmatpush1.msra.mxu0 %v1688
    %1756 = vmatprep.subr.mxu0 0.0
    %1757 = vmatpush2.msra.mxu0 0.0
    %1758 = vmatprep.subr.mxu0 0.0
    %1759 = vmatpush2.msra.mxu0 0.0
    %1760 = vmatprep.subr.mxu0 0.0
    %1761 = vmatpush2.msra.mxu0 0.0
    %1762 = vmatprep.subr.mxu0 0.0
    %1763 = vmatpush2.msra.mxu0 0.0
    %1764 = vmatprep.subr.mxu0 0.0
    %1765 = vmatpush2.msra.mxu0 0.0
    %1766 = vmatprep.subr.mxu0 0.0
    %1767 = vmatpush2.msra.mxu0 0.0
    %1768 = vmatprep.subr.mxu0 0.0
    %1769 = vmatpush2.msra.mxu0 0.0
    %1770 = vmatprep.subr.mxu0 0.0
    %1771 = vmatpush2.msra.mxu0 0.0
    %1772 = vmatprep.subr.mxu0 0.0
    %1773 = vmatpush2.msra.mxu0 0.0
    %1774 = vmatprep.subr.mxu0 0.0
    %1775 = vmatpush2.msra.mxu0 0.0
    %1776 = vmatprep.subr.mxu0 0.0
    %1777 = vmatpush2.msra.mxu0 0.0
    %1778 = vmatprep.subr.mxu0 0.0
    %1779 = vmatpush2.msra.mxu0 0.0
    %1780 = vmatprep.subr.mxu0 0.0
    %1781 = vmatpush2.msra.mxu0 0.0
    %1782 = vmatprep.subr.mxu0 0.0
    %1783 = vmatpush2.msra.mxu0 0.0
    %1784 = vmatprep.subr.mxu0 0.0
    %1785 = vmatpush2.msra.mxu0 0.0
    %1786 = vmatprep.subr.mxu0 0.0
    %1787 = vmatpush2.msra.mxu0 0.0
    %1788 = vmatprep.mubr.f32.mxu0 0.0
    %1789 = vmatmul.mubr.f32.gmra.mxu0 %v1719
    %v1790 = vpop.f32.mrf.mxu0
    %v1791 = vadd.f32 %v1711, %v1790
    %v1792 = vpop.f32.mrf.mxu0
    %1793 = vmatprep.mubr.f32.mxu0 0.0
    %1794 = vmatmul.mubr.f32.gmra.mxu0 %v1722
    %v1795 = vpop.f32.mrf.mxu0
    %v1796 = vadd.f32 %v1716, %v1795
    %v1797 = vpop.f32.mrf.mxu0
    %1798 = vdwg.mxu0
    %1799 = vmatprep.subr.mxu0 0.0
    %1800 = vmatpush1.msra.mxu0 0.0
    %1801 = vmatprep.subr.mxu0 0.0
    %1802 = vmatpush1.msra.mxu0 0.0
    %1803 = vmatprep.subr.mxu0 0.0
    %1804 = vmatpush1.msra.mxu0 0.0
    %1805 = vmatprep.subr.mxu0 0.0
    %1806 = vmatpush1.msra.mxu0 0.0
    %1807 = vmatprep.subr.mxu0 0.0
    %1808 = vmatpush1.msra.mxu0 0.0
    %1809 = vmatprep.subr.mxu0 0.0
    %1810 = vmatpush1.msra.mxu0 0.0
    %1811 = vmatprep.subr.mxu0 0.0
    %1812 = vmatpush1.msra.mxu0 0.0
    %1813 = vmatprep.subr.mxu0 0.0
    %1814 = vmatpush1.msra.mxu0 0.0
    %1815 = vmatprep.subr.mxu0 0.0
    %1816 = vmatpush1.msra.mxu0 0.0
    %1817 = vmatprep.subr.mxu0 0.0
    %1818 = vmatpush1.msra.mxu0 0.0
    %1819 = vmatprep.subr.mxu0 0.0
    %1820 = vmatpush1.msra.mxu0 0.0
    %1821 = vmatprep.subr.mxu0 0.0
    %1822 = vmatpush1.msra.mxu0 0.0
    %1823 = vmatprep.subr.mxu0 0.0
    %1824 = vmatpush1.msra.mxu0 0.0
    %1825 = vmatprep.subr.mxu0 0.0
    %1826 = vmatpush1.msra.mxu0 0.0
    %1827 = vmatprep.subr.mxu0 0.0
    %1828 = vmatpush1.msra.mxu0 %v1691
    %1829 = vmatprep.subr.mxu0 0.0
    %1830 = vmatpush1.msra.mxu0 %v1690
    %1831 = vmatprep.subr.mxu0 0.0
    %1832 = vmatpush2.msra.mxu0 0.0
    %1833 = vmatprep.subr.mxu0 0.0
    %1834 = vmatpush2.msra.mxu0 0.0
    %1835 = vmatprep.subr.mxu0 0.0
    %1836 = vmatpush2.msra.mxu0 0.0
    %1837 = vmatprep.subr.mxu0 0.0
    %1838 = vmatpush2.msra.mxu0 0.0
    %1839 = vmatprep.subr.mxu0 0.0
    %1840 = vmatpush2.msra.mxu0 0.0
    %1841 = vmatprep.subr.mxu0 0.0
    %1842 = vmatpush2.msra.mxu0 0.0
    %1843 = vmatprep.subr.mxu0 0.0
    %1844 = vmatpush2.msra.mxu0 0.0
    %1845 = vmatprep.subr.mxu0 0.0
    %1846 = vmatpush2.msra.mxu0 0.0
    %1847 = vmatprep.subr.mxu0 0.0
    %1848 = vmatpush2.msra.mxu0 0.0
    %1849 = vmatprep.subr.mxu0 0.0
    %1850 = vmatpush2.msra.mxu0 0.0
    %1851 = vmatprep.subr.mxu0 0.0
    %1852 = vmatpush2.msra.mxu0 0.0
    %1853 = vmatprep.subr.mxu0 0.0
    %1854 = vmatpush2.msra.mxu0 0.0
    %1855 = vmatprep.subr.mxu0 0.0
    %1856 = vmatpush2.msra.mxu0 0.0
    %1857 = vmatprep.subr.mxu0 0.0
    %1858 = vmatpush2.msra.mxu0 0.0
    %1859 = vmatprep.subr.mxu0 0.0
    %1860 = vmatpush2.msra.mxu0 0.0
    %1861 = vmatprep.subr.mxu0 0.0
    %1862 = vmatpush2.msra.mxu0 0.0
    %1863 = vmatprep.mubr.f32.mxu0 0.0
    %1864 = vmatmul.mubr.f32.gmra.mxu0 %v1719
    %v1865 = vpop.f32.mrf.mxu0
    %v1866 = vadd.f32 %v1711, %v1865
    %v1867 = vpop.f32.mrf.mxu0
    %1868 = vmatprep.mubr.f32.mxu0 0.0
    %1869 = vmatmul.mubr.f32.gmra.mxu0 %v1722
    %v1870 = vpop.f32.mrf.mxu0
    %v1871 = vadd.f32 %v1716, %v1870
    %v1872 = vpop.f32.mrf.mxu0
    %1873 = vdwg.mxu0
    %1874 = vmatprep.subr.mxu0 0.0
    %1875 = vmatpush1.msra.mxu0 0.0
    %1876 = vmatprep.subr.mxu0 0.0
    %1877 = vmatpush1.msra.mxu0 0.0
    %1878 = vmatprep.subr.mxu0 0.0
    %1879 = vmatpush1.msra.mxu0 0.0
    %1880 = vmatprep.subr.mxu0 0.0
    %1881 = vmatpush1.msra.mxu0 0.0
    %1882 = vmatprep.subr.mxu0 0.0
    %1883 = vmatpush1.msra.mxu0 0.0
    %1884 = vmatprep.subr.mxu0 0.0
    %1885 = vmatpush1.msra.mxu0 0.0
    %1886 = vmatprep.subr.mxu0 0.0
    %1887 = vmatpush1.msra.mxu0 0.0
    %1888 = vmatprep.subr.mxu0 0.0
    %1889 = vmatpush1.msra.mxu0 0.0
    %1890 = vmatprep.subr.mxu0 0.0
    %1891 = vmatpush1.msra.mxu0 0.0
    %1892 = vmatprep.subr.mxu0 0.0
    %1893 = vmatpush1.msra.mxu0 0.0
    %1894 = vmatprep.subr.mxu0 0.0
    %1895 = vmatpush1.msra.mxu0 0.0
    %1896 = vmatprep.subr.mxu0 0.0
    %1897 = vmatpush1.msra.mxu0 0.0
    %1898 = vmatprep.subr.mxu0 0.0
    %1899 = vmatpush1.msra.mxu0 0.0
    %1900 = vmatprep.subr.mxu0 0.0
    %1901 = vmatpush1.msra.mxu0 0.0
    %1902 = vmatprep.subr.mxu0 0.0
    %1903 = vmatpush1.msra.mxu0 %v1693
    %1904 = vmatprep.subr.mxu0 0.0
    %1905 = vmatpush1.msra.mxu0 %v1692
    %1906 = vmatprep.subr.mxu0 0.0
    %1907 = vmatpush2.msra.mxu0 0.0
    %1908 = vmatprep.subr.mxu0 0.0
    %1909 = vmatpush2.msra.mxu0 0.0
    %1910 = vmatprep.subr.mxu0 0.0
    %1911 = vmatpush2.msra.mxu0 0.0
    %1912 = vmatprep.subr.mxu0 0.0
    %1913 = vmatpush2.msra.mxu0 0.0
    %1914 = vmatprep.subr.mxu0 0.0
    %1915 = vmatpush2.msra.mxu0 0.0
    %1916 = vmatprep.subr.mxu0 0.0
    %1917 = vmatpush2.msra.mxu0 0.0
    %1918 = vmatprep.subr.mxu0 0.0
    %1919 = vmatpush2.msra.mxu0 0.0
    %1920 = vmatprep.subr.mxu0 0.0
    %1921 = vmatpush2.msra.mxu0 0.0
    %1922 = vmatprep.subr.mxu0 0.0
    %1923 = vmatpush2.msra.mxu0 0.0
    %1924 = vmatprep.subr.mxu0 0.0
    %1925 = vmatpush2.msra.mxu0 0.0
    %1926 = vmatprep.subr.mxu0 0.0
    %1927 = vmatpush2.msra.mxu0 0.0
    %1928 = vmatprep.subr.mxu0 0.0
    %1929 = vmatpush2.msra.mxu0 0.0
    %1930 = vmatprep.subr.mxu0 0.0
    %1931 = vmatpush2.msra.mxu0 0.0
    %1932 = vmatprep.subr.mxu0 0.0
    %1933 = vmatpush2.msra.mxu0 0.0
    %1934 = vmatprep.subr.mxu0 0.0
    %1935 = vmatpush2.msra.mxu0 0.0
    %1936 = vmatprep.subr.mxu0 0.0
    %1937 = vmatpush2.msra.mxu0 0.0
    %1938 = vmatprep.mubr.f32.mxu0 0.0
    %1939 = vmatmul.mubr.f32.gmra.mxu0 %v1719
    %v1940 = vpop.f32.mrf.mxu0
    %v1941 = vadd.f32 %v1711, %v1940
    %v1942 = vpop.f32.mrf.mxu0
    %1943 = vmatprep.mubr.f32.mxu0 0.0
    %1944 = vmatmul.mubr.f32.gmra.mxu0 %v1722
    %v1945 = vpop.f32.mrf.mxu0
    %v1946 = vadd.f32 %v1716, %v1945
    %v1947 = vpop.f32.mrf.mxu0
    %1948 = vdwg.mxu0
    %1949 = vmatprep.subr.mxu0 0.0
    %1950 = vmatpush1.msra.mxu0 0.0
    %1951 = vmatprep.subr.mxu0 0.0
    %1952 = vmatpush1.msra.mxu0 0.0
    %1953 = vmatprep.subr.mxu0 0.0
    %1954 = vmatpush1.msra.mxu0 0.0
    %1955 = vmatprep.subr.mxu0 0.0
    %1956 = vmatpush1.msra.mxu0 0.0
    %1957 = vmatprep.subr.mxu0 0.0
    %1958 = vmatpush1.msra.mxu0 0.0
    %1959 = vmatprep.subr.mxu0 0.0
    %1960 = vmatpush1.msra.mxu0 0.0
    %1961 = vmatprep.subr.mxu0 0.0
    %1962 = vmatpush1.msra.mxu0 0.0
    %1963 = vmatprep.subr.mxu0 0.0
    %1964 = vmatpush1.msra.mxu0 0.0
    %1965 = vmatprep.subr.mxu0 0.0
    %1966 = vmatpush1.msra.mxu0 0.0
    %1967 = vmatprep.subr.mxu0 0.0
    %1968 = vmatpush1.msra.mxu0 0.0
    %1969 = vmatprep.subr.mxu0 0.0
    %1970 = vmatpush1.msra.mxu0 0.0
    %1971 = vmatprep.subr.mxu0 0.0
    %1972 = vmatpush1.msra.mxu0 0.0
    %1973 = vmatprep.subr.mxu0 0.0
    %1974 = vmatpush1.msra.mxu0 0.0
    %1975 = vmatprep.subr.mxu0 0.0
    %1976 = vmatpush1.msra.mxu0 0.0
    %1977 = vmatprep.subr.mxu0 0.0
    %1978 = vmatpush1.msra.mxu0 %v1695
    %1979 = vmatprep.subr.mxu0 0.0
    %1980 = vmatpush1.msra.mxu0 %v1694
    %1981 = vmatprep.subr.mxu0 0.0
    %1982 = vmatpush2.msra.mxu0 0.0
    %1983 = vmatprep.subr.mxu0 0.0
    %1984 = vmatpush2.msra.mxu0 0.0
    %1985 = vmatprep.subr.mxu0 0.0
    %1986 = vmatpush2.msra.mxu0 0.0
    %1987 = vmatprep.subr.mxu0 0.0
    %1988 = vmatpush2.msra.mxu0 0.0
    %1989 = vmatprep.subr.mxu0 0.0
    %1990 = vmatpush2.msra.mxu0 0.0
    %1991 = vmatprep.subr.mxu0 0.0
    %1992 = vmatpush2.msra.mxu0 0.0
    %1993 = vmatprep.subr.mxu0 0.0
    %1994 = vmatpush2.msra.mxu0 0.0
    %1995 = vmatprep.subr.mxu0 0.0
    %1996 = vmatpush2.msra.mxu0 0.0
    %1997 = vmatprep.subr.mxu0 0.0
    %1998 = vmatpush2.msra.mxu0 0.0
    %1999 = vmatprep.subr.mxu0 0.0
    %2000 = vmatpush2.msra.mxu0 0.0
    %2001 = vmatprep.subr.mxu0 0.0
    %2002 = vmatpush2.msra.mxu0 0.0
    %2003 = vmatprep.subr.mxu0 0.0
    %2004 = vmatpush2.msra.mxu0 0.0
    %2005 = vmatprep.subr.mxu0 0.0
    %2006 = vmatpush2.msra.mxu0 0.0
    %2007 = vmatprep.subr.mxu0 0.0
    %2008 = vmatpush2.msra.mxu0 0.0
    %2009 = vmatprep.subr.mxu0 0.0
    %2010 = vmatpush2.msra.mxu0 0.0
    %2011 = vmatprep.subr.mxu0 0.0
    %2012 = vmatpush2.msra.mxu0 0.0
    %2013 = vmatprep.mubr.f32.mxu0 0.0
    %2014 = vmatmul.mubr.f32.gmra.mxu0 %v1719
    %v2015 = vpop.f32.mrf.mxu0
    %v2016 = vadd.f32 %v1711, %v2015
    %v2017 = vpop.f32.mrf.mxu0
    %2018 = vmatprep.mubr.f32.mxu0 0.0
    %2019 = vmatmul.mubr.f32.gmra.mxu0 %v1722
    %v2020 = vpop.f32.mrf.mxu0
    %v2021 = vadd.f32 %v1716, %v2020
    %v2022 = vpop.f32.mrf.mxu0
    %2023 = vdwg.mxu0
    %2024 = vmatprep.subr.mxu0 0.0
    %2025 = vmatpush1.msra.mxu0 0.0
    %2026 = vmatprep.subr.mxu0 0.0
    %2027 = vmatpush1.msra.mxu0 0.0
    %2028 = vmatprep.subr.mxu0 0.0
    %2029 = vmatpush1.msra.mxu0 0.0
    %2030 = vmatprep.subr.mxu0 0.0
    %2031 = vmatpush1.msra.mxu0 0.0
    %2032 = vmatprep.subr.mxu0 0.0
    %2033 = vmatpush1.msra.mxu0 0.0
    %2034 = vmatprep.subr.mxu0 0.0
    %2035 = vmatpush1.msra.mxu0 0.0
    %2036 = vmatprep.subr.mxu0 0.0
    %2037 = vmatpush1.msra.mxu0 0.0
    %2038 = vmatprep.subr.mxu0 0.0
    %2039 = vmatpush1.msra.mxu0 0.0
    %2040 = vmatprep.subr.mxu0 0.0
    %2041 = vmatpush1.msra.mxu0 0.0
    %2042 = vmatprep.subr.mxu0 0.0
    %2043 = vmatpush1.msra.mxu0 0.0
    %2044 = vmatprep.subr.mxu0 0.0
    %2045 = vmatpush1.msra.mxu0 0.0
    %2046 = vmatprep.subr.mxu0 0.0
    %2047 = vmatpush1.msra.mxu0 0.0
    %2048 = vmatprep.subr.mxu0 0.0
    %2049 = vmatpush1.msra.mxu0 0.0
    %2050 = vmatprep.subr.mxu0 0.0
    %2051 = vmatpush1.msra.mxu0 0.0
    %2052 = vmatprep.subr.mxu0 0.0
    %2053 = vmatpush1.msra.mxu0 %v1697
    %2054 = vmatprep.subr.mxu0 0.0
    %2055 = vmatpush1.msra.mxu0 %v1696
    %2056 = vmatprep.subr.mxu0 0.0
    %2057 = vmatpush2.msra.mxu0 0.0
    %2058 = vmatprep.subr.mxu0 0.0
    %2059 = vmatpush2.msra.mxu0 0.0
    %2060 = vmatprep.subr.mxu0 0.0
    %2061 = vmatpush2.msra.mxu0 0.0
    %2062 = vmatprep.subr.mxu0 0.0
    %2063 = vmatpush2.msra.mxu0 0.0
    %2064 = vmatprep.subr.mxu0 0.0
    %2065 = vmatpush2.msra.mxu0 0.0
    %2066 = vmatprep.subr.mxu0 0.0
    %2067 = vmatpush2.msra.mxu0 0.0
    %2068 = vmatprep.subr.mxu0 0.0
    %2069 = vmatpush2.msra.mxu0 0.0
    %2070 = vmatprep.subr.mxu0 0.0
    %2071 = vmatpush2.msra.mxu0 0.0
    %2072 = vmatprep.subr.mxu0 0.0
    %2073 = vmatpush2.msra.mxu0 0.0
    %2074 = vmatprep.subr.mxu0 0.0
    %2075 = vmatpush2.msra.mxu0 0.0
    %2076 = vmatprep.subr.mxu0 0.0
    %2077 = vmatpush2.msra.mxu0 0.0
    %2078 = vmatprep.subr.mxu0 0.0
    %2079 = vmatpush2.msra.mxu0 0.0
    %2080 = vmatprep.subr.mxu0 0.0
    %2081 = vmatpush2.msra.mxu0 0.0
    %2082 = vmatprep.subr.mxu0 0.0
    %2083 = vmatpush2.msra.mxu0 0.0
    %2084 = vmatprep.subr.mxu0 0.0
    %2085 = vmatpush2.msra.mxu0 0.0
    %2086 = vmatprep.subr.mxu0 0.0
    %2087 = vmatpush2.msra.mxu0 0.0
    %2088 = vmatprep.mubr.f32.mxu0 0.0
    %2089 = vmatmul.mubr.f32.gmra.mxu0 %v1719
    %v2090 = vpop.f32.mrf.mxu0
    %v2091 = vadd.f32 %v1711, %v2090
    %v2092 = vpop.f32.mrf.mxu0
    %2093 = vmatprep.mubr.f32.mxu0 0.0
    %2094 = vmatmul.mubr.f32.gmra.mxu0 %v1722
    %v2095 = vpop.f32.mrf.mxu0
    %v2096 = vadd.f32 %v1716, %v2095
    %v2097 = vpop.f32.mrf.mxu0
    %2098 = vdwg.mxu0
    %2099 = vmatprep.subr.mxu0 0.0
    %2100 = vmatpush1.msra.mxu0 0.0
    %2101 = vmatprep.subr.mxu0 0.0
    %2102 = vmatpush1.msra.mxu0 0.0
    %2103 = vmatprep.subr.mxu0 0.0
    %2104 = vmatpush1.msra.mxu0 0.0
    %2105 = vmatprep.subr.mxu0 0.0
    %2106 = vmatpush1.msra.mxu0 0.0
    %2107 = vmatprep.subr.mxu0 0.0
    %2108 = vmatpush1.msra.mxu0 0.0
    %2109 = vmatprep.subr.mxu0 0.0
    %2110 = vmatpush1.msra.mxu0 0.0
    %2111 = vmatprep.subr.mxu0 0.0
    %2112 = vmatpush1.msra.mxu0 0.0
    %2113 = vmatprep.subr.mxu0 0.0
    %2114 = vmatpush1.msra.mxu0 0.0
    %2115 = vmatprep.subr.mxu0 0.0
    %2116 = vmatpush1.msra.mxu0 0.0
    %2117 = vmatprep.subr.mxu0 0.0
    %2118 = vmatpush1.msra.mxu0 0.0
    %2119 = vmatprep.subr.mxu0 0.0
    %2120 = vmatpush1.msra.mxu0 0.0
    %2121 = vmatprep.subr.mxu0 0.0
    %2122 = vmatpush1.msra.mxu0 0.0
    %2123 = vmatprep.subr.mxu0 0.0
    %2124 = vmatpush1.msra.mxu0 0.0
    %2125 = vmatprep.subr.mxu0 0.0
    %2126 = vmatpush1.msra.mxu0 0.0
    %2127 = vmatprep.subr.mxu0 0.0
    %2128 = vmatpush1.msra.mxu0 %v1699
    %2129 = vmatprep.subr.mxu0 0.0
    %2130 = vmatpush1.msra.mxu0 %v1698
    %2131 = vmatprep.subr.mxu0 0.0
    %2132 = vmatpush2.msra.mxu0 0.0
    %2133 = vmatprep.subr.mxu0 0.0
    %2134 = vmatpush2.msra.mxu0 0.0
    %2135 = vmatprep.subr.mxu0 0.0
    %2136 = vmatpush2.msra.mxu0 0.0
    %2137 = vmatprep.subr.mxu0 0.0
    %2138 = vmatpush2.msra.mxu0 0.0
    %2139 = vmatprep.subr.mxu0 0.0
    %2140 = vmatpush2.msra.mxu0 0.0
    %2141 = vmatprep.subr.mxu0 0.0
    %2142 = vmatpush2.msra.mxu0 0.0
    %2143 = vmatprep.subr.mxu0 0.0
    %2144 = vmatpush2.msra.mxu0 0.0
    %2145 = vmatprep.subr.mxu0 0.0
    %2146 = vmatpush2.msra.mxu0 0.0
    %2147 = vmatprep.subr.mxu0 0.0
    %2148 = vmatpush2.msra.mxu0 0.0
    %2149 = vmatprep.subr.mxu0 0.0
    %2150 = vmatpush2.msra.mxu0 0.0
    %2151 = vmatprep.subr.mxu0 0.0
    %2152 = vmatpush2.msra.mxu0 0.0
    %2153 = vmatprep.subr.mxu0 0.0
    %2154 = vmatpush2.msra.mxu0 0.0
    %2155 = vmatprep.subr.mxu0 0.0
    %2156 = vmatpush2.msra.mxu0 0.0
    %2157 = vmatprep.subr.mxu0 0.0
    %2158 = vmatpush2.msra.mxu0 0.0
    %2159 = vmatprep.subr.mxu0 0.0
    %2160 = vmatpush2.msra.mxu0 0.0
    %2161 = vmatprep.subr.mxu0 0.0
    %2162 = vmatpush2.msra.mxu0 0.0
    %2163 = vmatprep.mubr.f32.mxu0 0.0
    %2164 = vmatmul.mubr.f32.gmra.mxu0 %v1719
    %v2165 = vpop.f32.mrf.mxu0
    %v2166 = vadd.f32 %v1711, %v2165
    %v2167 = vpop.f32.mrf.mxu0
    %2168 = vmatprep.mubr.f32.mxu0 0.0
    %2169 = vmatmul.mubr.f32.gmra.mxu0 %v1722
    %v2170 = vpop.f32.mrf.mxu0
    %v2171 = vadd.f32 %v1716, %v2170
    %v2172 = vpop.f32.mrf.mxu0
    %2173 = vdwg.mxu0
    %2174 = vmatprep.subr.mxu0 0.0
    %2175 = vmatpush1.msra.mxu0 0.0
    %2176 = vmatprep.subr.mxu0 0.0
    %2177 = vmatpush1.msra.mxu0 0.0
    %2178 = vmatprep.subr.mxu0 0.0
    %2179 = vmatpush1.msra.mxu0 0.0
    %2180 = vmatprep.subr.mxu0 0.0
    %2181 = vmatpush1.msra.mxu0 0.0
    %2182 = vmatprep.subr.mxu0 0.0
    %2183 = vmatpush1.msra.mxu0 0.0
    %2184 = vmatprep.subr.mxu0 0.0
    %2185 = vmatpush1.msra.mxu0 0.0
    %2186 = vmatprep.subr.mxu0 0.0
    %2187 = vmatpush1.msra.mxu0 0.0
    %2188 = vmatprep.subr.mxu0 0.0
    %2189 = vmatpush1.msra.mxu0 0.0
    %2190 = vmatprep.subr.mxu0 0.0
    %2191 = vmatpush1.msra.mxu0 0.0
    %2192 = vmatprep.subr.mxu0 0.0
    %2193 = vmatpush1.msra.mxu0 0.0
    %2194 = vmatprep.subr.mxu0 0.0
    %2195 = vmatpush1.msra.mxu0 0.0
    %2196 = vmatprep.subr.mxu0 0.0
    %2197 = vmatpush1.msra.mxu0 0.0
    %2198 = vmatprep.subr.mxu0 0.0
    %2199 = vmatpush1.msra.mxu0 0.0
    %2200 = vmatprep.subr.mxu0 0.0
    %2201 = vmatpush1.msra.mxu0 0.0
    %2202 = vmatprep.subr.mxu0 0.0
    %2203 = vmatpush1.msra.mxu0 %v1701
    %2204 = vmatprep.subr.mxu0 0.0
    %2205 = vmatpush1.msra.mxu0 %v1700
    %2206 = vmatprep.subr.mxu0 0.0
    %2207 = vmatpush2.msra.mxu0 0.0
    %2208 = vmatprep.subr.mxu0 0.0
    %2209 = vmatpush2.msra.mxu0 0.0
    %2210 = vmatprep.subr.mxu0 0.0
    %2211 = vmatpush2.msra.mxu0 0.0
    %2212 = vmatprep.subr.mxu0 0.0
    %2213 = vmatpush2.msra.mxu0 0.0
    %2214 = vmatprep.subr.mxu0 0.0
    %2215 = vmatpush2.msra.mxu0 0.0
    %2216 = vmatprep.subr.mxu0 0.0
    %2217 = vmatpush2.msra.mxu0 0.0
    %2218 = vmatprep.subr.mxu0 0.0
    %2219 = vmatpush2.msra.mxu0 0.0
    %2220 = vmatprep.subr.mxu0 0.0
    %2221 = vmatpush2.msra.mxu0 0.0
    %2222 = vmatprep.subr.mxu0 0.0
    %2223 = vmatpush2.msra.mxu0 0.0
    %2224 = vmatprep.subr.mxu0 0.0
    %2225 = vmatpush2.msra.mxu0 0.0
    %2226 = vmatprep.subr.mxu0 0.0
    %2227 = vmatpush2.msra.mxu0 0.0
    %2228 = vmatprep.subr.mxu0 0.0
    %2229 = vmatpush2.msra.mxu0 0.0
    %2230 = vmatprep.subr.mxu0 0.0
    %2231 = vmatpush2.msra.mxu0 0.0
    %2232 = vmatprep.subr.mxu0 0.0
    %2233 = vmatpush2.msra.mxu0 0.0
    %2234 = vmatprep.subr.mxu0 0.0
    %2235 = vmatpush2.msra.mxu0 0.0
    %2236 = vmatprep.subr.mxu0 0.0
    %2237 = vmatpush2.msra.mxu0 0.0
    %2238 = vmatprep.mubr.f32.mxu0 0.0
    %2239 = vmatmul.mubr.f32.gmra.mxu0 %v1719
    %v2240 = vpop.f32.mrf.mxu0
    %v2241 = vadd.f32 %v1711, %v2240
    %v2242 = vpop.f32.mrf.mxu0
    %2243 = vmatprep.mubr.f32.mxu0 0.0
    %2244 = vmatmul.mubr.f32.gmra.mxu0 %v1722
    %v2245 = vpop.f32.mrf.mxu0
    %v2246 = vadd.f32 %v1716, %v2245
    %v2247 = vpop.f32.mrf.mxu0
    %2248 = vdwg.mxu0
    %2249 = vmatprep.subr.mxu0 0.0
    %2250 = vmatpush1.msra.mxu0 0.0
    %2251 = vmatprep.subr.mxu0 0.0
    %2252 = vmatpush1.msra.mxu0 0.0
    %2253 = vmatprep.subr.mxu0 0.0
    %2254 = vmatpush1.msra.mxu0 0.0
    %2255 = vmatprep.subr.mxu0 0.0
    %2256 = vmatpush1.msra.mxu0 0.0
    %2257 = vmatprep.subr.mxu0 0.0
    %2258 = vmatpush1.msra.mxu0 0.0
    %2259 = vmatprep.subr.mxu0 0.0
    %2260 = vmatpush1.msra.mxu0 0.0
    %2261 = vmatprep.subr.mxu0 0.0
    %2262 = vmatpush1.msra.mxu0 0.0
    %2263 = vmatprep.subr.mxu0 0.0
    %2264 = vmatpush1.msra.mxu0 0.0
    %2265 = vmatprep.subr.mxu0 0.0
    %2266 = vmatpush1.msra.mxu0 0.0
    %2267 = vmatprep.subr.mxu0 0.0
    %2268 = vmatpush1.msra.mxu0 0.0
    %2269 = vmatprep.subr.mxu0 0.0
    %2270 = vmatpush1.msra.mxu0 0.0
    %2271 = vmatprep.subr.mxu0 0.0
    %2272 = vmatpush1.msra.mxu0 0.0
    %2273 = vmatprep.subr.mxu0 0.0
    %2274 = vmatpush1.msra.mxu0 0.0
    %2275 = vmatprep.subr.mxu0 0.0
    %2276 = vmatpush1.msra.mxu0 0.0
    %2277 = vmatprep.subr.mxu0 0.0
    %2278 = vmatpush1.msra.mxu0 %v1703
    %2279 = vmatprep.subr.mxu0 0.0
    %2280 = vmatpush1.msra.mxu0 %v1702
    %2281 = vmatprep.subr.mxu0 0.0
    %2282 = vmatpush2.msra.mxu0 0.0
    %2283 = vmatprep.subr.mxu0 0.0
    %2284 = vmatpush2.msra.mxu0 0.0
    %2285 = vmatprep.subr.mxu0 0.0
    %2286 = vmatpush2.msra.mxu0 0.0
    %2287 = vmatprep.subr.mxu0 0.0
    %2288 = vmatpush2.msra.mxu0 0.0
    %2289 = vmatprep.subr.mxu0 0.0
    %2290 = vmatpush2.msra.mxu0 0.0
    %2291 = vmatprep.subr.mxu0 0.0
    %2292 = vmatpush2.msra.mxu0 0.0
    %2293 = vmatprep.subr.mxu0 0.0
    %2294 = vmatpush2.msra.mxu0 0.0
    %2295 = vmatprep.subr.mxu0 0.0
    %2296 = vmatpush2.msra.mxu0 0.0
    %2297 = vmatprep.subr.mxu0 0.0
    %2298 = vmatpush2.msra.mxu0 0.0
    %2299 = vmatprep.subr.mxu0 0.0
    %2300 = vmatpush2.msra.mxu0 0.0
    %2301 = vmatprep.subr.mxu0 0.0
    %2302 = vmatpush2.msra.mxu0 0.0
    %2303 = vmatprep.subr.mxu0 0.0
    %2304 = vmatpush2.msra.mxu0 0.0
    %2305 = vmatprep.subr.mxu0 0.0
    %2306 = vmatpush2.msra.mxu0 0.0
    %2307 = vmatprep.subr.mxu0 0.0
    %2308 = vmatpush2.msra.mxu0 0.0
    %2309 = vmatprep.subr.mxu0 0.0
    %2310 = vmatpush2.msra.mxu0 0.0
    %2311 = vmatprep.subr.mxu0 0.0
    %2312 = vmatpush2.msra.mxu0 0.0
    %2313 = vmatprep.mubr.f32.mxu0 0.0
    %2314 = vmatmul.mubr.f32.gmra.mxu0 %v1719
    %v2315 = vpop.f32.mrf.mxu0
    %v2316 = vadd.f32 %v1711, %v2315
    %v2317 = vpop.f32.mrf.mxu0
    %2318 = vmatprep.mubr.f32.mxu0 0.0
    %2319 = vmatmul.mubr.f32.gmra.mxu0 %v1722
    %v2320 = vpop.f32.mrf.mxu0
    %v2321 = vadd.f32 %v1716, %v2320
    %v2322 = vpop.f32.mrf.mxu0
    %2323 = vdwg.mxu0
    %v2324 = vsel %vm37, %v1791, 0.0
    %v2325 = vsel %vm37, %v1796, 0.0
    %v2326 = vadd.f32 %v2324, %v2325
    %v2327 = vrot.slane %v2326, 4
    %v2328 = vadd.f32 %v2326, %v2327
    %v2329 = vrot.slane %v2328, 2
    %v2330 = vadd.f32 %v2328, %v2329
    %v2331 = vrot.slane %v2330, 1
    %v2332 = vadd.f32 %v2330, %v2331
    %v2333 = vsel %vm37, %v1866, 0.0
    %v2334 = vsel %vm37, %v1871, 0.0
    %v2335 = vadd.f32 %v2333, %v2334
    %v2336 = vrot.slane %v2335, 4
    %v2337 = vadd.f32 %v2335, %v2336
    %v2338 = vrot.slane %v2337, 2
    %v2339 = vadd.f32 %v2337, %v2338
    %v2340 = vrot.slane %v2339, 1
    %v2341 = vadd.f32 %v2339, %v2340
    %v2342 = vsel %vm37, %v1941, 0.0
    %v2343 = vsel %vm37, %v1946, 0.0
    %v2344 = vadd.f32 %v2342, %v2343
    %v2345 = vrot.slane %v2344, 4
    %v2346 = vadd.f32 %v2344, %v2345
    %v2347 = vrot.slane %v2346, 2
    %v2348 = vadd.f32 %v2346, %v2347
    %v2349 = vrot.slane %v2348, 1
    %v2350 = vadd.f32 %v2348, %v2349
    %v2351 = vsel %vm37, %v2016, 0.0
    %v2352 = vsel %vm37, %v2021, 0.0
    %v2353 = vadd.f32 %v2351, %v2352
    %v2354 = vrot.slane %v2353, 4
    %v2355 = vadd.f32 %v2353, %v2354
    %v2356 = vrot.slane %v2355, 2
    %v2357 = vadd.f32 %v2355, %v2356
    %v2358 = vrot.slane %v2357, 1
    %v2359 = vadd.f32 %v2357, %v2358
    %v2360 = vsel %vm37, %v2091, 0.0
    %v2361 = vsel %vm37, %v2096, 0.0
    %v2362 = vadd.f32 %v2360, %v2361
    %v2363 = vrot.slane %v2362, 4
    %v2364 = vadd.f32 %v2362, %v2363
    %v2365 = vrot.slane %v2364, 2
    %v2366 = vadd.f32 %v2364, %v2365
    %v2367 = vrot.slane %v2366, 1
    %v2368 = vadd.f32 %v2366, %v2367
    %v2369 = vsel %vm37, %v2166, 0.0
    %v2370 = vsel %vm37, %v2171, 0.0
    %v2371 = vadd.f32 %v2369, %v2370
    %v2372 = vrot.slane %v2371, 4
    %v2373 = vadd.f32 %v2371, %v2372
    %v2374 = vrot.slane %v2373, 2
    %v2375 = vadd.f32 %v2373, %v2374
    %v2376 = vrot.slane %v2375, 1
    %v2377 = vadd.f32 %v2375, %v2376
    %v2378 = vsel %vm37, %v2241, 0.0
    %v2379 = vsel %vm37, %v2246, 0.0
    %v2380 = vadd.f32 %v2378, %v2379
    %v2381 = vrot.slane %v2380, 4
    %v2382 = vadd.f32 %v2380, %v2381
    %v2383 = vrot.slane %v2382, 2
    %v2384 = vadd.f32 %v2382, %v2383
    %v2385 = vrot.slane %v2384, 1
    %v2386 = vadd.f32 %v2384, %v2385
    %v2387 = vsel %vm37, %v2316, 0.0
    %v2388 = vsel %vm37, %v2321, 0.0
    %v2389 = vadd.f32 %v2387, %v2388
    %v2390 = vrot.slane %v2389, 4
    %v2391 = vadd.f32 %v2389, %v2390
    %v2392 = vrot.slane %v2391, 2
    %v2393 = vadd.f32 %v2391, %v2392
    %v2394 = vrot.slane %v2393, 1
    %v2395 = vadd.f32 %v2393, %v2394
    %v2396 = vmul.f32 %v1791, %v1791
    %v2397 = vmul.f32 %v1796, %v1796
    %v2398 = vmul.f32 %v1866, %v1866
    %v2399 = vmul.f32 %v1871, %v1871
    %v2400 = vmul.f32 %v1941, %v1941
    %v2401 = vmul.f32 %v1946, %v1946
    %v2402 = vmul.f32 %v2016, %v2016
    %v2403 = vmul.f32 %v2021, %v2021
    %v2404 = vmul.f32 %v2091, %v2091
    %v2405 = vmul.f32 %v2096, %v2096
    %v2406 = vmul.f32 %v2166, %v2166
    %v2407 = vmul.f32 %v2171, %v2171
    %v2408 = vmul.f32 %v2241, %v2241
    %v2409 = vmul.f32 %v2246, %v2246
    %v2410 = vmul.f32 %v2316, %v2316
    %v2411 = vmul.f32 %v2321, %v2321
    %v2412 = vsel %vm37, %v2396, 0.0
    %v2413 = vsel %vm37, %v2397, 0.0
    %v2414 = vadd.f32 %v2412, %v2413
    %v2415 = vrot.slane %v2414, 4
    %v2416 = vadd.f32 %v2414, %v2415
    %v2417 = vrot.slane %v2416, 2
    %v2418 = vadd.f32 %v2416, %v2417
    %v2419 = vrot.slane %v2418, 1
    %v2420 = vadd.f32 %v2418, %v2419
    %v2421 = vsel %vm37, %v2398, 0.0
    %v2422 = vsel %vm37, %v2399, 0.0
    %v2423 = vadd.f32 %v2421, %v2422
    %v2424 = vrot.slane %v2423, 4
    %v2425 = vadd.f32 %v2423, %v2424
    %v2426 = vrot.slane %v2425, 2
    %v2427 = vadd.f32 %v2425, %v2426
    %v2428 = vrot.slane %v2427, 1
    %v2429 = vadd.f32 %v2427, %v2428
    %v2430 = vsel %vm37, %v2400, 0.0
    %v2431 = vsel %vm37, %v2401, 0.0
    %v2432 = vadd.f32 %v2430, %v2431
    %v2433 = vrot.slane %v2432, 4
    %v2434 = vadd.f32 %v2432, %v2433
    %v2435 = vrot.slane %v2434, 2
    %v2436 = vadd.f32 %v2434, %v2435
    %v2437 = vrot.slane %v2436, 1
    %v2438 = vadd.f32 %v2436, %v2437
    %v2439 = vsel %vm37, %v2402, 0.0
    %v2440 = vsel %vm37, %v2403, 0.0
    %v2441 = vadd.f32 %v2439, %v2440
    %v2442 = vrot.slane %v2441, 4
    %v2443 = vadd.f32 %v2441, %v2442
    %v2444 = vrot.slane %v2443, 2
    %v2445 = vadd.f32 %v2443, %v2444
    %v2446 = vrot.slane %v2445, 1
    %v2447 = vadd.f32 %v2445, %v2446
    %v2448 = vsel %vm37, %v2404, 0.0
    %v2449 = vsel %vm37, %v2405, 0.0
    %v2450 = vadd.f32 %v2448, %v2449
    %v2451 = vrot.slane %v2450, 4
    %v2452 = vadd.f32 %v2450, %v2451
    %v2453 = vrot.slane %v2452, 2
    %v2454 = vadd.f32 %v2452, %v2453
    %v2455 = vrot.slane %v2454, 1
    %v2456 = vadd.f32 %v2454, %v2455
    %v2457 = vsel %vm37, %v2406, 0.0
    %v2458 = vsel %vm37, %v2407, 0.0
    %v2459 = vadd.f32 %v2457, %v2458
    %v2460 = vrot.slane %v2459, 4
    %v2461 = vadd.f32 %v2459, %v2460
    %v2462 = vrot.slane %v2461, 2
    %v2463 = vadd.f32 %v2461, %v2462
    %v2464 = vrot.slane %v2463, 1
    %v2465 = vadd.f32 %v2463, %v2464
    %v2466 = vsel %vm37, %v2408, 0.0
    %v2467 = vsel %vm37, %v2409, 0.0
    %v2468 = vadd.f32 %v2466, %v2467
    %v2469 = vrot.slane %v2468, 4
    %v2470 = vadd.f32 %v2468, %v2469
    %v2471 = vrot.slane %v2470, 2
    %v2472 = vadd.f32 %v2470, %v2471
    %v2473 = vrot.slane %v2472, 1
    %v2474 = vadd.f32 %v2472, %v2473
    %v2475 = vsel %vm37, %v2410, 0.0
    %v2476 = vsel %vm37, %v2411, 0.0
    %v2477 = vadd.f32 %v2475, %v2476
    %v2478 = vrot.slane %v2477, 4
    %v2479 = vadd.f32 %v2477, %v2478
    %v2480 = vrot.slane %v2479, 2
    %v2481 = vadd.f32 %v2479, %v2480
    %v2482 = vrot.slane %v2481, 1
    %v2483 = vadd.f32 %v2481, %v2482
    %v2484 = vmul.f32 %v2332, 0.0625
    %v2485 = vmul.f32 %v2341, 0.0625
    %v2486 = vmul.f32 %v2350, 0.0625
    %v2487 = vmul.f32 %v2359, 0.0625
    %v2488 = vmul.f32 %v2368, 0.0625
    %v2489 = vmul.f32 %v2377, 0.0625
    %v2490 = vmul.f32 %v2386, 0.0625
    %v2491 = vmul.f32 %v2395, 0.0625
    %v2492 = vmul.f32 %v2420, 0.0625
    %v2493 = vmul.f32 %v2429, 0.0625
    %v2494 = vmul.f32 %v2438, 0.0625
    %v2495 = vmul.f32 %v2447, 0.0625
    %v2496 = vmul.f32 %v2456, 0.0625
    %v2497 = vmul.f32 %v2465, 0.0625
    %v2498 = vmul.f32 %v2474, 0.0625
    %v2499 = vmul.f32 %v2483, 0.0625
    %v2500 = vmul.f32 %v2484, %v2484
    %v2501 = vmul.f32 %v2485, %v2485
    %v2502 = vmul.f32 %v2486, %v2486
    %v2503 = vmul.f32 %v2487, %v2487
    %v2504 = vmul.f32 %v2488, %v2488
    %v2505 = vmul.f32 %v2489, %v2489
    %v2506 = vmul.f32 %v2490, %v2490
    %v2507 = vmul.f32 %v2491, %v2491
    %v2508 = vsub.f32 %v2492, %v2500
    %v2509 = vsub.f32 %v2493, %v2501
    %v2510 = vsub.f32 %v2494, %v2502
    %v2511 = vsub.f32 %v2495, %v2503
    %v2512 = vsub.f32 %v2496, %v2504
    %v2513 = vsub.f32 %v2497, %v2505
    %v2514 = vsub.f32 %v2498, %v2506
    %v2515 = vsub.f32 %v2499, %v2507
    %v2516 = vsub.f32 %v1791, %v2484
    %v2517 = vsub.f32 %v1796, %v2484
    %v2518 = vsub.f32 %v1866, %v2485
    %v2519 = vsub.f32 %v1871, %v2485
    %v2520 = vsub.f32 %v1941, %v2486
    %v2521 = vsub.f32 %v1946, %v2486
    %v2522 = vsub.f32 %v2016, %v2487
    %v2523 = vsub.f32 %v2021, %v2487
    %v2524 = vsub.f32 %v2091, %v2488
    %v2525 = vsub.f32 %v2096, %v2488
    %v2526 = vsub.f32 %v2166, %v2489
    %v2527 = vsub.f32 %v2171, %v2489
    %v2528 = vsub.f32 %v2241, %v2490
    %v2529 = vsub.f32 %v2246, %v2490
    %v2530 = vsub.f32 %v2316, %v2491
    %v2531 = vsub.f32 %v2321, %v2491
    %v2532 = vadd.f32 %v2508, 1e-05
    %v2533 = vadd.f32 %v2509, 1e-05
    %v2534 = vadd.f32 %v2510, 1e-05
    %v2535 = vadd.f32 %v2511, 1e-05
    %v2536 = vadd.f32 %v2512, 1e-05
    %v2537 = vadd.f32 %v2513, 1e-05
    %v2538 = vadd.f32 %v2514, 1e-05
    %v2539 = vadd.f32 %v2515, 1e-05
    %v2540 = vrsqrt.pop %v2532
    %v2541 = vrsqrt.pop %v2533
    %v2542 = vrsqrt.pop %v2534
    %v2543 = vrsqrt.pop %v2535
    %v2544 = vrsqrt.pop %v2536
    %v2545 = vrsqrt.pop %v2537
    %v2546 = vrsqrt.pop %v2538
    %v2547 = vrsqrt.pop %v2539
    %v2548 = vmul.f32 %v2516, %v2540
    %v2549 = vmul.f32 %v2517, %v2540
    %v2550 = vmul.f32 %v2518, %v2541
    %v2551 = vmul.f32 %v2519, %v2541
    %v2552 = vmul.f32 %v2520, %v2542
    %v2553 = vmul.f32 %v2521, %v2542
    %v2554 = vmul.f32 %v2522, %v2543
    %v2555 = vmul.f32 %v2523, %v2543
    %v2556 = vmul.f32 %v2524, %v2544
    %v2557 = vmul.f32 %v2525, %v2544
    %v2558 = vmul.f32 %v2526, %v2545
    %v2559 = vmul.f32 %v2527, %v2545
    %v2560 = vmul.f32 %v2528, %v2546
    %v2561 = vmul.f32 %v2529, %v2546
    %v2562 = vmul.f32 %v2530, %v2547
    %v2563 = vmul.f32 %v2531, %v2547
    %2564 = vset.pattern.permute.xlu0 1
    %2565 = vperm.xlu0 %2564, %v1704
    %v2566 = vpop.permute.xlu0 %2565
    %2568 = vset.pattern.permute.xlu0 1
    %2569 = vperm.xlu0 %2568, %v1705
    %v2570 = vpop.permute.xlu0 %2569
    %v2572 = vmul.f32 %v2548, %v2566
    %v2573 = vmul.f32 %v2549, %v2570
    %v2574 = vmul.f32 %v2550, %v2566
    %v2575 = vmul.f32 %v2551, %v2570
    %v2576 = vmul.f32 %v2552, %v2566
    %v2577 = vmul.f32 %v2553, %v2570
    %v2578 = vmul.f32 %v2554, %v2566
    %v2579 = vmul.f32 %v2555, %v2570
    %v2580 = vmul.f32 %v2556, %v2566
    %v2581 = vmul.f32 %v2557, %v2570
    %v2582 = vmul.f32 %v2558, %v2566
    %v2583 = vmul.f32 %v2559, %v2570
    %v2584 = vmul.f32 %v2560, %v2566
    %v2585 = vmul.f32 %v2561, %v2570
    %v2586 = vmul.f32 %v2562, %v2566
    %v2587 = vmul.f32 %v2563, %v2570
    %2588 = vset.pattern.permute.xlu0 2
    %2589 = vperm.xlu0 %2588, %v1704
    %v2590 = vpop.permute.xlu0 %2589
    %2592 = vset.pattern.permute.xlu0 2
    %2593 = vperm.xlu0 %2592, %v1705
    %v2594 = vpop.permute.xlu0 %2593
    %v2596 = vadd.f32 %v2572, %v2590
    %v2597 = vadd.f32 %v2573, %v2594
    %v2598 = vadd.f32 %v2574, %v2590
    %v2599 = vadd.f32 %v2575, %v2594
    %v2600 = vadd.f32 %v2576, %v2590
    %v2601 = vadd.f32 %v2577, %v2594
    %v2602 = vadd.f32 %v2578, %v2590
    %v2603 = vadd.f32 %v2579, %v2594
    %v2604 = vadd.f32 %v2580, %v2590
    %v2605 = vadd.f32 %v2581, %v2594
    %v2606 = vadd.f32 %v2582, %v2590
    %v2607 = vadd.f32 %v2583, %v2594
    %v2608 = vadd.f32 %v2584, %v2590
    %v2609 = vadd.f32 %v2585, %v2594
    %v2610 = vadd.f32 %v2586, %v2590
    %v2611 = vadd.f32 %v2587, %v2594
    %v2612 = vmax.f32 %v2596, 0.0
    %v2613 = vmax.f32 %v2597, 0.0
    %v2614 = vmax.f32 %v2598, 0.0
    %v2615 = vmax.f32 %v2599, 0.0
    %v2616 = vmax.f32 %v2600, 0.0
    %v2617 = vmax.f32 %v2601, 0.0
    %v2618 = vmax.f32 %v2602, 0.0
    %v2619 = vmax.f32 %v2603, 0.0
    %v2620 = vmax.f32 %v2604, 0.0
    %v2621 = vmax.f32 %v2605, 0.0
    %v2622 = vmax.f32 %v2606, 0.0
    %v2623 = vmax.f32 %v2607, 0.0
    %v2624 = vmax.f32 %v2608, 0.0
    %v2625 = vmax.f32 %v2609, 0.0
    %v2626 = vmax.f32 %v2610, 0.0
    %v2627 = vmax.f32 %v2611, 0.0
    %v2628 = vsel %vm37, %v2612, 0.0
    %v2629 = vsel %vm37, %v2613, 0.0
    %v2630 = vadd.f32 %v2628, %v2629
    %v2631 = vrot.slane %v2630, 4
    %v2632 = vadd.f32 %v2630, %v2631
    %v2633 = vrot.slane %v2632, 2
    %v2634 = vadd.f32 %v2632, %v2633
    %v2635 = vrot.slane %v2634, 1
    %v2636 = vadd.f32 %v2634, %v2635
    %v2637 = vsel %vm37, %v2614, 0.0
    %v2638 = vsel %vm37, %v2615, 0.0
    %v2639 = vadd.f32 %v2637, %v2638
    %v2640 = vrot.slane %v2639, 4
    %v2641 = vadd.f32 %v2639, %v2640
    %v2642 = vrot.slane %v2641, 2
    %v2643 = vadd.f32 %v2641, %v2642
    %v2644 = vrot.slane %v2643, 1
    %v2645 = vadd.f32 %v2643, %v2644
    %v2646 = vsel %vm37, %v2616, 0.0
    %v2647 = vsel %vm37, %v2617, 0.0
    %v2648 = vadd.f32 %v2646, %v2647
    %v2649 = vrot.slane %v2648, 4
    %v2650 = vadd.f32 %v2648, %v2649
    %v2651 = vrot.slane %v2650, 2
    %v2652 = vadd.f32 %v2650, %v2651
    %v2653 = vrot.slane %v2652, 1
    %v2654 = vadd.f32 %v2652, %v2653
    %v2655 = vsel %vm37, %v2618, 0.0
    %v2656 = vsel %vm37, %v2619, 0.0
    %v2657 = vadd.f32 %v2655, %v2656
    %v2658 = vrot.slane %v2657, 4
    %v2659 = vadd.f32 %v2657, %v2658
    %v2660 = vrot.slane %v2659, 2
    %v2661 = vadd.f32 %v2659, %v2660
    %v2662 = vrot.slane %v2661, 1
    %v2663 = vadd.f32 %v2661, %v2662
    %v2664 = vsel %vm37, %v2620, 0.0
    %v2665 = vsel %vm37, %v2621, 0.0
    %v2666 = vadd.f32 %v2664, %v2665
    %v2667 = vrot.slane %v2666, 4
    %v2668 = vadd.f32 %v2666, %v2667
    %v2669 = vrot.slane %v2668, 2
    %v2670 = vadd.f32 %v2668, %v2669
    %v2671 = vrot.slane %v2670, 1
    %v2672 = vadd.f32 %v2670, %v2671
    %v2673 = vsel %vm37, %v2622, 0.0
    %v2674 = vsel %vm37, %v2623, 0.0
    %v2675 = vadd.f32 %v2673, %v2674
    %v2676 = vrot.slane %v2675, 4
    %v2677 = vadd.f32 %v2675, %v2676
    %v2678 = vrot.slane %v2677, 2
    %v2679 = vadd.f32 %v2677, %v2678
    %v2680 = vrot.slane %v2679, 1
    %v2681 = vadd.f32 %v2679, %v2680
    %v2682 = vsel %vm37, %v2624, 0.0
    %v2683 = vsel %vm37, %v2625, 0.0
    %v2684 = vadd.f32 %v2682, %v2683
    %v2685 = vrot.slane %v2684, 4
    %v2686 = vadd.f32 %v2684, %v2685
    %v2687 = vrot.slane %v2686, 2
    %v2688 = vadd.f32 %v2686, %v2687
    %v2689 = vrot.slane %v2688, 1
    %v2690 = vadd.f32 %v2688, %v2689
    %v2691 = vsel %vm37, %v2626, 0.0
    %v2692 = vsel %vm37, %v2627, 0.0
    %v2693 = vadd.f32 %v2691, %v2692
    %v2694 = vrot.slane %v2693, 4
    %v2695 = vadd.f32 %v2693, %v2694
    %v2696 = vrot.slane %v2695, 2
    %v2697 = vadd.f32 %v2695, %v2696
    %v2698 = vrot.slane %v2697, 1
    %v2699 = vadd.f32 %v2697, %v2698
    %v2700 = vmul.f32 %v2612, %v2612
    %v2701 = vmul.f32 %v2613, %v2613
    %v2702 = vmul.f32 %v2614, %v2614
    %v2703 = vmul.f32 %v2615, %v2615
    %v2704 = vmul.f32 %v2616, %v2616
    %v2705 = vmul.f32 %v2617, %v2617
    %v2706 = vmul.f32 %v2618, %v2618
    %v2707 = vmul.f32 %v2619, %v2619
    %v2708 = vmul.f32 %v2620, %v2620
    %v2709 = vmul.f32 %v2621, %v2621
    %v2710 = vmul.f32 %v2622, %v2622
    %v2711 = vmul.f32 %v2623, %v2623
    %v2712 = vmul.f32 %v2624, %v2624
    %v2713 = vmul.f32 %v2625, %v2625
    %v2714 = vmul.f32 %v2626, %v2626
    %v2715 = vmul.f32 %v2627, %v2627
    %v2716 = vsel %vm37, %v2700, 0.0
    %v2717 = vsel %vm37, %v2701, 0.0
    %v2718 = vadd.f32 %v2716, %v2717
    %v2719 = vrot.slane %v2718, 4
    %v2720 = vadd.f32 %v2718, %v2719
    %v2721 = vrot.slane %v2720, 2
    %v2722 = vadd.f32 %v2720, %v2721
    %v2723 = vrot.slane %v2722, 1
    %v2724 = vadd.f32 %v2722, %v2723
    %v2725 = vsel %vm37, %v2702, 0.0
    %v2726 = vsel %vm37, %v2703, 0.0
    %v2727 = vadd.f32 %v2725, %v2726
    %v2728 = vrot.slane %v2727, 4
    %v2729 = vadd.f32 %v2727, %v2728
    %v2730 = vrot.slane %v2729, 2
    %v2731 = vadd.f32 %v2729, %v2730
    %v2732 = vrot.slane %v2731, 1
    %v2733 = vadd.f32 %v2731, %v2732
    %v2734 = vsel %vm37, %v2704, 0.0
    %v2735 = vsel %vm37, %v2705, 0.0
    %v2736 = vadd.f32 %v2734, %v2735
    %v2737 = vrot.slane %v2736, 4
    %v2738 = vadd.f32 %v2736, %v2737
    %v2739 = vrot.slane %v2738, 2
    %v2740 = vadd.f32 %v2738, %v2739
    %v2741 = vrot.slane %v2740, 1
    %v2742 = vadd.f32 %v2740, %v2741
    %v2743 = vsel %vm37, %v2706, 0.0
    %v2744 = vsel %vm37, %v2707, 0.0
    %v2745 = vadd.f32 %v2743, %v2744
    %v2746 = vrot.slane %v2745, 4
    %v2747 = vadd.f32 %v2745, %v2746
    %v2748 = vrot.slane %v2747, 2
    %v2749 = vadd.f32 %v2747, %v2748
    %v2750 = vrot.slane %v2749, 1
    %v2751 = vadd.f32 %v2749, %v2750
    %v2752 = vsel %vm37, %v2708, 0.0
    %v2753 = vsel %vm37, %v2709, 0.0
    %v2754 = vadd.f32 %v2752, %v2753
    %v2755 = vrot.slane %v2754, 4
    %v2756 = vadd.f32 %v2754, %v2755
    %v2757 = vrot.slane %v2756, 2
    %v2758 = vadd.f32 %v2756, %v2757
    %v2759 = vrot.slane %v2758, 1
    %v2760 = vadd.f32 %v2758, %v2759
    %v2761 = vsel %vm37, %v2710, 0.0
    %v2762 = vsel %vm37, %v2711, 0.0
    %v2763 = vadd.f32 %v2761, %v2762
    %v2764 = vrot.slane %v2763, 4
    %v2765 = vadd.f32 %v2763, %v2764
    %v2766 = vrot.slane %v2765, 2
    %v2767 = vadd.f32 %v2765, %v2766
    %v2768 = vrot.slane %v2767, 1
    %v2769 = vadd.f32 %v2767, %v2768
    %v2770 = vsel %vm37, %v2712, 0.0
    %v2771 = vsel %vm37, %v2713, 0.0
    %v2772 = vadd.f32 %v2770, %v2771
    %v2773 = vrot.slane %v2772, 4
    %v2774 = vadd.f32 %v2772, %v2773
    %v2775 = vrot.slane %v2774, 2
    %v2776 = vadd.f32 %v2774, %v2775
    %v2777 = vrot.slane %v2776, 1
    %v2778 = vadd.f32 %v2776, %v2777
    %v2779 = vsel %vm37, %v2714, 0.0
    %v2780 = vsel %vm37, %v2715, 0.0
    %v2781 = vadd.f32 %v2779, %v2780
    %v2782 = vrot.slane %v2781, 4
    %v2783 = vadd.f32 %v2781, %v2782
    %v2784 = vrot.slane %v2783, 2
    %v2785 = vadd.f32 %v2783, %v2784
    %v2786 = vrot.slane %v2785, 1
    %v2787 = vadd.f32 %v2785, %v2786
    %v2788 = vmul.f32 %v2636, 0.0625
    %v2789 = vmul.f32 %v2645, 0.0625
    %v2790 = vmul.f32 %v2654, 0.0625
    %v2791 = vmul.f32 %v2663, 0.0625
    %v2792 = vmul.f32 %v2672, 0.0625
    %v2793 = vmul.f32 %v2681, 0.0625
    %v2794 = vmul.f32 %v2690, 0.0625
    %v2795 = vmul.f32 %v2699, 0.0625
    %v2796 = vmul.f32 %v2724, 0.0625
    %v2797 = vmul.f32 %v2733, 0.0625
    %v2798 = vmul.f32 %v2742, 0.0625
    %v2799 = vmul.f32 %v2751, 0.0625
    %v2800 = vmul.f32 %v2760, 0.0625
    %v2801 = vmul.f32 %v2769, 0.0625
    %v2802 = vmul.f32 %v2778, 0.0625
    %v2803 = vmul.f32 %v2787, 0.0625
    %v2804 = vmul.f32 %v2788, %v2788
    %v2805 = vmul.f32 %v2789, %v2789
    %v2806 = vmul.f32 %v2790, %v2790
    %v2807 = vmul.f32 %v2791, %v2791
    %v2808 = vmul.f32 %v2792, %v2792
    %v2809 = vmul.f32 %v2793, %v2793
    %v2810 = vmul.f32 %v2794, %v2794
    %v2811 = vmul.f32 %v2795, %v2795
    %v2812 = vsub.f32 %v2796, %v2804
    %v2813 = vsub.f32 %v2797, %v2805
    %v2814 = vsub.f32 %v2798, %v2806
    %v2815 = vsub.f32 %v2799, %v2807
    %v2816 = vsub.f32 %v2800, %v2808
    %v2817 = vsub.f32 %v2801, %v2809
    %v2818 = vsub.f32 %v2802, %v2810
    %v2819 = vsub.f32 %v2803, %v2811
    %v2820 = vsub.f32 %v2612, %v2788
    %v2821 = vsub.f32 %v2613, %v2788
    %v2822 = vsub.f32 %v2614, %v2789
    %v2823 = vsub.f32 %v2615, %v2789
    %v2824 = vsub.f32 %v2616, %v2790
    %v2825 = vsub.f32 %v2617, %v2790
    %v2826 = vsub.f32 %v2618, %v2791
    %v2827 = vsub.f32 %v2619, %v2791
    %v2828 = vsub.f32 %v2620, %v2792
    %v2829 = vsub.f32 %v2621, %v2792
    %v2830 = vsub.f32 %v2622, %v2793
    %v2831 = vsub.f32 %v2623, %v2793
    %v2832 = vsub.f32 %v2624, %v2794
    %v2833 = vsub.f32 %v2625, %v2794
    %v2834 = vsub.f32 %v2626, %v2795
    %v2835 = vsub.f32 %v2627, %v2795
    %v2836 = vadd.f32 %v2812, 1e-05
    %v2837 = vadd.f32 %v2813, 1e-05
    %v2838 = vadd.f32 %v2814, 1e-05
    %v2839 = vadd.f32 %v2815, 1e-05
    %v2840 = vadd.f32 %v2816, 1e-05
    %v2841 = vadd.f32 %v2817, 1e-05
    %v2842 = vadd.f32 %v2818, 1e-05
    %v2843 = vadd.f32 %v2819, 1e-05
    %v2844 = vrsqrt.pop %v2836
    %v2845 = vrsqrt.pop %v2837
    %v2846 = vrsqrt.pop %v2838
    %v2847 = vrsqrt.pop %v2839
    %v2848 = vrsqrt.pop %v2840
    %v2849 = vrsqrt.pop %v2841
    %v2850 = vrsqrt.pop %v2842
    %v2851 = vrsqrt.pop %v2843
    %v2852 = vmul.f32 %v2820, %v2844
    %v2853 = vmul.f32 %v2821, %v2844
    %v2854 = vmul.f32 %v2822, %v2845
    %v2855 = vmul.f32 %v2823, %v2845
    %v2856 = vmul.f32 %v2824, %v2846
    %v2857 = vmul.f32 %v2825, %v2846
    %v2858 = vmul.f32 %v2826, %v2847
    %v2859 = vmul.f32 %v2827, %v2847
    %v2860 = vmul.f32 %v2828, %v2848
    %v2861 = vmul.f32 %v2829, %v2848
    %v2862 = vmul.f32 %v2830, %v2849
    %v2863 = vmul.f32 %v2831, %v2849
    %v2864 = vmul.f32 %v2832, %v2850
    %v2865 = vmul.f32 %v2833, %v2850
    %v2866 = vmul.f32 %v2834, %v2851
    %v2867 = vmul.f32 %v2835, %v2851
    %s2868 = scalar_lea.vmem %s4, 16
    %v2869 = vld [vmem:[%s2868] sm:$0xff]
    %v2870 = vld [vmem:[%s2868 + $0x8] sm:$0xff]
    %s2871 = scalar_lea.vmem %s3, 16
    %v2872 = vld [vmem:[%s2871] sm:$0xff]
    %v2873 = vld [vmem:[%s2871 + $0x8] sm:$0xff]
    %2875 = vset.pattern.permute.xlu0 0
    %2876 = vperm.xlu0 %2875, %v2869
    %v2877 = vpop.permute.xlu0 %2876
    %2880 = vset.pattern.permute.xlu0 0
    %2881 = vperm.xlu0 %2880, %v2870
    %v2882 = vpop.permute.xlu0 %2881
    %v2885 = vsel %vm37, %v2872, 0
    %v2888 = vsel %vm37, %v2873, 0
    %2890 = vmatprep.subr.mxu0 0.0
    %2891 = vmatpush1.msra.mxu0 0.0
    %2892 = vmatprep.subr.mxu0 0.0
    %2893 = vmatpush1.msra.mxu0 0.0
    %2894 = vmatprep.subr.mxu0 0.0
    %2895 = vmatpush1.msra.mxu0 0.0
    %2896 = vmatprep.subr.mxu0 0.0
    %2897 = vmatpush1.msra.mxu0 0.0
    %2898 = vmatprep.subr.mxu0 0.0
    %2899 = vmatpush1.msra.mxu0 0.0
    %2900 = vmatprep.subr.mxu0 0.0
    %2901 = vmatpush1.msra.mxu0 0.0
    %2902 = vmatprep.subr.mxu0 0.0
    %2903 = vmatpush1.msra.mxu0 0.0
    %2904 = vmatprep.subr.mxu0 0.0
    %2905 = vmatpush1.msra.mxu0 0.0
    %2906 = vmatprep.subr.mxu0 0.0
    %2907 = vmatpush1.msra.mxu0 0.0
    %2908 = vmatprep.subr.mxu0 0.0
    %2909 = vmatpush1.msra.mxu0 0.0
    %2910 = vmatprep.subr.mxu0 0.0
    %2911 = vmatpush1.msra.mxu0 0.0
    %2912 = vmatprep.subr.mxu0 0.0
    %2913 = vmatpush1.msra.mxu0 0.0
    %2914 = vmatprep.subr.mxu0 0.0
    %2915 = vmatpush1.msra.mxu0 0.0
    %2916 = vmatprep.subr.mxu0 0.0
    %2917 = vmatpush1.msra.mxu0 0.0
    %2918 = vmatprep.subr.mxu0 0.0
    %2919 = vmatpush1.msra.mxu0 %v2853
    %2920 = vmatprep.subr.mxu0 0.0
    %2921 = vmatpush1.msra.mxu0 %v2852
    %2922 = vmatprep.subr.mxu0 0.0
    %2923 = vmatpush2.msra.mxu0 0.0
    %2924 = vmatprep.subr.mxu0 0.0
    %2925 = vmatpush2.msra.mxu0 0.0
    %2926 = vmatprep.subr.mxu0 0.0
    %2927 = vmatpush2.msra.mxu0 0.0
    %2928 = vmatprep.subr.mxu0 0.0
    %2929 = vmatpush2.msra.mxu0 0.0
    %2930 = vmatprep.subr.mxu0 0.0
    %2931 = vmatpush2.msra.mxu0 0.0
    %2932 = vmatprep.subr.mxu0 0.0
    %2933 = vmatpush2.msra.mxu0 0.0
    %2934 = vmatprep.subr.mxu0 0.0
    %2935 = vmatpush2.msra.mxu0 0.0
    %2936 = vmatprep.subr.mxu0 0.0
    %2937 = vmatpush2.msra.mxu0 0.0
    %2938 = vmatprep.subr.mxu0 0.0
    %2939 = vmatpush2.msra.mxu0 0.0
    %2940 = vmatprep.subr.mxu0 0.0
    %2941 = vmatpush2.msra.mxu0 0.0
    %2942 = vmatprep.subr.mxu0 0.0
    %2943 = vmatpush2.msra.mxu0 0.0
    %2944 = vmatprep.subr.mxu0 0.0
    %2945 = vmatpush2.msra.mxu0 0.0
    %2946 = vmatprep.subr.mxu0 0.0
    %2947 = vmatpush2.msra.mxu0 0.0
    %2948 = vmatprep.subr.mxu0 0.0
    %2949 = vmatpush2.msra.mxu0 0.0
    %2950 = vmatprep.subr.mxu0 0.0
    %2951 = vmatpush2.msra.mxu0 0.0
    %2952 = vmatprep.subr.mxu0 0.0
    %2953 = vmatpush2.msra.mxu0 0.0
    %2954 = vmatprep.mubr.f32.mxu0 0.0
    %2955 = vmatmul.mubr.f32.gmra.mxu0 %v2885
    %v2956 = vpop.f32.mrf.mxu0
    %v2957 = vadd.f32 %v2877, %v2956
    %v2958 = vpop.f32.mrf.mxu0
    %2959 = vmatprep.mubr.f32.mxu0 0.0
    %2960 = vmatmul.mubr.f32.gmra.mxu0 %v2888
    %v2961 = vpop.f32.mrf.mxu0
    %v2962 = vadd.f32 %v2882, %v2961
    %v2963 = vpop.f32.mrf.mxu0
    %2964 = vdwg.mxu0
    %2965 = vmatprep.subr.mxu0 0.0
    %2966 = vmatpush1.msra.mxu0 0.0
    %2967 = vmatprep.subr.mxu0 0.0
    %2968 = vmatpush1.msra.mxu0 0.0
    %2969 = vmatprep.subr.mxu0 0.0
    %2970 = vmatpush1.msra.mxu0 0.0
    %2971 = vmatprep.subr.mxu0 0.0
    %2972 = vmatpush1.msra.mxu0 0.0
    %2973 = vmatprep.subr.mxu0 0.0
    %2974 = vmatpush1.msra.mxu0 0.0
    %2975 = vmatprep.subr.mxu0 0.0
    %2976 = vmatpush1.msra.mxu0 0.0
    %2977 = vmatprep.subr.mxu0 0.0
    %2978 = vmatpush1.msra.mxu0 0.0
    %2979 = vmatprep.subr.mxu0 0.0
    %2980 = vmatpush1.msra.mxu0 0.0
    %2981 = vmatprep.subr.mxu0 0.0
    %2982 = vmatpush1.msra.mxu0 0.0
    %2983 = vmatprep.subr.mxu0 0.0
    %2984 = vmatpush1.msra.mxu0 0.0
    %2985 = vmatprep.subr.mxu0 0.0
    %2986 = vmatpush1.msra.mxu0 0.0
    %2987 = vmatprep.subr.mxu0 0.0
    %2988 = vmatpush1.msra.mxu0 0.0
    %2989 = vmatprep.subr.mxu0 0.0
    %2990 = vmatpush1.msra.mxu0 0.0
    %2991 = vmatprep.subr.mxu0 0.0
    %2992 = vmatpush1.msra.mxu0 0.0
    %2993 = vmatprep.subr.mxu0 0.0
    %2994 = vmatpush1.msra.mxu0 %v2855
    %2995 = vmatprep.subr.mxu0 0.0
    %2996 = vmatpush1.msra.mxu0 %v2854
    %2997 = vmatprep.subr.mxu0 0.0
    %2998 = vmatpush2.msra.mxu0 0.0
    %2999 = vmatprep.subr.mxu0 0.0
    %3000 = vmatpush2.msra.mxu0 0.0
    %3001 = vmatprep.subr.mxu0 0.0
    %3002 = vmatpush2.msra.mxu0 0.0
    %3003 = vmatprep.subr.mxu0 0.0
    %3004 = vmatpush2.msra.mxu0 0.0
    %3005 = vmatprep.subr.mxu0 0.0
    %3006 = vmatpush2.msra.mxu0 0.0
    %3007 = vmatprep.subr.mxu0 0.0
    %3008 = vmatpush2.msra.mxu0 0.0
    %3009 = vmatprep.subr.mxu0 0.0
    %3010 = vmatpush2.msra.mxu0 0.0
    %3011 = vmatprep.subr.mxu0 0.0
    %3012 = vmatpush2.msra.mxu0 0.0
    %3013 = vmatprep.subr.mxu0 0.0
    %3014 = vmatpush2.msra.mxu0 0.0
    %3015 = vmatprep.subr.mxu0 0.0
    %3016 = vmatpush2.msra.mxu0 0.0
    %3017 = vmatprep.subr.mxu0 0.0
    %3018 = vmatpush2.msra.mxu0 0.0
    %3019 = vmatprep.subr.mxu0 0.0
    %3020 = vmatpush2.msra.mxu0 0.0
    %3021 = vmatprep.subr.mxu0 0.0
    %3022 = vmatpush2.msra.mxu0 0.0
    %3023 = vmatprep.subr.mxu0 0.0
    %3024 = vmatpush2.msra.mxu0 0.0
    %3025 = vmatprep.subr.mxu0 0.0
    %3026 = vmatpush2.msra.mxu0 0.0
    %3027 = vmatprep.subr.mxu0 0.0
    %3028 = vmatpush2.msra.mxu0 0.0
    %3029 = vmatprep.mubr.f32.mxu0 0.0
    %3030 = vmatmul.mubr.f32.gmra.mxu0 %v2885
    %v3031 = vpop.f32.mrf.mxu0
    %v3032 = vadd.f32 %v2877, %v3031
    %v3033 = vpop.f32.mrf.mxu0
    %3034 = vmatprep.mubr.f32.mxu0 0.0
    %3035 = vmatmul.mubr.f32.gmra.mxu0 %v2888
    %v3036 = vpop.f32.mrf.mxu0
    %v3037 = vadd.f32 %v2882, %v3036
    %v3038 = vpop.f32.mrf.mxu0
    %3039 = vdwg.mxu0
    %3040 = vmatprep.subr.mxu0 0.0
    %3041 = vmatpush1.msra.mxu0 0.0
    %3042 = vmatprep.subr.mxu0 0.0
    %3043 = vmatpush1.msra.mxu0 0.0
    %3044 = vmatprep.subr.mxu0 0.0
    %3045 = vmatpush1.msra.mxu0 0.0
    %3046 = vmatprep.subr.mxu0 0.0
    %3047 = vmatpush1.msra.mxu0 0.0
    %3048 = vmatprep.subr.mxu0 0.0
    %3049 = vmatpush1.msra.mxu0 0.0
    %3050 = vmatprep.subr.mxu0 0.0
    %3051 = vmatpush1.msra.mxu0 0.0
    %3052 = vmatprep.subr.mxu0 0.0
    %3053 = vmatpush1.msra.mxu0 0.0
    %3054 = vmatprep.subr.mxu0 0.0
    %3055 = vmatpush1.msra.mxu0 0.0
    %3056 = vmatprep.subr.mxu0 0.0
    %3057 = vmatpush1.msra.mxu0 0.0
    %3058 = vmatprep.subr.mxu0 0.0
    %3059 = vmatpush1.msra.mxu0 0.0
    %3060 = vmatprep.subr.mxu0 0.0
    %3061 = vmatpush1.msra.mxu0 0.0
    %3062 = vmatprep.subr.mxu0 0.0
    %3063 = vmatpush1.msra.mxu0 0.0
    %3064 = vmatprep.subr.mxu0 0.0
    %3065 = vmatpush1.msra.mxu0 0.0
    %3066 = vmatprep.subr.mxu0 0.0
    %3067 = vmatpush1.msra.mxu0 0.0
    %3068 = vmatprep.subr.mxu0 0.0
    %3069 = vmatpush1.msra.mxu0 %v2857
    %3070 = vmatprep.subr.mxu0 0.0
    %3071 = vmatpush1.msra.mxu0 %v2856
    %3072 = vmatprep.subr.mxu0 0.0
    %3073 = vmatpush2.msra.mxu0 0.0
    %3074 = vmatprep.subr.mxu0 0.0
    %3075 = vmatpush2.msra.mxu0 0.0
    %3076 = vmatprep.subr.mxu0 0.0
    %3077 = vmatpush2.msra.mxu0 0.0
    %3078 = vmatprep.subr.mxu0 0.0
    %3079 = vmatpush2.msra.mxu0 0.0
    %3080 = vmatprep.subr.mxu0 0.0
    %3081 = vmatpush2.msra.mxu0 0.0
    %3082 = vmatprep.subr.mxu0 0.0
    %3083 = vmatpush2.msra.mxu0 0.0
    %3084 = vmatprep.subr.mxu0 0.0
    %3085 = vmatpush2.msra.mxu0 0.0
    %3086 = vmatprep.subr.mxu0 0.0
    %3087 = vmatpush2.msra.mxu0 0.0
    %3088 = vmatprep.subr.mxu0 0.0
    %3089 = vmatpush2.msra.mxu0 0.0
    %3090 = vmatprep.subr.mxu0 0.0
    %3091 = vmatpush2.msra.mxu0 0.0
    %3092 = vmatprep.subr.mxu0 0.0
    %3093 = vmatpush2.msra.mxu0 0.0
    %3094 = vmatprep.subr.mxu0 0.0
    %3095 = vmatpush2.msra.mxu0 0.0
    %3096 = vmatprep.subr.mxu0 0.0
    %3097 = vmatpush2.msra.mxu0 0.0
    %3098 = vmatprep.subr.mxu0 0.0
    %3099 = vmatpush2.msra.mxu0 0.0
    %3100 = vmatprep.subr.mxu0 0.0
    %3101 = vmatpush2.msra.mxu0 0.0
    %3102 = vmatprep.subr.mxu0 0.0
    %3103 = vmatpush2.msra.mxu0 0.0
    %3104 = vmatprep.mubr.f32.mxu0 0.0
    %3105 = vmatmul.mubr.f32.gmra.mxu0 %v2885
    %v3106 = vpop.f32.mrf.mxu0
    %v3107 = vadd.f32 %v2877, %v3106
    %v3108 = vpop.f32.mrf.mxu0
    %3109 = vmatprep.mubr.f32.mxu0 0.0
    %3110 = vmatmul.mubr.f32.gmra.mxu0 %v2888
    %v3111 = vpop.f32.mrf.mxu0
    %v3112 = vadd.f32 %v2882, %v3111
    %v3113 = vpop.f32.mrf.mxu0
    %3114 = vdwg.mxu0
    %3115 = vmatprep.subr.mxu0 0.0
    %3116 = vmatpush1.msra.mxu0 0.0
    %3117 = vmatprep.subr.mxu0 0.0
    %3118 = vmatpush1.msra.mxu0 0.0
    %3119 = vmatprep.subr.mxu0 0.0
    %3120 = vmatpush1.msra.mxu0 0.0
    %3121 = vmatprep.subr.mxu0 0.0
    %3122 = vmatpush1.msra.mxu0 0.0
    %3123 = vmatprep.subr.mxu0 0.0
    %3124 = vmatpush1.msra.mxu0 0.0
    %3125 = vmatprep.subr.mxu0 0.0
    %3126 = vmatpush1.msra.mxu0 0.0
    %3127 = vmatprep.subr.mxu0 0.0
    %3128 = vmatpush1.msra.mxu0 0.0
    %3129 = vmatprep.subr.mxu0 0.0
    %3130 = vmatpush1.msra.mxu0 0.0
    %3131 = vmatprep.subr.mxu0 0.0
    %3132 = vmatpush1.msra.mxu0 0.0
    %3133 = vmatprep.subr.mxu0 0.0
    %3134 = vmatpush1.msra.mxu0 0.0
    %3135 = vmatprep.subr.mxu0 0.0
    %3136 = vmatpush1.msra.mxu0 0.0
    %3137 = vmatprep.subr.mxu0 0.0
    %3138 = vmatpush1.msra.mxu0 0.0
    %3139 = vmatprep.subr.mxu0 0.0
    %3140 = vmatpush1.msra.mxu0 0.0
    %3141 = vmatprep.subr.mxu0 0.0
    %3142 = vmatpush1.msra.mxu0 0.0
    %3143 = vmatprep.subr.mxu0 0.0
    %3144 = vmatpush1.msra.mxu0 %v2859
    %3145 = vmatprep.subr.mxu0 0.0
    %3146 = vmatpush1.msra.mxu0 %v2858
    %3147 = vmatprep.subr.mxu0 0.0
    %3148 = vmatpush2.msra.mxu0 0.0
    %3149 = vmatprep.subr.mxu0 0.0
    %3150 = vmatpush2.msra.mxu0 0.0
    %3151 = vmatprep.subr.mxu0 0.0
    %3152 = vmatpush2.msra.mxu0 0.0
    %3153 = vmatprep.subr.mxu0 0.0
    %3154 = vmatpush2.msra.mxu0 0.0
    %3155 = vmatprep.subr.mxu0 0.0
    %3156 = vmatpush2.msra.mxu0 0.0
    %3157 = vmatprep.subr.mxu0 0.0
    %3158 = vmatpush2.msra.mxu0 0.0
    %3159 = vmatprep.subr.mxu0 0.0
    %3160 = vmatpush2.msra.mxu0 0.0
    %3161 = vmatprep.subr.mxu0 0.0
    %3162 = vmatpush2.msra.mxu0 0.0
    %3163 = vmatprep.subr.mxu0 0.0
    %3164 = vmatpush2.msra.mxu0 0.0
    %3165 = vmatprep.subr.mxu0 0.0
    %3166 = vmatpush2.msra.mxu0 0.0
    %3167 = vmatprep.subr.mxu0 0.0
    %3168 = vmatpush2.msra.mxu0 0.0
    %3169 = vmatprep.subr.mxu0 0.0
    %3170 = vmatpush2.msra.mxu0 0.0
    %3171 = vmatprep.subr.mxu0 0.0
    %3172 = vmatpush2.msra.mxu0 0.0
    %3173 = vmatprep.subr.mxu0 0.0
    %3174 = vmatpush2.msra.mxu0 0.0
    %3175 = vmatprep.subr.mxu0 0.0
    %3176 = vmatpush2.msra.mxu0 0.0
    %3177 = vmatprep.subr.mxu0 0.0
    %3178 = vmatpush2.msra.mxu0 0.0
    %3179 = vmatprep.mubr.f32.mxu0 0.0
    %3180 = vmatmul.mubr.f32.gmra.mxu0 %v2885
    %v3181 = vpop.f32.mrf.mxu0
    %v3182 = vadd.f32 %v2877, %v3181
    %v3183 = vpop.f32.mrf.mxu0
    %3184 = vmatprep.mubr.f32.mxu0 0.0
    %3185 = vmatmul.mubr.f32.gmra.mxu0 %v2888
    %v3186 = vpop.f32.mrf.mxu0
    %v3187 = vadd.f32 %v2882, %v3186
    %v3188 = vpop.f32.mrf.mxu0
    %3189 = vdwg.mxu0
    %3190 = vmatprep.subr.mxu0 0.0
    %3191 = vmatpush1.msra.mxu0 0.0
    %3192 = vmatprep.subr.mxu0 0.0
    %3193 = vmatpush1.msra.mxu0 0.0
    %3194 = vmatprep.subr.mxu0 0.0
    %3195 = vmatpush1.msra.mxu0 0.0
    %3196 = vmatprep.subr.mxu0 0.0
    %3197 = vmatpush1.msra.mxu0 0.0
    %3198 = vmatprep.subr.mxu0 0.0
    %3199 = vmatpush1.msra.mxu0 0.0
    %3200 = vmatprep.subr.mxu0 0.0
    %3201 = vmatpush1.msra.mxu0 0.0
    %3202 = vmatprep.subr.mxu0 0.0
    %3203 = vmatpush1.msra.mxu0 0.0
    %3204 = vmatprep.subr.mxu0 0.0
    %3205 = vmatpush1.msra.mxu0 0.0
    %3206 = vmatprep.subr.mxu0 0.0
    %3207 = vmatpush1.msra.mxu0 0.0
    %3208 = vmatprep.subr.mxu0 0.0
    %3209 = vmatpush1.msra.mxu0 0.0
    %3210 = vmatprep.subr.mxu0 0.0
    %3211 = vmatpush1.msra.mxu0 0.0
    %3212 = vmatprep.subr.mxu0 0.0
    %3213 = vmatpush1.msra.mxu0 0.0
    %3214 = vmatprep.subr.mxu0 0.0
    %3215 = vmatpush1.msra.mxu0 0.0
    %3216 = vmatprep.subr.mxu0 0.0
    %3217 = vmatpush1.msra.mxu0 0.0
    %3218 = vmatprep.subr.mxu0 0.0
    %3219 = vmatpush1.msra.mxu0 %v2861
    %3220 = vmatprep.subr.mxu0 0.0
    %3221 = vmatpush1.msra.mxu0 %v2860
    %3222 = vmatprep.subr.mxu0 0.0
    %3223 = vmatpush2.msra.mxu0 0.0
    %3224 = vmatprep.subr.mxu0 0.0
    %3225 = vmatpush2.msra.mxu0 0.0
    %3226 = vmatprep.subr.mxu0 0.0
    %3227 = vmatpush2.msra.mxu0 0.0
    %3228 = vmatprep.subr.mxu0 0.0
    %3229 = vmatpush2.msra.mxu0 0.0
    %3230 = vmatprep.subr.mxu0 0.0
    %3231 = vmatpush2.msra.mxu0 0.0
    %3232 = vmatprep.subr.mxu0 0.0
    %3233 = vmatpush2.msra.mxu0 0.0
    %3234 = vmatprep.subr.mxu0 0.0
    %3235 = vmatpush2.msra.mxu0 0.0
    %3236 = vmatprep.subr.mxu0 0.0
    %3237 = vmatpush2.msra.mxu0 0.0
    %3238 = vmatprep.subr.mxu0 0.0
    %3239 = vmatpush2.msra.mxu0 0.0
    %3240 = vmatprep.subr.mxu0 0.0
    %3241 = vmatpush2.msra.mxu0 0.0
    %3242 = vmatprep.subr.mxu0 0.0
    %3243 = vmatpush2.msra.mxu0 0.0
    %3244 = vmatprep.subr.mxu0 0.0
    %3245 = vmatpush2.msra.mxu0 0.0
    %3246 = vmatprep.subr.mxu0 0.0
    %3247 = vmatpush2.msra.mxu0 0.0
    %3248 = vmatprep.subr.mxu0 0.0
    %3249 = vmatpush2.msra.mxu0 0.0
    %3250 = vmatprep.subr.mxu0 0.0
    %3251 = vmatpush2.msra.mxu0 0.0
    %3252 = vmatprep.subr.mxu0 0.0
    %3253 = vmatpush2.msra.mxu0 0.0
    %3254 = vmatprep.mubr.f32.mxu0 0.0
    %3255 = vmatmul.mubr.f32.gmra.mxu0 %v2885
    %v3256 = vpop.f32.mrf.mxu0
    %v3257 = vadd.f32 %v2877, %v3256
    %v3258 = vpop.f32.mrf.mxu0
    %3259 = vmatprep.mubr.f32.mxu0 0.0
    %3260 = vmatmul.mubr.f32.gmra.mxu0 %v2888
    %v3261 = vpop.f32.mrf.mxu0
    %v3262 = vadd.f32 %v2882, %v3261
    %v3263 = vpop.f32.mrf.mxu0
    %3264 = vdwg.mxu0
    %3265 = vmatprep.subr.mxu0 0.0
    %3266 = vmatpush1.msra.mxu0 0.0
    %3267 = vmatprep.subr.mxu0 0.0
    %3268 = vmatpush1.msra.mxu0 0.0
    %3269 = vmatprep.subr.mxu0 0.0
    %3270 = vmatpush1.msra.mxu0 0.0
    %3271 = vmatprep.subr.mxu0 0.0
    %3272 = vmatpush1.msra.mxu0 0.0
    %3273 = vmatprep.subr.mxu0 0.0
    %3274 = vmatpush1.msra.mxu0 0.0
    %3275 = vmatprep.subr.mxu0 0.0
    %3276 = vmatpush1.msra.mxu0 0.0
    %3277 = vmatprep.subr.mxu0 0.0
    %3278 = vmatpush1.msra.mxu0 0.0
    %3279 = vmatprep.subr.mxu0 0.0
    %3280 = vmatpush1.msra.mxu0 0.0
    %3281 = vmatprep.subr.mxu0 0.0
    %3282 = vmatpush1.msra.mxu0 0.0
    %3283 = vmatprep.subr.mxu0 0.0
    %3284 = vmatpush1.msra.mxu0 0.0
    %3285 = vmatprep.subr.mxu0 0.0
    %3286 = vmatpush1.msra.mxu0 0.0
    %3287 = vmatprep.subr.mxu0 0.0
    %3288 = vmatpush1.msra.mxu0 0.0
    %3289 = vmatprep.subr.mxu0 0.0
    %3290 = vmatpush1.msra.mxu0 0.0
    %3291 = vmatprep.subr.mxu0 0.0
    %3292 = vmatpush1.msra.mxu0 0.0
    %3293 = vmatprep.subr.mxu0 0.0
    %3294 = vmatpush1.msra.mxu0 %v2863
    %3295 = vmatprep.subr.mxu0 0.0
    %3296 = vmatpush1.msra.mxu0 %v2862
    %3297 = vmatprep.subr.mxu0 0.0
    %3298 = vmatpush2.msra.mxu0 0.0
    %3299 = vmatprep.subr.mxu0 0.0
    %3300 = vmatpush2.msra.mxu0 0.0
    %3301 = vmatprep.subr.mxu0 0.0
    %3302 = vmatpush2.msra.mxu0 0.0
    %3303 = vmatprep.subr.mxu0 0.0
    %3304 = vmatpush2.msra.mxu0 0.0
    %3305 = vmatprep.subr.mxu0 0.0
    %3306 = vmatpush2.msra.mxu0 0.0
    %3307 = vmatprep.subr.mxu0 0.0
    %3308 = vmatpush2.msra.mxu0 0.0
    %3309 = vmatprep.subr.mxu0 0.0
    %3310 = vmatpush2.msra.mxu0 0.0
    %3311 = vmatprep.subr.mxu0 0.0
    %3312 = vmatpush2.msra.mxu0 0.0
    %3313 = vmatprep.subr.mxu0 0.0
    %3314 = vmatpush2.msra.mxu0 0.0
    %3315 = vmatprep.subr.mxu0 0.0
    %3316 = vmatpush2.msra.mxu0 0.0
    %3317 = vmatprep.subr.mxu0 0.0
    %3318 = vmatpush2.msra.mxu0 0.0
    %3319 = vmatprep.subr.mxu0 0.0
    %3320 = vmatpush2.msra.mxu0 0.0
    %3321 = vmatprep.subr.mxu0 0.0
    %3322 = vmatpush2.msra.mxu0 0.0
    %3323 = vmatprep.subr.mxu0 0.0
    %3324 = vmatpush2.msra.mxu0 0.0
    %3325 = vmatprep.subr.mxu0 0.0
    %3326 = vmatpush2.msra.mxu0 0.0
    %3327 = vmatprep.subr.mxu0 0.0
    %3328 = vmatpush2.msra.mxu0 0.0
    %3329 = vmatprep.mubr.f32.mxu0 0.0
    %3330 = vmatmul.mubr.f32.gmra.mxu0 %v2885
    %v3331 = vpop.f32.mrf.mxu0
    %v3332 = vadd.f32 %v2877, %v3331
    %v3333 = vpop.f32.mrf.mxu0
    %3334 = vmatprep.mubr.f32.mxu0 0.0
    %3335 = vmatmul.mubr.f32.gmra.mxu0 %v2888
    %v3336 = vpop.f32.mrf.mxu0
    %v3337 = vadd.f32 %v2882, %v3336
    %v3338 = vpop.f32.mrf.mxu0
    %3339 = vdwg.mxu0
    %3340 = vmatprep.subr.mxu0 0.0
    %3341 = vmatpush1.msra.mxu0 0.0
    %3342 = vmatprep.subr.mxu0 0.0
    %3343 = vmatpush1.msra.mxu0 0.0
    %3344 = vmatprep.subr.mxu0 0.0
    %3345 = vmatpush1.msra.mxu0 0.0
    %3346 = vmatprep.subr.mxu0 0.0
    %3347 = vmatpush1.msra.mxu0 0.0
    %3348 = vmatprep.subr.mxu0 0.0
    %3349 = vmatpush1.msra.mxu0 0.0
    %3350 = vmatprep.subr.mxu0 0.0
    %3351 = vmatpush1.msra.mxu0 0.0
    %3352 = vmatprep.subr.mxu0 0.0
    %3353 = vmatpush1.msra.mxu0 0.0
    %3354 = vmatprep.subr.mxu0 0.0
    %3355 = vmatpush1.msra.mxu0 0.0
    %3356 = vmatprep.subr.mxu0 0.0
    %3357 = vmatpush1.msra.mxu0 0.0
    %3358 = vmatprep.subr.mxu0 0.0
    %3359 = vmatpush1.msra.mxu0 0.0
    %3360 = vmatprep.subr.mxu0 0.0
    %3361 = vmatpush1.msra.mxu0 0.0
    %3362 = vmatprep.subr.mxu0 0.0
    %3363 = vmatpush1.msra.mxu0 0.0
    %3364 = vmatprep.subr.mxu0 0.0
    %3365 = vmatpush1.msra.mxu0 0.0
    %3366 = vmatprep.subr.mxu0 0.0
    %3367 = vmatpush1.msra.mxu0 0.0
    %3368 = vmatprep.subr.mxu0 0.0
    %3369 = vmatpush1.msra.mxu0 %v2865
    %3370 = vmatprep.subr.mxu0 0.0
    %3371 = vmatpush1.msra.mxu0 %v2864
    %3372 = vmatprep.subr.mxu0 0.0
    %3373 = vmatpush2.msra.mxu0 0.0
    %3374 = vmatprep.subr.mxu0 0.0
    %3375 = vmatpush2.msra.mxu0 0.0
    %3376 = vmatprep.subr.mxu0 0.0
    %3377 = vmatpush2.msra.mxu0 0.0
    %3378 = vmatprep.subr.mxu0 0.0
    %3379 = vmatpush2.msra.mxu0 0.0
    %3380 = vmatprep.subr.mxu0 0.0
    %3381 = vmatpush2.msra.mxu0 0.0
    %3382 = vmatprep.subr.mxu0 0.0
    %3383 = vmatpush2.msra.mxu0 0.0
    %3384 = vmatprep.subr.mxu0 0.0
    %3385 = vmatpush2.msra.mxu0 0.0
    %3386 = vmatprep.subr.mxu0 0.0
    %3387 = vmatpush2.msra.mxu0 0.0
    %3388 = vmatprep.subr.mxu0 0.0
    %3389 = vmatpush2.msra.mxu0 0.0
    %3390 = vmatprep.subr.mxu0 0.0
    %3391 = vmatpush2.msra.mxu0 0.0
    %3392 = vmatprep.subr.mxu0 0.0
    %3393 = vmatpush2.msra.mxu0 0.0
    %3394 = vmatprep.subr.mxu0 0.0
    %3395 = vmatpush2.msra.mxu0 0.0
    %3396 = vmatprep.subr.mxu0 0.0
    %3397 = vmatpush2.msra.mxu0 0.0
    %3398 = vmatprep.subr.mxu0 0.0
    %3399 = vmatpush2.msra.mxu0 0.0
    %3400 = vmatprep.subr.mxu0 0.0
    %3401 = vmatpush2.msra.mxu0 0.0
    %3402 = vmatprep.subr.mxu0 0.0
    %3403 = vmatpush2.msra.mxu0 0.0
    %3404 = vmatprep.mubr.f32.mxu0 0.0
    %3405 = vmatmul.mubr.f32.gmra.mxu0 %v2885
    %v3406 = vpop.f32.mrf.mxu0
    %v3407 = vadd.f32 %v2877, %v3406
    %v3408 = vpop.f32.mrf.mxu0
    %3409 = vmatprep.mubr.f32.mxu0 0.0
    %3410 = vmatmul.mubr.f32.gmra.mxu0 %v2888
    %v3411 = vpop.f32.mrf.mxu0
    %v3412 = vadd.f32 %v2882, %v3411
    %v3413 = vpop.f32.mrf.mxu0
    %3414 = vdwg.mxu0
    %3415 = vmatprep.subr.mxu0 0.0
    %3416 = vmatpush1.msra.mxu0 0.0
    %3417 = vmatprep.subr.mxu0 0.0
    %3418 = vmatpush1.msra.mxu0 0.0
    %3419 = vmatprep.subr.mxu0 0.0
    %3420 = vmatpush1.msra.mxu0 0.0
    %3421 = vmatprep.subr.mxu0 0.0
    %3422 = vmatpush1.msra.mxu0 0.0
    %3423 = vmatprep.subr.mxu0 0.0
    %3424 = vmatpush1.msra.mxu0 0.0
    %3425 = vmatprep.subr.mxu0 0.0
    %3426 = vmatpush1.msra.mxu0 0.0
    %3427 = vmatprep.subr.mxu0 0.0
    %3428 = vmatpush1.msra.mxu0 0.0
    %3429 = vmatprep.subr.mxu0 0.0
    %3430 = vmatpush1.msra.mxu0 0.0
    %3431 = vmatprep.subr.mxu0 0.0
    %3432 = vmatpush1.msra.mxu0 0.0
    %3433 = vmatprep.subr.mxu0 0.0
    %3434 = vmatpush1.msra.mxu0 0.0
    %3435 = vmatprep.subr.mxu0 0.0
    %3436 = vmatpush1.msra.mxu0 0.0
    %3437 = vmatprep.subr.mxu0 0.0
    %3438 = vmatpush1.msra.mxu0 0.0
    %3439 = vmatprep.subr.mxu0 0.0
    %3440 = vmatpush1.msra.mxu0 0.0
    %3441 = vmatprep.subr.mxu0 0.0
    %3442 = vmatpush1.msra.mxu0 0.0
    %3443 = vmatprep.subr.mxu0 0.0
    %3444 = vmatpush1.msra.mxu0 %v2867
    %3445 = vmatprep.subr.mxu0 0.0
    %3446 = vmatpush1.msra.mxu0 %v2866
    %3447 = vmatprep.subr.mxu0 0.0
    %3448 = vmatpush2.msra.mxu0 0.0
    %3449 = vmatprep.subr.mxu0 0.0
    %3450 = vmatpush2.msra.mxu0 0.0
    %3451 = vmatprep.subr.mxu0 0.0
    %3452 = vmatpush2.msra.mxu0 0.0
    %3453 = vmatprep.subr.mxu0 0.0
    %3454 = vmatpush2.msra.mxu0 0.0
    %3455 = vmatprep.subr.mxu0 0.0
    %3456 = vmatpush2.msra.mxu0 0.0
    %3457 = vmatprep.subr.mxu0 0.0
    %3458 = vmatpush2.msra.mxu0 0.0
    %3459 = vmatprep.subr.mxu0 0.0
    %3460 = vmatpush2.msra.mxu0 0.0
    %3461 = vmatprep.subr.mxu0 0.0
    %3462 = vmatpush2.msra.mxu0 0.0
    %3463 = vmatprep.subr.mxu0 0.0
    %3464 = vmatpush2.msra.mxu0 0.0
    %3465 = vmatprep.subr.mxu0 0.0
    %3466 = vmatpush2.msra.mxu0 0.0
    %3467 = vmatprep.subr.mxu0 0.0
    %3468 = vmatpush2.msra.mxu0 0.0
    %3469 = vmatprep.subr.mxu0 0.0
    %3470 = vmatpush2.msra.mxu0 0.0
    %3471 = vmatprep.subr.mxu0 0.0
    %3472 = vmatpush2.msra.mxu0 0.0
    %3473 = vmatprep.subr.mxu0 0.0
    %3474 = vmatpush2.msra.mxu0 0.0
    %3475 = vmatprep.subr.mxu0 0.0
    %3476 = vmatpush2.msra.mxu0 0.0
    %3477 = vmatprep.subr.mxu0 0.0
    %3478 = vmatpush2.msra.mxu0 0.0
    %3479 = vmatprep.mubr.f32.mxu0 0.0
    %3480 = vmatmul.mubr.f32.gmra.mxu0 %v2885
    %v3481 = vpop.f32.mrf.mxu0
    %v3482 = vadd.f32 %v2877, %v3481
    %v3483 = vpop.f32.mrf.mxu0
    %3484 = vmatprep.mubr.f32.mxu0 0.0
    %3485 = vmatmul.mubr.f32.gmra.mxu0 %v2888
    %v3486 = vpop.f32.mrf.mxu0
    %v3487 = vadd.f32 %v2882, %v3486
    %v3488 = vpop.f32.mrf.mxu0
    %3489 = vdwg.mxu0
    %v3490 = vsel %vm37, %v2957, 0.0
    %v3491 = vsel %vm37, %v2962, 0.0
    %v3492 = vadd.f32 %v3490, %v3491
    %v3493 = vrot.slane %v3492, 4
    %v3494 = vadd.f32 %v3492, %v3493
    %v3495 = vrot.slane %v3494, 2
    %v3496 = vadd.f32 %v3494, %v3495
    %v3497 = vrot.slane %v3496, 1
    %v3498 = vadd.f32 %v3496, %v3497
    %v3499 = vsel %vm37, %v3032, 0.0
    %v3500 = vsel %vm37, %v3037, 0.0
    %v3501 = vadd.f32 %v3499, %v3500
    %v3502 = vrot.slane %v3501, 4
    %v3503 = vadd.f32 %v3501, %v3502
    %v3504 = vrot.slane %v3503, 2
    %v3505 = vadd.f32 %v3503, %v3504
    %v3506 = vrot.slane %v3505, 1
    %v3507 = vadd.f32 %v3505, %v3506
    %v3508 = vsel %vm37, %v3107, 0.0
    %v3509 = vsel %vm37, %v3112, 0.0
    %v3510 = vadd.f32 %v3508, %v3509
    %v3511 = vrot.slane %v3510, 4
    %v3512 = vadd.f32 %v3510, %v3511
    %v3513 = vrot.slane %v3512, 2
    %v3514 = vadd.f32 %v3512, %v3513
    %v3515 = vrot.slane %v3514, 1
    %v3516 = vadd.f32 %v3514, %v3515
    %v3517 = vsel %vm37, %v3182, 0.0
    %v3518 = vsel %vm37, %v3187, 0.0
    %v3519 = vadd.f32 %v3517, %v3518
    %v3520 = vrot.slane %v3519, 4
    %v3521 = vadd.f32 %v3519, %v3520
    %v3522 = vrot.slane %v3521, 2
    %v3523 = vadd.f32 %v3521, %v3522
    %v3524 = vrot.slane %v3523, 1
    %v3525 = vadd.f32 %v3523, %v3524
    %v3526 = vsel %vm37, %v3257, 0.0
    %v3527 = vsel %vm37, %v3262, 0.0
    %v3528 = vadd.f32 %v3526, %v3527
    %v3529 = vrot.slane %v3528, 4
    %v3530 = vadd.f32 %v3528, %v3529
    %v3531 = vrot.slane %v3530, 2
    %v3532 = vadd.f32 %v3530, %v3531
    %v3533 = vrot.slane %v3532, 1
    %v3534 = vadd.f32 %v3532, %v3533
    %v3535 = vsel %vm37, %v3332, 0.0
    %v3536 = vsel %vm37, %v3337, 0.0
    %v3537 = vadd.f32 %v3535, %v3536
    %v3538 = vrot.slane %v3537, 4
    %v3539 = vadd.f32 %v3537, %v3538
    %v3540 = vrot.slane %v3539, 2
    %v3541 = vadd.f32 %v3539, %v3540
    %v3542 = vrot.slane %v3541, 1
    %v3543 = vadd.f32 %v3541, %v3542
    %v3544 = vsel %vm37, %v3407, 0.0
    %v3545 = vsel %vm37, %v3412, 0.0
    %v3546 = vadd.f32 %v3544, %v3545
    %v3547 = vrot.slane %v3546, 4
    %v3548 = vadd.f32 %v3546, %v3547
    %v3549 = vrot.slane %v3548, 2
    %v3550 = vadd.f32 %v3548, %v3549
    %v3551 = vrot.slane %v3550, 1
    %v3552 = vadd.f32 %v3550, %v3551
    %v3553 = vsel %vm37, %v3482, 0.0
    %v3554 = vsel %vm37, %v3487, 0.0
    %v3555 = vadd.f32 %v3553, %v3554
    %v3556 = vrot.slane %v3555, 4
    %v3557 = vadd.f32 %v3555, %v3556
    %v3558 = vrot.slane %v3557, 2
    %v3559 = vadd.f32 %v3557, %v3558
    %v3560 = vrot.slane %v3559, 1
    %v3561 = vadd.f32 %v3559, %v3560
    %v3562 = vmul.f32 %v2957, %v2957
    %v3563 = vmul.f32 %v2962, %v2962
    %v3564 = vmul.f32 %v3032, %v3032
    %v3565 = vmul.f32 %v3037, %v3037
    %v3566 = vmul.f32 %v3107, %v3107
    %v3567 = vmul.f32 %v3112, %v3112
    %v3568 = vmul.f32 %v3182, %v3182
    %v3569 = vmul.f32 %v3187, %v3187
    %v3570 = vmul.f32 %v3257, %v3257
    %v3571 = vmul.f32 %v3262, %v3262
    %v3572 = vmul.f32 %v3332, %v3332
    %v3573 = vmul.f32 %v3337, %v3337
    %v3574 = vmul.f32 %v3407, %v3407
    %v3575 = vmul.f32 %v3412, %v3412
    %v3576 = vmul.f32 %v3482, %v3482
    %v3577 = vmul.f32 %v3487, %v3487
    %v3578 = vsel %vm37, %v3562, 0.0
    %v3579 = vsel %vm37, %v3563, 0.0
    %v3580 = vadd.f32 %v3578, %v3579
    %v3581 = vrot.slane %v3580, 4
    %v3582 = vadd.f32 %v3580, %v3581
    %v3583 = vrot.slane %v3582, 2
    %v3584 = vadd.f32 %v3582, %v3583
    %v3585 = vrot.slane %v3584, 1
    %v3586 = vadd.f32 %v3584, %v3585
    %v3587 = vsel %vm37, %v3564, 0.0
    %v3588 = vsel %vm37, %v3565, 0.0
    %v3589 = vadd.f32 %v3587, %v3588
    %v3590 = vrot.slane %v3589, 4
    %v3591 = vadd.f32 %v3589, %v3590
    %v3592 = vrot.slane %v3591, 2
    %v3593 = vadd.f32 %v3591, %v3592
    %v3594 = vrot.slane %v3593, 1
    %v3595 = vadd.f32 %v3593, %v3594
    %v3596 = vsel %vm37, %v3566, 0.0
    %v3597 = vsel %vm37, %v3567, 0.0
    %v3598 = vadd.f32 %v3596, %v3597
    %v3599 = vrot.slane %v3598, 4
    %v3600 = vadd.f32 %v3598, %v3599
    %v3601 = vrot.slane %v3600, 2
    %v3602 = vadd.f32 %v3600, %v3601
    %v3603 = vrot.slane %v3602, 1
    %v3604 = vadd.f32 %v3602, %v3603
    %v3605 = vsel %vm37, %v3568, 0.0
    %v3606 = vsel %vm37, %v3569, 0.0
    %v3607 = vadd.f32 %v3605, %v3606
    %v3608 = vrot.slane %v3607, 4
    %v3609 = vadd.f32 %v3607, %v3608
    %v3610 = vrot.slane %v3609, 2
    %v3611 = vadd.f32 %v3609, %v3610
    %v3612 = vrot.slane %v3611, 1
    %v3613 = vadd.f32 %v3611, %v3612
    %v3614 = vsel %vm37, %v3570, 0.0
    %v3615 = vsel %vm37, %v3571, 0.0
    %v3616 = vadd.f32 %v3614, %v3615
    %v3617 = vrot.slane %v3616, 4
    %v3618 = vadd.f32 %v3616, %v3617
    %v3619 = vrot.slane %v3618, 2
    %v3620 = vadd.f32 %v3618, %v3619
    %v3621 = vrot.slane %v3620, 1
    %v3622 = vadd.f32 %v3620, %v3621
    %v3623 = vsel %vm37, %v3572, 0.0
    %v3624 = vsel %vm37, %v3573, 0.0
    %v3625 = vadd.f32 %v3623, %v3624
    %v3626 = vrot.slane %v3625, 4
    %v3627 = vadd.f32 %v3625, %v3626
    %v3628 = vrot.slane %v3627, 2
    %v3629 = vadd.f32 %v3627, %v3628
    %v3630 = vrot.slane %v3629, 1
    %v3631 = vadd.f32 %v3629, %v3630
    %v3632 = vsel %vm37, %v3574, 0.0
    %v3633 = vsel %vm37, %v3575, 0.0
    %v3634 = vadd.f32 %v3632, %v3633
    %v3635 = vrot.slane %v3634, 4
    %v3636 = vadd.f32 %v3634, %v3635
    %v3637 = vrot.slane %v3636, 2
    %v3638 = vadd.f32 %v3636, %v3637
    %v3639 = vrot.slane %v3638, 1
    %v3640 = vadd.f32 %v3638, %v3639
    %v3641 = vsel %vm37, %v3576, 0.0
    %v3642 = vsel %vm37, %v3577, 0.0
    %v3643 = vadd.f32 %v3641, %v3642
    %v3644 = vrot.slane %v3643, 4
    %v3645 = vadd.f32 %v3643, %v3644
    %v3646 = vrot.slane %v3645, 2
    %v3647 = vadd.f32 %v3645, %v3646
    %v3648 = vrot.slane %v3647, 1
    %v3649 = vadd.f32 %v3647, %v3648
    %v3650 = vmul.f32 %v3498, 0.0625
    %v3651 = vmul.f32 %v3507, 0.0625
    %v3652 = vmul.f32 %v3516, 0.0625
    %v3653 = vmul.f32 %v3525, 0.0625
    %v3654 = vmul.f32 %v3534, 0.0625
    %v3655 = vmul.f32 %v3543, 0.0625
    %v3656 = vmul.f32 %v3552, 0.0625
    %v3657 = vmul.f32 %v3561, 0.0625
    %v3658 = vmul.f32 %v3586, 0.0625
    %v3659 = vmul.f32 %v3595, 0.0625
    %v3660 = vmul.f32 %v3604, 0.0625
    %v3661 = vmul.f32 %v3613, 0.0625
    %v3662 = vmul.f32 %v3622, 0.0625
    %v3663 = vmul.f32 %v3631, 0.0625
    %v3664 = vmul.f32 %v3640, 0.0625
    %v3665 = vmul.f32 %v3649, 0.0625
    %v3666 = vmul.f32 %v3650, %v3650
    %v3667 = vmul.f32 %v3651, %v3651
    %v3668 = vmul.f32 %v3652, %v3652
    %v3669 = vmul.f32 %v3653, %v3653
    %v3670 = vmul.f32 %v3654, %v3654
    %v3671 = vmul.f32 %v3655, %v3655
    %v3672 = vmul.f32 %v3656, %v3656
    %v3673 = vmul.f32 %v3657, %v3657
    %v3674 = vsub.f32 %v3658, %v3666
    %v3675 = vsub.f32 %v3659, %v3667
    %v3676 = vsub.f32 %v3660, %v3668
    %v3677 = vsub.f32 %v3661, %v3669
    %v3678 = vsub.f32 %v3662, %v3670
    %v3679 = vsub.f32 %v3663, %v3671
    %v3680 = vsub.f32 %v3664, %v3672
    %v3681 = vsub.f32 %v3665, %v3673
    %v3682 = vsub.f32 %v2957, %v3650
    %v3683 = vsub.f32 %v2962, %v3650
    %v3684 = vsub.f32 %v3032, %v3651
    %v3685 = vsub.f32 %v3037, %v3651
    %v3686 = vsub.f32 %v3107, %v3652
    %v3687 = vsub.f32 %v3112, %v3652
    %v3688 = vsub.f32 %v3182, %v3653
    %v3689 = vsub.f32 %v3187, %v3653
    %v3690 = vsub.f32 %v3257, %v3654
    %v3691 = vsub.f32 %v3262, %v3654
    %v3692 = vsub.f32 %v3332, %v3655
    %v3693 = vsub.f32 %v3337, %v3655
    %v3694 = vsub.f32 %v3407, %v3656
    %v3695 = vsub.f32 %v3412, %v3656
    %v3696 = vsub.f32 %v3482, %v3657
    %v3697 = vsub.f32 %v3487, %v3657
    %v3698 = vadd.f32 %v3674, 1e-05
    %v3699 = vadd.f32 %v3675, 1e-05
    %v3700 = vadd.f32 %v3676, 1e-05
    %v3701 = vadd.f32 %v3677, 1e-05
    %v3702 = vadd.f32 %v3678, 1e-05
    %v3703 = vadd.f32 %v3679, 1e-05
    %v3704 = vadd.f32 %v3680, 1e-05
    %v3705 = vadd.f32 %v3681, 1e-05
    %v3706 = vrsqrt.pop %v3698
    %v3707 = vrsqrt.pop %v3699
    %v3708 = vrsqrt.pop %v3700
    %v3709 = vrsqrt.pop %v3701
    %v3710 = vrsqrt.pop %v3702
    %v3711 = vrsqrt.pop %v3703
    %v3712 = vrsqrt.pop %v3704
    %v3713 = vrsqrt.pop %v3705
    %v3714 = vmul.f32 %v3682, %v3706
    %v3715 = vmul.f32 %v3683, %v3706
    %v3716 = vmul.f32 %v3684, %v3707
    %v3717 = vmul.f32 %v3685, %v3707
    %v3718 = vmul.f32 %v3686, %v3708
    %v3719 = vmul.f32 %v3687, %v3708
    %v3720 = vmul.f32 %v3688, %v3709
    %v3721 = vmul.f32 %v3689, %v3709
    %v3722 = vmul.f32 %v3690, %v3710
    %v3723 = vmul.f32 %v3691, %v3710
    %v3724 = vmul.f32 %v3692, %v3711
    %v3725 = vmul.f32 %v3693, %v3711
    %v3726 = vmul.f32 %v3694, %v3712
    %v3727 = vmul.f32 %v3695, %v3712
    %v3728 = vmul.f32 %v3696, %v3713
    %v3729 = vmul.f32 %v3697, %v3713
    %3730 = vset.pattern.permute.xlu0 1
    %3731 = vperm.xlu0 %3730, %v2869
    %v3732 = vpop.permute.xlu0 %3731
    %3734 = vset.pattern.permute.xlu0 1
    %3735 = vperm.xlu0 %3734, %v2870
    %v3736 = vpop.permute.xlu0 %3735
    %v3738 = vmul.f32 %v3714, %v3732
    %v3739 = vmul.f32 %v3715, %v3736
    %v3740 = vmul.f32 %v3716, %v3732
    %v3741 = vmul.f32 %v3717, %v3736
    %v3742 = vmul.f32 %v3718, %v3732
    %v3743 = vmul.f32 %v3719, %v3736
    %v3744 = vmul.f32 %v3720, %v3732
    %v3745 = vmul.f32 %v3721, %v3736
    %v3746 = vmul.f32 %v3722, %v3732
    %v3747 = vmul.f32 %v3723, %v3736
    %v3748 = vmul.f32 %v3724, %v3732
    %v3749 = vmul.f32 %v3725, %v3736
    %v3750 = vmul.f32 %v3726, %v3732
    %v3751 = vmul.f32 %v3727, %v3736
    %v3752 = vmul.f32 %v3728, %v3732
    %v3753 = vmul.f32 %v3729, %v3736
    %3754 = vset.pattern.permute.xlu0 2
    %3755 = vperm.xlu0 %3754, %v2869
    %v3756 = vpop.permute.xlu0 %3755
    %3758 = vset.pattern.permute.xlu0 2
    %3759 = vperm.xlu0 %3758, %v2870
    %v3760 = vpop.permute.xlu0 %3759
    %v3762 = vadd.f32 %v3738, %v3756
    %v3763 = vadd.f32 %v3739, %v3760
    %v3764 = vadd.f32 %v3740, %v3756
    %v3765 = vadd.f32 %v3741, %v3760
    %v3766 = vadd.f32 %v3742, %v3756
    %v3767 = vadd.f32 %v3743, %v3760
    %v3768 = vadd.f32 %v3744, %v3756
    %v3769 = vadd.f32 %v3745, %v3760
    %v3770 = vadd.f32 %v3746, %v3756
    %v3771 = vadd.f32 %v3747, %v3760
    %v3772 = vadd.f32 %v3748, %v3756
    %v3773 = vadd.f32 %v3749, %v3760
    %v3774 = vadd.f32 %v3750, %v3756
    %v3775 = vadd.f32 %v3751, %v3760
    %v3776 = vadd.f32 %v3752, %v3756
    %v3777 = vadd.f32 %v3753, %v3760
    %v3778 = vmax.f32 %v3762, 0.0
    %v3779 = vmax.f32 %v3763, 0.0
    %v3780 = vmax.f32 %v3764, 0.0
    %v3781 = vmax.f32 %v3765, 0.0
    %v3782 = vmax.f32 %v3766, 0.0
    %v3783 = vmax.f32 %v3767, 0.0
    %v3784 = vmax.f32 %v3768, 0.0
    %v3785 = vmax.f32 %v3769, 0.0
    %v3786 = vmax.f32 %v3770, 0.0
    %v3787 = vmax.f32 %v3771, 0.0
    %v3788 = vmax.f32 %v3772, 0.0
    %v3789 = vmax.f32 %v3773, 0.0
    %v3790 = vmax.f32 %v3774, 0.0
    %v3791 = vmax.f32 %v3775, 0.0
    %v3792 = vmax.f32 %v3776, 0.0
    %v3793 = vmax.f32 %v3777, 0.0
    %v3794 = vadd.f32 %v1496, %v3778
    %v3795 = vadd.f32 %v1497, %v3779
    %v3796 = vadd.f32 %v1498, %v3780
    %v3797 = vadd.f32 %v1499, %v3781
    %v3798 = vadd.f32 %v1500, %v3782
    %v3799 = vadd.f32 %v1501, %v3783
    %v3800 = vadd.f32 %v1502, %v3784
    %v3801 = vadd.f32 %v1503, %v3785
    %v3802 = vadd.f32 %v1504, %v3786
    %v3803 = vadd.f32 %v1505, %v3787
    %v3804 = vadd.f32 %v1506, %v3788
    %v3805 = vadd.f32 %v1507, %v3789
    %v3806 = vadd.f32 %v1508, %v3790
    %v3807 = vadd.f32 %v1509, %v3791
    %v3808 = vadd.f32 %v1510, %v3792
    %v3809 = vadd.f32 %v1511, %v3793
    %3810 = vst.msk [vmem:[#allocation2] sm:$0xff] %vm37, %v3794
    %3811 = vst.msk [vmem:[#allocation2 + $0x8] sm:$0xff] %vm37, %v3795
    %3812 = vst.msk [vmem:[#allocation2 + $0x10] sm:$0xff] %vm37, %v3796
    %3813 = vst.msk [vmem:[#allocation2 + $0x18] sm:$0xff] %vm37, %v3797
    %3814 = vst.msk [vmem:[#allocation2 + $0x20] sm:$0xff] %vm37, %v3798
    %3815 = vst.msk [vmem:[#allocation2 + $0x28] sm:$0xff] %vm37, %v3799
    %3816 = vst.msk [vmem:[#allocation2 + $0x30] sm:$0xff] %vm37, %v3800
    %3817 = vst.msk [vmem:[#allocation2 + $0x38] sm:$0xff] %vm37, %v3801
    %3818 = vst.msk [vmem:[#allocation2 + $0x40] sm:$0xff] %vm37, %v3802
    %3819 = vst.msk [vmem:[#allocation2 + $0x48] sm:$0xff] %vm37, %v3803
    %3820 = vst.msk [vmem:[#allocation2 + $0x50] sm:$0xff] %vm37, %v3804
    %3821 = vst.msk [vmem:[#allocation2 + $0x58] sm:$0xff] %vm37, %v3805
    %3822 = vst.msk [vmem:[#allocation2 + $0x60] sm:$0xff] %vm37, %v3806
    %3823 = vst.msk [vmem:[#allocation2 + $0x68] sm:$0xff] %vm37, %v3807
    %3824 = vst.msk [vmem:[#allocation2 + $0x70] sm:$0xff] %vm37, %v3808
    %3825 = vst.msk [vmem:[#allocation2 + $0x78] sm:$0xff] %vm37, %v3809
    // Predicated region
    $region22: #{denoise_linear1d.1} parent=1 // pred_check
      _
    $region23: #{denoise_linear1d.1} parent=1 // pred_check_branch
      %3827 = sbr.rel (0) target = $region25
    $region24: #{denoise_linear1d.1} parent=1 // pred_region
      %s3829 = ssub.s32 2048, 2048
      %3830 = vsyncadd [#allocation3], %s3829
      %s3831 = sshll.u32 [#allocation2], 4
      %s3832 = int_to_ptr.vmem [resolvable:$true] %s3831
      %3837 = dma.vmem_to_hbm [thread:$0]  %s3832, 2048, %s5, [#allocation3], 128, 128, 8
    $region25: #{denoise_linear1d.1} parent=1 // pred_fallthru
      _
    // Predicated region
    $region26: #{denoise_linear1d.1} parent=1 // pred_check
      _
    $region27: #{denoise_linear1d.1} parent=1 // pred_check_branch
      %3839 = sbr.rel (0) target = $region29
    $region28: #{denoise_linear1d.1} parent=1 // pred_region
      %3840 = dma.done [#allocation3], 2048
    $region29: #{denoise_linear1d.1} parent=1 // pred_fallthru
      _
    %3841 = vsyncpa [#allocation3], 1

</llo_original>
